<compile_context>
chip_gen: v5e
topology: v5e:2x2
jax: 0.10.0
libtpu: 0.0.40
codegen_flags: <defaults>
</compile_context>

<pallas_src>
import functools

import jax
import jax.numpy as jnp
from jax import lax
from jax.experimental import pallas as pl
from jax.experimental.pallas import tpu as pltpu

_LANES = 128
_EPS = 1e-12          # F.normalize eps
_EPS_SQ = _EPS * _EPS  # max(||v||, eps) == sqrt(max(sum v^2, eps^2))


def _round_up(x, m):
    return (x + m - 1) // m * m


def _make_ensemble_kernel(mode, num_models, feat_pad, num_channels,
                          use_vpu_proj):
    """Kernel body for one batch tile."""

    def kernel(x_ref, mask_ref, w_ref, out_ref):
        # x_ref:    (TB, C, HW)        native dtype (f32 or bf16)
        # mask_ref: (TB, HW)           native dtype, values are exact 0/1
        # w_ref:    (C, M*Fp)          f32  (zero-padded per-model heads)
        # out_ref:  (TB, M*Fp) 'cat' / (TB, Fp) 'mean'   f32
        x = x_ref[...].astype(jnp.float32)
        m = mask_ref[...].astype(jnp.float32)

        # masked global average pool over spatial positions -> (TB, C)
        msum = jnp.maximum(jnp.sum(m, axis=-1, keepdims=True), _EPS)   # (TB,1)
        pooled = jnp.sum(x * m[:, None, :], axis=-1) / msum            # (TB,C)

        w = w_ref[...]                                                 # (C, M*Fp)
        if use_vpu_proj:
            # Tiny contraction dim: broadcast multiply-accumulate on the VPU
            # instead of a badly shaped MXU matmul.
            emb = pooled[:, 0:1] * w[0:1, :]
            for c in range(1, num_channels):
                emb = emb + pooled[:, c:c + 1] * w[c:c + 1, :]
        else:
            emb = jnp.dot(pooled, w, preferred_element_type=jnp.float32)

        # L2 normalize via rsqrt (EUP); padded lanes are exactly zero so they
        # do not perturb the sums.
        if mode == "cat":
            ss = jnp.sum(emb * emb, axis=1, keepdims=True)
            out_ref[...] = emb * lax.rsqrt(jnp.maximum(ss, _EPS_SQ))
        else:
            acc = jnp.zeros((emb.shape[0], feat_pad), jnp.float32)
            for i in range(num_models):
                # 128-aligned full-vreg slice (Fp is a multiple of 128).
                e = emb[:, i * feat_pad:(i + 1) * feat_pad]
                ss = jnp.sum(e * e, axis=1, keepdims=True)
                acc = acc + e * lax.rsqrt(jnp.maximum(ss, _EPS_SQ))
            acc = acc * (1.0 / num_models)
            ss = jnp.sum(acc * acc, axis=1, keepdims=True)
            out_ref[...] = acc * lax.rsqrt(jnp.maximum(ss, _EPS_SQ))

    return kernel


def prepare_weights(weights):
    """(M, C, F) -> lane-padded (C, M*Fp) f32.  Call once, reuse every step."""
    M, C, F = weights.shape
    Fp = _round_up(F, _LANES)
    w = jnp.asarray(weights, jnp.float32)
    if Fp != F:
        # zero weight columns -> zero embedding lanes -> norms stay correct
        w = jnp.pad(w, ((0, 0), (0, 0), (0, Fp - F)))
    w2d = jnp.transpose(w, (1, 0, 2)).reshape(C, M * Fp)
    return w2d, M, F, Fp


def _vmem_limit_bytes():
    """Scoped-VMEM request: half of physical (64 MiB on v5e/v6e, 32 on v7x)."""
    try:
        cap = int(pltpu.get_tpu_info().vmem_capacity_bytes)
    except Exception:
        cap = 64 << 20  # conservative fallback (v7x per-core physical)
    return min(cap, 128 << 20) // 2


def _choose_batch_tile(B, C, HW, out_dim, in_bytes, w_bytes, vmem_limit):
    """Largest batch tile whose double-buffered streams + f32 temps fit."""
    per_row_stream = 2 * (C * HW * in_bytes + HW * in_bytes + out_dim * 4)
    per_row_temps = 3 * C * HW * 4            # f32 upcast / masked products
    per_row = per_row_stream + per_row_temps
    budget = max(vmem_limit - 2 * w_bytes, per_row)
    tb = int(budget // per_row)
    if tb >= B:
        return B                      # single block covers the whole batch
    tb = min(tb, 512)                 # ~HBM-roofline sweet spot
    return max(8, (tb // 8) * 8)      # keep the (8, 128) block constraint


@functools.partial(
    jax.jit,
    static_argnames=("mode", "num_models", "feat_dim", "feat_pad",
                     "batch_tile", "vmem_limit"))
def _ensemble_forward(x_nchw, mask, w2d, *, mode, num_models, feat_dim,
                      feat_pad, batch_tile, vmem_limit):
    B, C, H, W = x_nchw.shape
    HW = H * W
    M, F, Fp, TB = num_models, feat_dim, feat_pad, batch_tile

    # Free (contiguous) reshapes only -- NO dtype conversion pass in front of
    # the kernel; the kernel streams whatever dtype the caller holds and
    # accumulates in f32 internally.
    x_flat = x_nchw.reshape(B, C, HW)
    mask_flat = mask.reshape(B, HW).astype(x_flat.dtype)

    out_dim = M * Fp if mode == "cat" else Fp
    use_vpu_proj = C <= 32
    kernel = _make_ensemble_kernel(mode, M, Fp, C, use_vpu_proj)

    grid = (pl.cdiv(B, TB),)
    out_full = pl.pallas_call(
        kernel,
        out_shape=jax.ShapeDtypeStruct((B, out_dim), jnp.float32),
        grid=grid,
        in_specs=[
            pl.BlockSpec((TB, C, HW), lambda b: (b, 0, 0)),  # x: streamed
            pl.BlockSpec((TB, HW), lambda b: (b, 0)),        # mask: streamed
            pl.BlockSpec((C, M * Fp), lambda b: (0, 0)),     # weights: resident
        ],
        out_specs=pl.BlockSpec((TB, out_dim), lambda b: (b, 0)),
        compiler_params=pltpu.CompilerParams(
            dimension_semantics=("parallel",),
            vmem_limit_bytes=vmem_limit,
        ),
    )(x_flat, mask_flat, w2d)

    # Drop the zero padding lanes outside the kernel (keeps in-kernel stores
    # lane-dense).
    if mode == "cat":
        return out_full.reshape(B, M, Fp)[:, :, :F].reshape(B, M * F)
    return out_full[:, :F]


def ensemble_arcface_forward(x_nchw, mask, w2d, mode, num_models, feat_dim,
                             feat_pad):
    """x_nchw: (B, C, H, W), mask: (B, 1, H, W), w2d from prepare_weights()."""
    B, C, H, W = x_nchw.shape
    out_dim = num_models * feat_pad if mode == "cat" else feat_pad
    vmem_limit = _vmem_limit_bytes()
    w_bytes = int(w2d.size) * 4
    in_bytes = jnp.dtype(x_nchw.dtype).itemsize
    TB = _choose_batch_tile(B, C, H * W, out_dim, in_bytes, w_bytes,
                            vmem_limit)
    return _ensemble_forward(
        x_nchw, mask, w2d, mode=mode, num_models=num_models,
        feat_dim=feat_dim, feat_pad=feat_pad, batch_tile=int(TB),
        vmem_limit=int(vmem_limit))


def _reference(x_nchw, mask, weights, mode):
    """Plain-JAX reference mirroring the PyTorch semantics (full f32 path,
    matching the kernel's precision policy)."""
    B, C, H, W = x_nchw.shape
    M, _, F = weights.shape
    xf = x_nchw.astype(jnp.float32).reshape(B, C, H * W)
    m = mask.astype(jnp.float32).reshape(B, H * W)
    msum = jnp.maximum(jnp.sum(m, axis=-1, keepdims=True), _EPS)
    pooled = jnp.sum(xf * m[:, None, :], axis=-1) / msum
    embs = [pooled @ weights[i].astype(jnp.float32) for i in range(M)]

    def normalize(v):
        n = jnp.sqrt(jnp.sum(v * v, axis=1, keepdims=True))
        return v / jnp.maximum(n, _EPS)

    if mode == "cat":
        return normalize(jnp.concatenate(embs, axis=1))
    stacked = jnp.stack([normalize(e) for e in embs], axis=2)  # (B, F, M)
    return normalize(jnp.mean(stacked, axis=2))


if __name__ == "__main__":
    key = jax.random.PRNGKey(0)
    B, C, H, W = 2, 4, 16, 16     # input image (NCHW, PyTorch convention)
    M, F = 3, 32                  # 3 ensemble members, 32-dim embeddings

    kx, km, kw = jax.random.split(key, 3)
    x = jax.random.normal(kx, (B, C, H, W), dtype=jnp.float32)
    mask = (jax.random.uniform(km, (B, 1, H, W)) > 0.3).astype(jnp.float32)
    weights = jax.random.normal(kw, (M, C, F), dtype=jnp.float32) * 0.1

    # Layout transform / lane padding done once, outside the per-step path.
    w2d, Mn, Fn, Fp = prepare_weights(weights)

    ok = True
    for mode in ("cat", "mean"):
        out = ensemble_arcface_forward(x, mask, w2d, mode, Mn, Fn, Fp)
        out = jax.block_until_ready(out)
        ref = _reference(x, mask, weights, mode)
        if not jnp.allclose(out, ref, atol=1e-5, rtol=1e-5):
            ok = False
            diff = float(jnp.max(jnp.abs(out - ref)))
            print(f"MISMATCH in mode={mode}: max|diff|={diff:.3e}")

    if ok:
        print("KERNEL_OK")
</pallas_src>

<mosaic_0001>
module attributes {stable_mosaic.version = 11 : i64} {
  func.func @kernel(%arg0: i32, %arg1: memref<2x4x256xf32, #tpu.memory_space<vmem>>, %arg2: memref<2x256xf32, #tpu.memory_space<vmem>>, %arg3: memref<4x384xf32, #tpu.memory_space<vmem>>, %arg4: memref<2x384xf32, #tpu.memory_space<vmem>>) attributes {dimension_semantics = [#tpu.dimension_semantics<parallel>], iteration_bounds = array<i64: 1>, scalar_prefetch = 0 : i64, scratch_operands = 0 : i64, tpu.core_type = #tpu.core_type<tc>, window_params = [{transform_indices = @transform_0, window_bounds = array<i64: 2, 4, 256>}, {transform_indices = @transform_1, window_bounds = array<i64: 2, 256>}, {pipeline_mode = #tpu.pipeline_mode<synchronous>, transform_indices = @transform_2, window_bounds = array<i64: 4, 384>}, {transform_indices = @transform_3, window_bounds = array<i64: 2, 384>}]} {
    %c0 = arith.constant 0 : index
    %c0_0 = arith.constant 0 : index
    %c0_1 = arith.constant 0 : index
    %0 = vector.load %arg1[%c0, %c0_0, %c0_1] : memref<2x4x256xf32, #tpu.memory_space<vmem>>, vector<2x4x256xf32>
    %c0_2 = arith.constant 0 : index
    %c0_3 = arith.constant 0 : index
    %1 = vector.load %arg2[%c0_2, %c0_3] : memref<2x256xf32, #tpu.memory_space<vmem>>, vector<2x256xf32>
    %cst = arith.constant dense<0.000000e+00> : vector<2xf32>
    %2 = vector.multi_reduction <add>, %1, %cst [1] : vector<2x256xf32> to vector<2xf32>
    %3 = vector.shape_cast %2 : vector<2xf32> to vector<2x1xf32>
    %cst_4 = arith.constant 9.99999996E-13 : f32
    %4 = vector.broadcast %cst_4 : f32 to vector<2x1xf32>
    %5 = arith.maximumf %3, %4 : vector<2x1xf32>
    %6 = vector.shape_cast %1 : vector<2x256xf32> to vector<2x1x256xf32>
    %7 = vector.broadcast %6 : vector<2x1x256xf32> to vector<2x4x256xf32>
    %8 = arith.mulf %0, %7 : vector<2x4x256xf32>
    %cst_5 = arith.constant dense<0.000000e+00> : vector<2x4xf32>
    %9 = vector.multi_reduction <add>, %8, %cst_5 [2] : vector<2x4x256xf32> to vector<2x4xf32>
    %10 = vector.broadcast %5 : vector<2x1xf32> to vector<2x4xf32>
    %11 = arith.divf %9, %10 : vector<2x4xf32>
    %c0_6 = arith.constant 0 : index
    %c0_7 = arith.constant 0 : index
    %12 = vector.load %arg3[%c0_6, %c0_7] : memref<4x384xf32, #tpu.memory_space<vmem>>, vector<4x384xf32>
    %13 = vector.extract_strided_slice %11 {offsets = [0, 0], sizes = [2, 1], strides = [1, 1]} : vector<2x4xf32> to vector<2x1xf32>
    %14 = vector.extract_strided_slice %12 {offsets = [0, 0], sizes = [1, 384], strides = [1, 1]} : vector<4x384xf32> to vector<1x384xf32>
    %15 = vector.broadcast %13 : vector<2x1xf32> to vector<2x384xf32>
    %16 = vector.broadcast %14 : vector<1x384xf32> to vector<2x384xf32>
    %17 = arith.mulf %15, %16 : vector<2x384xf32>
    %18 = vector.extract_strided_slice %11 {offsets = [0, 1], sizes = [2, 1], strides = [1, 1]} : vector<2x4xf32> to vector<2x1xf32>
    %19 = vector.extract_strided_slice %12 {offsets = [1, 0], sizes = [1, 384], strides = [1, 1]} : vector<4x384xf32> to vector<1x384xf32>
    %20 = vector.broadcast %18 : vector<2x1xf32> to vector<2x384xf32>
    %21 = vector.broadcast %19 : vector<1x384xf32> to vector<2x384xf32>
    %22 = arith.mulf %20, %21 : vector<2x384xf32>
    %23 = arith.addf %17, %22 : vector<2x384xf32>
    %24 = vector.extract_strided_slice %11 {offsets = [0, 2], sizes = [2, 1], strides = [1, 1]} : vector<2x4xf32> to vector<2x1xf32>
    %25 = vector.extract_strided_slice %12 {offsets = [2, 0], sizes = [1, 384], strides = [1, 1]} : vector<4x384xf32> to vector<1x384xf32>
    %26 = vector.broadcast %24 : vector<2x1xf32> to vector<2x384xf32>
    %27 = vector.broadcast %25 : vector<1x384xf32> to vector<2x384xf32>
    %28 = arith.mulf %26, %27 : vector<2x384xf32>
    %29 = arith.addf %23, %28 : vector<2x384xf32>
    %30 = vector.extract_strided_slice %11 {offsets = [0, 3], sizes = [2, 1], strides = [1, 1]} : vector<2x4xf32> to vector<2x1xf32>
    %31 = vector.extract_strided_slice %12 {offsets = [3, 0], sizes = [1, 384], strides = [1, 1]} : vector<4x384xf32> to vector<1x384xf32>
    %32 = vector.broadcast %30 : vector<2x1xf32> to vector<2x384xf32>
    %33 = vector.broadcast %31 : vector<1x384xf32> to vector<2x384xf32>
    %34 = arith.mulf %32, %33 : vector<2x384xf32>
    %35 = arith.addf %29, %34 : vector<2x384xf32>
    %36 = arith.mulf %35, %35 : vector<2x384xf32>
    %cst_8 = arith.constant dense<0.000000e+00> : vector<2xf32>
    %37 = vector.multi_reduction <add>, %36, %cst_8 [1] : vector<2x384xf32> to vector<2xf32>
    %38 = vector.shape_cast %37 : vector<2xf32> to vector<2x1xf32>
    %cst_9 = arith.constant 1.000000e-24 : f32
    %39 = vector.broadcast %cst_9 : f32 to vector<2x1xf32>
    %40 = arith.maximumf %38, %39 : vector<2x1xf32>
    %41 = math.rsqrt %40 : vector<2x1xf32>
    %42 = vector.broadcast %41 : vector<2x1xf32> to vector<2x384xf32>
    %43 = arith.mulf %35, %42 : vector<2x384xf32>
    %c0_10 = arith.constant 0 : index
    %c0_11 = arith.constant 0 : index
    %44 = vector.load %arg4[%c0_10, %c0_11] : memref<2x384xf32, #tpu.memory_space<vmem>>, vector<2x384xf32>
    tpu.vector_store %arg4[%c0_10, %c0_11], %43 {strides = array<i32>} : memref<2x384xf32, #tpu.memory_space<vmem>>, vector<2x384xf32>,
    return
  }
  func.func @transform_0(%arg0: i32) -> (i32, i32, i32) {
    %c0_i32 = arith.constant 0 : i32
    %c0_i32_0 = arith.constant 0 : i32
    %c0_i32_1 = arith.constant 0 : i32
    return %arg0, %c0_i32, %c0_i32_0 : i32, i32, i32
  }
  func.func @transform_1(%arg0: i32) -> (i32, i32) {
    %c0_i32 = arith.constant 0 : i32
    %c0_i32_0 = arith.constant 0 : i32
    return %arg0, %c0_i32 : i32, i32
  }
  func.func @transform_2(%arg0: i32) -> (i32, i32) {
    %c0_i32 = arith.constant 0 : i32
    %c0_i32_0 = arith.constant 0 : i32
    %c0_i32_1 = arith.constant 0 : i32
    return %c0_i32, %c0_i32_0 : i32, i32
  }
  func.func @transform_3(%arg0: i32) -> (i32, i32) {
    %c0_i32 = arith.constant 0 : i32
    %c0_i32_0 = arith.constant 0 : i32
    return %arg0, %c0_i32 : i32, i32
  }
}

</mosaic_0001>

<llo_original>
// kernel: _ensemble_forward.1
$region0: #{_ensemble_forward.1}
  #allocation0 [shape = 'u32[]', space=smem, size = 0x4, offset = 0x4, fixed_abs, tag = 'smem constant byte address 0x4 - core index']
  #allocation1 [shape = 'u32[72,128]{1,0:T(1,128)}', space=vmem, size = 0x9000, scoped, tag = 'internal scratch']
  %s0 = inlined_call_operand.vmem [shape: f32[2,4,256], index: 0, kind: input, shape index: {}]
  %s1 = inlined_call_operand.vmem [shape: f32[2,256], index: 1, kind: input, shape index: {}]
  %s2 = inlined_call_operand.vmem [shape: f32[4,384], index: 2, kind: input, shape index: {}]
  %s3 = inlined_call_operand.vmem [shape: f32[2,384], index: 3, kind: output, shape index: {}]
  %s4 = sld [smem:[#allocation0]]
  $region22: #{_ensemble_forward.1} parent=0
    _
  %s6 = ssub.s32 1, %s4
  %s7 = scalar_select 0, %s6, %s4
  // Predicated region
  $region2: #{_ensemble_forward.1} parent=0 // pred_check
    _
  $region3: #{_ensemble_forward.1} parent=0 // pred_check_branch
    %9 = sbr.rel (0) target = $region5
  $region4: #{_ensemble_forward.1} parent=0 // pred_region
    _
  $region5: #{_ensemble_forward.1} parent=0 // pred_fallthru
    _
  // Predicated region
  $region6: #{_ensemble_forward.1} parent=0 // pred_check
    _
  $region7: #{_ensemble_forward.1} parent=0 // pred_check_branch
    %11 = sbr.rel (0) target = $region9
  $region8: #{_ensemble_forward.1} parent=0 // pred_region
    _
  $region9: #{_ensemble_forward.1} parent=0 // pred_fallthru
    _
  // Predicated region
  $region10: #{_ensemble_forward.1} parent=0 // pred_check
    _
  $region11: #{_ensemble_forward.1} parent=0 // pred_check_branch
    %13 = sbr.rel (0) target = $region13
  $region12: #{_ensemble_forward.1} parent=0 // pred_region
    _
  $region13: #{_ensemble_forward.1} parent=0 // pred_fallthru
    _
  %v14 = vld [vmem:[%s0] sm:$0xff]
  %v15 = vld [vmem:[%s0 + $0x8] sm:$0xff]
  %v16 = vld [vmem:[%s1] sm:$0xf]
  %18 = vst [vmem:[#allocation1] ss:$4 sm:$0xff] %v16
  %v19 = vld.sshfl [vmem:[#allocation1] sm:$0xff pattern:$0x73625140]
  %v20 = vld.sshfl [vmem:[#allocation1 + $0x8] sm:$0xff pattern:$0x73625140]
  %vm23 = vcmask 1041408
  %v24 = vsel %vm23, %v19, 0.0
  %v25 = vsel %vm23, %v20, 0.0
  %v26 = vadd.f32 %v24, %v25
  %27 = vadd.xlane.f32.xlu0 %v26
  %v28 = vpop.xlane.xlu0 %27
  %v29 = vmax.f32 %v28, 1e-12
  %v30 = vrot.slane %v16, 1
  %v31 = vrot.slane %v16, 2
  %v32 = vrot.slane %v16, 3
  %vm33 = vcmask 1040384
  %v34 = vsel %vm33, %v16, %v30
  %vm35 = vcmask 1042434
  %v36 = vsel %vm35, %v31, %v32
  %v37 = vsel %vm23, %v34, %v36
  %vm38 = vcmask 1041409
  %v39 = vsel %vm38, %v16, %v30
  %vm40 = vcmask 1043459
  %v41 = vsel %vm40, %v31, %v32
  %vm42 = vcmask 1042433
  %v43 = vsel %vm42, %v39, %v41
  %v44 = vrot.slane %v43, 1
  %v45 = vperm.slane %v37, 0
  %v46 = vperm.slane %v37, 1
  %v47 = vperm.slane %v44, 0
  %v48 = vperm.slane %v44, 1
  %v49 = vrot.slane %v46, 4
  %v50 = vrot.slane %v48, 4
  %vm51 = vcmask 1043456
  %v52 = vsel %vm51, %v45, %v49
  %v53 = vsel %vm51, %v47, %v50
  %v56 = vmul.f32 %v14, %v52
  %v57 = vmul.f32 %v15, %v53
  %60 = vst [vmem:[#allocation1] ss:$2 sm:$0xff] %v56
  %v61 = vld.sshfl [vmem:[#allocation1] sm:$0xff pattern:$0x75316420]
  %v62 = vld.sshfl [vmem:[#allocation1 + $0x8] sm:$0xff pattern:$0x75316420]
  %s63 = scalar_lea.vmem [#allocation1], 16
  %64 = vst [vmem:[%s63] ss:$2 sm:$0xff] %v57
  %v65 = vld.sshfl [vmem:[#allocation1 + $0x10] sm:$0xff pattern:$0x75316420]
  %v66 = vld.sshfl [vmem:[#allocation1 + $0x18] sm:$0xff pattern:$0x75316420]
  %v71 = vsel %vm51, %v61, 0.0
  %v72 = vsel %vm51, %v62, 0.0
  %v73 = vadd.f32 %v71, %v72
  %74 = vadd.xlane.f32.xlu0 %v73
  %v75 = vpop.xlane.xlu0 %74
  %v76 = vsel %vm51, %v65, 0.0
  %v77 = vsel %vm51, %v66, 0.0
  %v78 = vadd.f32 %v76, %v77
  %79 = vadd.xlane.f32.xlu0 %v78
  %v80 = vpop.xlane.xlu0 %79
  %v82 = vperm.slane %v29, 0
  %v83 = vperm.slane %v29, 1
  %v86 = vrcp.pop %v82
  %v87 = vmul.f32 %v82, %v86
  %v88 = vsub.f32 1.0, %v87
  %v89 = vmul.f32 %v86, %v88
  %v90 = vadd.f32 %v86, %v89
  %vm91 = vweird.f32 %v82
  %vm92 = vweird.f32 %v86
  %vm93 = vmor %vm91, %vm92
  %v94 = vsel %vm93, %v86, %v90
  %v95 = vand.u32 2147483647, %v82
  %vm96 = vcmp.eq.f32.partialorder %v95, 8.507059e+37
  %v97 = vand.u32 %v82, 2147483648
  %v98 = vor.u32 1.1754944e-38, %v97
  %v99 = vsel %vm96, %v98, %v94
  %v100 = vmul.f32 %v75, %v99
  %v101 = vrcp.pop %v83
  %v102 = vmul.f32 %v83, %v101
  %v103 = vsub.f32 1.0, %v102
  %v104 = vmul.f32 %v101, %v103
  %v105 = vadd.f32 %v101, %v104
  %vm106 = vweird.f32 %v83
  %vm107 = vweird.f32 %v101
  %vm108 = vmor %vm106, %vm107
  %v109 = vsel %vm108, %v101, %v105
  %v110 = vand.u32 2147483647, %v83
  %vm111 = vcmp.eq.f32.partialorder %v110, 8.507059e+37
  %v112 = vand.u32 %v83, 2147483648
  %v113 = vor.u32 1.1754944e-38, %v112
  %v114 = vsel %vm111, %v113, %v109
  %v115 = vmul.f32 %v80, %v114
  %v116 = vld [vmem:[%s2] sm:$0xff]
  %v117 = vld [vmem:[%s2 + $0x8] sm:$0xf]
  %v118 = vperm.slane %v100, 0
  %v119 = vperm.slane %v115, 0
  %v122 = vperm.slane %v116, 0
  %v123 = vperm.slane %v116, 4
  %v124 = vperm.slane %v117, 0
  %v128 = vperm.slane %v122, 0
  %v129 = vperm.slane %v123, 0
  %v130 = vperm.slane %v124, 0
  %v134 = vlaneseq
  %v135 = vshrl.u32 %v134, 7
  %137 = vset.pattern.permute.xlu0 %v135
  %138 = vperm.xlu0 %137, %v128
  %v139 = vpop.permute.xlu0 %138
  %v140 = vlaneseq
  %v141 = vshrl.u32 %v140, 7
  %v142 = vadd.s32 %v141, 8
  %143 = vset.pattern.permute.xlu0 %v142
  %144 = vperm.xlu0 %143, %v128
  %v145 = vpop.permute.xlu0 %144
  %v146 = vlaneseq
  %v147 = vshrl.u32 %v146, 7
  %v148 = vadd.s32 %v147, 16
  %149 = vset.pattern.permute.xlu0 %v148
  %150 = vperm.xlu0 %149, %v128
  %v151 = vpop.permute.xlu0 %150
  %v152 = vlaneseq
  %v153 = vshrl.u32 %v152, 7
  %v154 = vadd.s32 %v153, 24
  %155 = vset.pattern.permute.xlu0 %v154
  %156 = vperm.xlu0 %155, %v128
  %v157 = vpop.permute.xlu0 %156
  %v158 = vlaneseq
  %v159 = vshrl.u32 %v158, 7
  %v160 = vadd.s32 %v159, 32
  %161 = vset.pattern.permute.xlu0 %v160
  %162 = vperm.xlu0 %161, %v128
  %v163 = vpop.permute.xlu0 %162
  %v164 = vlaneseq
  %v165 = vshrl.u32 %v164, 7
  %v166 = vadd.s32 %v165, 40
  %167 = vset.pattern.permute.xlu0 %v166
  %168 = vperm.xlu0 %167, %v128
  %v169 = vpop.permute.xlu0 %168
  %v170 = vlaneseq
  %v171 = vshrl.u32 %v170, 7
  %v172 = vadd.s32 %v171, 48
  %173 = vset.pattern.permute.xlu0 %v172
  %174 = vperm.xlu0 %173, %v128
  %v175 = vpop.permute.xlu0 %174
  %v176 = vlaneseq
  %v177 = vshrl.u32 %v176, 7
  %v178 = vadd.s32 %v177, 56
  %179 = vset.pattern.permute.xlu0 %v178
  %180 = vperm.xlu0 %179, %v128
  %v181 = vpop.permute.xlu0 %180
  %v182 = vlaneseq
  %v183 = vshrl.u32 %v182, 7
  %v184 = vadd.s32 %v183, 64
  %185 = vset.pattern.permute.xlu0 %v184
  %186 = vperm.xlu0 %185, %v128
  %v187 = vpop.permute.xlu0 %186
  %v188 = vlaneseq
  %v189 = vshrl.u32 %v188, 7
  %v190 = vadd.s32 %v189, 72
  %191 = vset.pattern.permute.xlu0 %v190
  %192 = vperm.xlu0 %191, %v128
  %v193 = vpop.permute.xlu0 %192
  %v194 = vlaneseq
  %v195 = vshrl.u32 %v194, 7
  %v196 = vadd.s32 %v195, 80
  %197 = vset.pattern.permute.xlu0 %v196
  %198 = vperm.xlu0 %197, %v128
  %v199 = vpop.permute.xlu0 %198
  %v200 = vlaneseq
  %v201 = vshrl.u32 %v200, 7
  %v202 = vadd.s32 %v201, 88
  %203 = vset.pattern.permute.xlu0 %v202
  %204 = vperm.xlu0 %203, %v128
  %v205 = vpop.permute.xlu0 %204
  %v206 = vlaneseq
  %v207 = vshrl.u32 %v206, 7
  %v208 = vadd.s32 %v207, 96
  %209 = vset.pattern.permute.xlu0 %v208
  %210 = vperm.xlu0 %209, %v128
  %v211 = vpop.permute.xlu0 %210
  %v212 = vlaneseq
  %v213 = vshrl.u32 %v212, 7
  %v214 = vadd.s32 %v213, 104
  %215 = vset.pattern.permute.xlu0 %v214
  %216 = vperm.xlu0 %215, %v128
  %v217 = vpop.permute.xlu0 %216
  %v218 = vlaneseq
  %v219 = vshrl.u32 %v218, 7
  %v220 = vadd.s32 %v219, 112
  %221 = vset.pattern.permute.xlu0 %v220
  %222 = vperm.xlu0 %221, %v128
  %v223 = vpop.permute.xlu0 %222
  %v224 = vlaneseq
  %v225 = vshrl.u32 %v224, 7
  %v226 = vadd.s32 %v225, 120
  %227 = vset.pattern.permute.xlu0 %v226
  %228 = vperm.xlu0 %227, %v128
  %v229 = vpop.permute.xlu0 %228
  %v230 = vlaneseq
  %v231 = vshrl.u32 %v230, 7
  %233 = vset.pattern.permute.xlu0 %v231
  %234 = vperm.xlu0 %233, %v129
  %v235 = vpop.permute.xlu0 %234
  %v236 = vlaneseq
  %v237 = vshrl.u32 %v236, 7
  %v238 = vadd.s32 %v237, 8
  %239 = vset.pattern.permute.xlu0 %v238
  %240 = vperm.xlu0 %239, %v129
  %v241 = vpop.permute.xlu0 %240
  %v242 = vlaneseq
  %v243 = vshrl.u32 %v242, 7
  %v244 = vadd.s32 %v243, 16
  %245 = vset.pattern.permute.xlu0 %v244
  %246 = vperm.xlu0 %245, %v129
  %v247 = vpop.permute.xlu0 %246
  %v248 = vlaneseq
  %v249 = vshrl.u32 %v248, 7
  %v250 = vadd.s32 %v249, 24
  %251 = vset.pattern.permute.xlu0 %v250
  %252 = vperm.xlu0 %251, %v129
  %v253 = vpop.permute.xlu0 %252
  %v254 = vlaneseq
  %v255 = vshrl.u32 %v254, 7
  %v256 = vadd.s32 %v255, 32
  %257 = vset.pattern.permute.xlu0 %v256
  %258 = vperm.xlu0 %257, %v129
  %v259 = vpop.permute.xlu0 %258
  %v260 = vlaneseq
  %v261 = vshrl.u32 %v260, 7
  %v262 = vadd.s32 %v261, 40
  %263 = vset.pattern.permute.xlu0 %v262
  %264 = vperm.xlu0 %263, %v129
  %v265 = vpop.permute.xlu0 %264
  %v266 = vlaneseq
  %v267 = vshrl.u32 %v266, 7
  %v268 = vadd.s32 %v267, 48
  %269 = vset.pattern.permute.xlu0 %v268
  %270 = vperm.xlu0 %269, %v129
  %v271 = vpop.permute.xlu0 %270
  %v272 = vlaneseq
  %v273 = vshrl.u32 %v272, 7
  %v274 = vadd.s32 %v273, 56
  %275 = vset.pattern.permute.xlu0 %v274
  %276 = vperm.xlu0 %275, %v129
  %v277 = vpop.permute.xlu0 %276
  %v278 = vlaneseq
  %v279 = vshrl.u32 %v278, 7
  %v280 = vadd.s32 %v279, 64
  %281 = vset.pattern.permute.xlu0 %v280
  %282 = vperm.xlu0 %281, %v129
  %v283 = vpop.permute.xlu0 %282
  %v284 = vlaneseq
  %v285 = vshrl.u32 %v284, 7
  %v286 = vadd.s32 %v285, 72
  %287 = vset.pattern.permute.xlu0 %v286
  %288 = vperm.xlu0 %287, %v129
  %v289 = vpop.permute.xlu0 %288
  %v290 = vlaneseq
  %v291 = vshrl.u32 %v290, 7
  %v292 = vadd.s32 %v291, 80
  %293 = vset.pattern.permute.xlu0 %v292
  %294 = vperm.xlu0 %293, %v129
  %v295 = vpop.permute.xlu0 %294
  %v296 = vlaneseq
  %v297 = vshrl.u32 %v296, 7
  %v298 = vadd.s32 %v297, 88
  %299 = vset.pattern.permute.xlu0 %v298
  %300 = vperm.xlu0 %299, %v129
  %v301 = vpop.permute.xlu0 %300
  %v302 = vlaneseq
  %v303 = vshrl.u32 %v302, 7
  %v304 = vadd.s32 %v303, 96
  %305 = vset.pattern.permute.xlu0 %v304
  %306 = vperm.xlu0 %305, %v129
  %v307 = vpop.permute.xlu0 %306
  %v308 = vlaneseq
  %v309 = vshrl.u32 %v308, 7
  %v310 = vadd.s32 %v309, 104
  %311 = vset.pattern.permute.xlu0 %v310
  %312 = vperm.xlu0 %311, %v129
  %v313 = vpop.permute.xlu0 %312
  %v314 = vlaneseq
  %v315 = vshrl.u32 %v314, 7
  %v316 = vadd.s32 %v315, 112
  %317 = vset.pattern.permute.xlu0 %v316
  %318 = vperm.xlu0 %317, %v129
  %v319 = vpop.permute.xlu0 %318
  %v320 = vlaneseq
  %v321 = vshrl.u32 %v320, 7
  %v322 = vadd.s32 %v321, 120
  %323 = vset.pattern.permute.xlu0 %v322
  %324 = vperm.xlu0 %323, %v129
  %v325 = vpop.permute.xlu0 %324
  %v326 = vlaneseq
  %v327 = vshrl.u32 %v326, 7
  %329 = vset.pattern.permute.xlu0 %v327
  %330 = vperm.xlu0 %329, %v130
  %v331 = vpop.permute.xlu0 %330
  %v332 = vlaneseq
  %v333 = vshrl.u32 %v332, 7
  %v334 = vadd.s32 %v333, 8
  %335 = vset.pattern.permute.xlu0 %v334
  %336 = vperm.xlu0 %335, %v130
  %v337 = vpop.permute.xlu0 %336
  %v338 = vlaneseq
  %v339 = vshrl.u32 %v338, 7
  %v340 = vadd.s32 %v339, 16
  %341 = vset.pattern.permute.xlu0 %v340
  %342 = vperm.xlu0 %341, %v130
  %v343 = vpop.permute.xlu0 %342
  %v344 = vlaneseq
  %v345 = vshrl.u32 %v344, 7
  %v346 = vadd.s32 %v345, 24
  %347 = vset.pattern.permute.xlu0 %v346
  %348 = vperm.xlu0 %347, %v130
  %v349 = vpop.permute.xlu0 %348
  %v350 = vlaneseq
  %v351 = vshrl.u32 %v350, 7
  %v352 = vadd.s32 %v351, 32
  %353 = vset.pattern.permute.xlu0 %v352
  %354 = vperm.xlu0 %353, %v130
  %v355 = vpop.permute.xlu0 %354
  %v356 = vlaneseq
  %v357 = vshrl.u32 %v356, 7
  %v358 = vadd.s32 %v357, 40
  %359 = vset.pattern.permute.xlu0 %v358
  %360 = vperm.xlu0 %359, %v130
  %v361 = vpop.permute.xlu0 %360
  %v362 = vlaneseq
  %v363 = vshrl.u32 %v362, 7
  %v364 = vadd.s32 %v363, 48
  %365 = vset.pattern.permute.xlu0 %v364
  %366 = vperm.xlu0 %365, %v130
  %v367 = vpop.permute.xlu0 %366
  %v368 = vlaneseq
  %v369 = vshrl.u32 %v368, 7
  %v370 = vadd.s32 %v369, 56
  %371 = vset.pattern.permute.xlu0 %v370
  %372 = vperm.xlu0 %371, %v130
  %v373 = vpop.permute.xlu0 %372
  %v374 = vlaneseq
  %v375 = vshrl.u32 %v374, 7
  %v376 = vadd.s32 %v375, 64
  %377 = vset.pattern.permute.xlu0 %v376
  %378 = vperm.xlu0 %377, %v130
  %v379 = vpop.permute.xlu0 %378
  %v380 = vlaneseq
  %v381 = vshrl.u32 %v380, 7
  %v382 = vadd.s32 %v381, 72
  %383 = vset.pattern.permute.xlu0 %v382
  %384 = vperm.xlu0 %383, %v130
  %v385 = vpop.permute.xlu0 %384
  %v386 = vlaneseq
  %v387 = vshrl.u32 %v386, 7
  %v388 = vadd.s32 %v387, 80
  %389 = vset.pattern.permute.xlu0 %v388
  %390 = vperm.xlu0 %389, %v130
  %v391 = vpop.permute.xlu0 %390
  %v392 = vlaneseq
  %v393 = vshrl.u32 %v392, 7
  %v394 = vadd.s32 %v393, 88
  %395 = vset.pattern.permute.xlu0 %v394
  %396 = vperm.xlu0 %395, %v130
  %v397 = vpop.permute.xlu0 %396
  %v398 = vlaneseq
  %v399 = vshrl.u32 %v398, 7
  %v400 = vadd.s32 %v399, 96
  %401 = vset.pattern.permute.xlu0 %v400
  %402 = vperm.xlu0 %401, %v130
  %v403 = vpop.permute.xlu0 %402
  %v404 = vlaneseq
  %v405 = vshrl.u32 %v404, 7
  %v406 = vadd.s32 %v405, 104
  %407 = vset.pattern.permute.xlu0 %v406
  %408 = vperm.xlu0 %407, %v130
  %v409 = vpop.permute.xlu0 %408
  %v410 = vlaneseq
  %v411 = vshrl.u32 %v410, 7
  %v412 = vadd.s32 %v411, 112
  %413 = vset.pattern.permute.xlu0 %v412
  %414 = vperm.xlu0 %413, %v130
  %v415 = vpop.permute.xlu0 %414
  %v416 = vlaneseq
  %v417 = vshrl.u32 %v416, 7
  %v418 = vadd.s32 %v417, 120
  %419 = vset.pattern.permute.xlu0 %v418
  %420 = vperm.xlu0 %419, %v130
  %v421 = vpop.permute.xlu0 %420
  %v470 = vmul.f32 %v118, %v139
  %v471 = vmul.f32 %v118, %v145
  %v472 = vmul.f32 %v118, %v151
  %v473 = vmul.f32 %v118, %v157
  %v474 = vmul.f32 %v118, %v163
  %v475 = vmul.f32 %v118, %v169
  %v476 = vmul.f32 %v118, %v175
  %v477 = vmul.f32 %v118, %v181
  %v478 = vmul.f32 %v118, %v187
  %v479 = vmul.f32 %v118, %v193
  %v480 = vmul.f32 %v118, %v199
  %v481 = vmul.f32 %v118, %v205
  %v482 = vmul.f32 %v118, %v211
  %v483 = vmul.f32 %v118, %v217
  %v484 = vmul.f32 %v118, %v223
  %v485 = vmul.f32 %v118, %v229
  %v486 = vmul.f32 %v118, %v235
  %v487 = vmul.f32 %v118, %v241
  %v488 = vmul.f32 %v118, %v247
  %v489 = vmul.f32 %v118, %v253
  %v490 = vmul.f32 %v118, %v259
  %v491 = vmul.f32 %v118, %v265
  %v492 = vmul.f32 %v118, %v271
  %v493 = vmul.f32 %v118, %v277
  %v494 = vmul.f32 %v118, %v283
  %v495 = vmul.f32 %v118, %v289
  %v496 = vmul.f32 %v118, %v295
  %v497 = vmul.f32 %v118, %v301
  %v498 = vmul.f32 %v118, %v307
  %v499 = vmul.f32 %v118, %v313
  %v500 = vmul.f32 %v118, %v319
  %v501 = vmul.f32 %v118, %v325
  %v502 = vmul.f32 %v118, %v331
  %v503 = vmul.f32 %v118, %v337
  %v504 = vmul.f32 %v118, %v343
  %v505 = vmul.f32 %v118, %v349
  %v506 = vmul.f32 %v118, %v355
  %v507 = vmul.f32 %v118, %v361
  %v508 = vmul.f32 %v118, %v367
  %v509 = vmul.f32 %v118, %v373
  %v510 = vmul.f32 %v118, %v379
  %v511 = vmul.f32 %v118, %v385
  %v512 = vmul.f32 %v118, %v391
  %v513 = vmul.f32 %v118, %v397
  %v514 = vmul.f32 %v118, %v403
  %v515 = vmul.f32 %v118, %v409
  %v516 = vmul.f32 %v118, %v415
  %v517 = vmul.f32 %v118, %v421
  %v518 = vmul.f32 %v119, %v139
  %v519 = vmul.f32 %v119, %v145
  %v520 = vmul.f32 %v119, %v151
  %v521 = vmul.f32 %v119, %v157
  %v522 = vmul.f32 %v119, %v163
  %v523 = vmul.f32 %v119, %v169
  %v524 = vmul.f32 %v119, %v175
  %v525 = vmul.f32 %v119, %v181
  %v526 = vmul.f32 %v119, %v187
  %v527 = vmul.f32 %v119, %v193
  %v528 = vmul.f32 %v119, %v199
  %v529 = vmul.f32 %v119, %v205
  %v530 = vmul.f32 %v119, %v211
  %v531 = vmul.f32 %v119, %v217
  %v532 = vmul.f32 %v119, %v223
  %v533 = vmul.f32 %v119, %v229
  %v534 = vmul.f32 %v119, %v235
  %v535 = vmul.f32 %v119, %v241
  %v536 = vmul.f32 %v119, %v247
  %v537 = vmul.f32 %v119, %v253
  %v538 = vmul.f32 %v119, %v259
  %v539 = vmul.f32 %v119, %v265
  %v540 = vmul.f32 %v119, %v271
  %v541 = vmul.f32 %v119, %v277
  %v542 = vmul.f32 %v119, %v283
  %v543 = vmul.f32 %v119, %v289
  %v544 = vmul.f32 %v119, %v295
  %v545 = vmul.f32 %v119, %v301
  %v546 = vmul.f32 %v119, %v307
  %v547 = vmul.f32 %v119, %v313
  %v548 = vmul.f32 %v119, %v319
  %v549 = vmul.f32 %v119, %v325
  %v550 = vmul.f32 %v119, %v331
  %v551 = vmul.f32 %v119, %v337
  %v552 = vmul.f32 %v119, %v343
  %v553 = vmul.f32 %v119, %v349
  %v554 = vmul.f32 %v119, %v355
  %v555 = vmul.f32 %v119, %v361
  %v556 = vmul.f32 %v119, %v367
  %v557 = vmul.f32 %v119, %v373
  %v558 = vmul.f32 %v119, %v379
  %v559 = vmul.f32 %v119, %v385
  %v560 = vmul.f32 %v119, %v391
  %v561 = vmul.f32 %v119, %v397
  %v562 = vmul.f32 %v119, %v403
  %v563 = vmul.f32 %v119, %v409
  %v564 = vmul.f32 %v119, %v415
  %v565 = vmul.f32 %v119, %v421
  %v566 = vperm.slane %v100, 1
  %v567 = vperm.slane %v115, 1
  %v568 = vperm.slane %v116, 1
  %v569 = vperm.slane %v116, 5
  %v570 = vperm.slane %v117, 1
  %v574 = vperm.slane %v568, 1
  %v575 = vperm.slane %v569, 1
  %v576 = vperm.slane %v570, 1
  %v580 = vlaneseq
  %v581 = vshrl.u32 %v580, 7
  %583 = vset.pattern.permute.xlu0 %v581
  %584 = vperm.xlu0 %583, %v574
  %v585 = vpop.permute.xlu0 %584
  %v586 = vlaneseq
  %v587 = vshrl.u32 %v586, 7
  %v588 = vadd.s32 %v587, 8
  %589 = vset.pattern.permute.xlu0 %v588
  %590 = vperm.xlu0 %589, %v574
  %v591 = vpop.permute.xlu0 %590
  %v592 = vlaneseq
  %v593 = vshrl.u32 %v592, 7
  %v594 = vadd.s32 %v593, 16
  %595 = vset.pattern.permute.xlu0 %v594
  %596 = vperm.xlu0 %595, %v574
  %v597 = vpop.permute.xlu0 %596
  %v598 = vlaneseq
  %v599 = vshrl.u32 %v598, 7
  %v600 = vadd.s32 %v599, 24
  %601 = vset.pattern.permute.xlu0 %v600
  %602 = vperm.xlu0 %601, %v574
  %v603 = vpop.permute.xlu0 %602
  %v604 = vlaneseq
  %v605 = vshrl.u32 %v604, 7
  %v606 = vadd.s32 %v605, 32
  %607 = vset.pattern.permute.xlu0 %v606
  %608 = vperm.xlu0 %607, %v574
  %v609 = vpop.permute.xlu0 %608
  %v610 = vlaneseq
  %v611 = vshrl.u32 %v610, 7
  %v612 = vadd.s32 %v611, 40
  %613 = vset.pattern.permute.xlu0 %v612
  %614 = vperm.xlu0 %613, %v574
  %v615 = vpop.permute.xlu0 %614
  %v616 = vlaneseq
  %v617 = vshrl.u32 %v616, 7
  %v618 = vadd.s32 %v617, 48
  %619 = vset.pattern.permute.xlu0 %v618
  %620 = vperm.xlu0 %619, %v574
  %v621 = vpop.permute.xlu0 %620
  %v622 = vlaneseq
  %v623 = vshrl.u32 %v622, 7
  %v624 = vadd.s32 %v623, 56
  %625 = vset.pattern.permute.xlu0 %v624
  %626 = vperm.xlu0 %625, %v574
  %v627 = vpop.permute.xlu0 %626
  %v628 = vlaneseq
  %v629 = vshrl.u32 %v628, 7
  %v630 = vadd.s32 %v629, 64
  %631 = vset.pattern.permute.xlu0 %v630
  %632 = vperm.xlu0 %631, %v574
  %v633 = vpop.permute.xlu0 %632
  %v634 = vlaneseq
  %v635 = vshrl.u32 %v634, 7
  %v636 = vadd.s32 %v635, 72
  %637 = vset.pattern.permute.xlu0 %v636
  %638 = vperm.xlu0 %637, %v574
  %v639 = vpop.permute.xlu0 %638
  %v640 = vlaneseq
  %v641 = vshrl.u32 %v640, 7
  %v642 = vadd.s32 %v641, 80
  %643 = vset.pattern.permute.xlu0 %v642
  %644 = vperm.xlu0 %643, %v574
  %v645 = vpop.permute.xlu0 %644
  %v646 = vlaneseq
  %v647 = vshrl.u32 %v646, 7
  %v648 = vadd.s32 %v647, 88
  %649 = vset.pattern.permute.xlu0 %v648
  %650 = vperm.xlu0 %649, %v574
  %v651 = vpop.permute.xlu0 %650
  %v652 = vlaneseq
  %v653 = vshrl.u32 %v652, 7
  %v654 = vadd.s32 %v653, 96
  %655 = vset.pattern.permute.xlu0 %v654
  %656 = vperm.xlu0 %655, %v574
  %v657 = vpop.permute.xlu0 %656
  %v658 = vlaneseq
  %v659 = vshrl.u32 %v658, 7
  %v660 = vadd.s32 %v659, 104
  %661 = vset.pattern.permute.xlu0 %v660
  %662 = vperm.xlu0 %661, %v574
  %v663 = vpop.permute.xlu0 %662
  %v664 = vlaneseq
  %v665 = vshrl.u32 %v664, 7
  %v666 = vadd.s32 %v665, 112
  %667 = vset.pattern.permute.xlu0 %v666
  %668 = vperm.xlu0 %667, %v574
  %v669 = vpop.permute.xlu0 %668
  %v670 = vlaneseq
  %v671 = vshrl.u32 %v670, 7
  %v672 = vadd.s32 %v671, 120
  %673 = vset.pattern.permute.xlu0 %v672
  %674 = vperm.xlu0 %673, %v574
  %v675 = vpop.permute.xlu0 %674
  %v676 = vlaneseq
  %v677 = vshrl.u32 %v676, 7
  %679 = vset.pattern.permute.xlu0 %v677
  %680 = vperm.xlu0 %679, %v575
  %v681 = vpop.permute.xlu0 %680
  %v682 = vlaneseq
  %v683 = vshrl.u32 %v682, 7
  %v684 = vadd.s32 %v683, 8
  %685 = vset.pattern.permute.xlu0 %v684
  %686 = vperm.xlu0 %685, %v575
  %v687 = vpop.permute.xlu0 %686
  %v688 = vlaneseq
  %v689 = vshrl.u32 %v688, 7
  %v690 = vadd.s32 %v689, 16
  %691 = vset.pattern.permute.xlu0 %v690
  %692 = vperm.xlu0 %691, %v575
  %v693 = vpop.permute.xlu0 %692
  %v694 = vlaneseq
  %v695 = vshrl.u32 %v694, 7
  %v696 = vadd.s32 %v695, 24
  %697 = vset.pattern.permute.xlu0 %v696
  %698 = vperm.xlu0 %697, %v575
  %v699 = vpop.permute.xlu0 %698
  %v700 = vlaneseq
  %v701 = vshrl.u32 %v700, 7
  %v702 = vadd.s32 %v701, 32
  %703 = vset.pattern.permute.xlu0 %v702
  %704 = vperm.xlu0 %703, %v575
  %v705 = vpop.permute.xlu0 %704
  %v706 = vlaneseq
  %v707 = vshrl.u32 %v706, 7
  %v708 = vadd.s32 %v707, 40
  %709 = vset.pattern.permute.xlu0 %v708
  %710 = vperm.xlu0 %709, %v575
  %v711 = vpop.permute.xlu0 %710
  %v712 = vlaneseq
  %v713 = vshrl.u32 %v712, 7
  %v714 = vadd.s32 %v713, 48
  %715 = vset.pattern.permute.xlu0 %v714
  %716 = vperm.xlu0 %715, %v575
  %v717 = vpop.permute.xlu0 %716
  %v718 = vlaneseq
  %v719 = vshrl.u32 %v718, 7
  %v720 = vadd.s32 %v719, 56
  %721 = vset.pattern.permute.xlu0 %v720
  %722 = vperm.xlu0 %721, %v575
  %v723 = vpop.permute.xlu0 %722
  %v724 = vlaneseq
  %v725 = vshrl.u32 %v724, 7
  %v726 = vadd.s32 %v725, 64
  %727 = vset.pattern.permute.xlu0 %v726
  %728 = vperm.xlu0 %727, %v575
  %v729 = vpop.permute.xlu0 %728
  %v730 = vlaneseq
  %v731 = vshrl.u32 %v730, 7
  %v732 = vadd.s32 %v731, 72
  %733 = vset.pattern.permute.xlu0 %v732
  %734 = vperm.xlu0 %733, %v575
  %v735 = vpop.permute.xlu0 %734
  %v736 = vlaneseq
  %v737 = vshrl.u32 %v736, 7
  %v738 = vadd.s32 %v737, 80
  %739 = vset.pattern.permute.xlu0 %v738
  %740 = vperm.xlu0 %739, %v575
  %v741 = vpop.permute.xlu0 %740
  %v742 = vlaneseq
  %v743 = vshrl.u32 %v742, 7
  %v744 = vadd.s32 %v743, 88
  %745 = vset.pattern.permute.xlu0 %v744
  %746 = vperm.xlu0 %745, %v575
  %v747 = vpop.permute.xlu0 %746
  %v748 = vlaneseq
  %v749 = vshrl.u32 %v748, 7
  %v750 = vadd.s32 %v749, 96
  %751 = vset.pattern.permute.xlu0 %v750
  %752 = vperm.xlu0 %751, %v575
  %v753 = vpop.permute.xlu0 %752
  %v754 = vlaneseq
  %v755 = vshrl.u32 %v754, 7
  %v756 = vadd.s32 %v755, 104
  %757 = vset.pattern.permute.xlu0 %v756
  %758 = vperm.xlu0 %757, %v575
  %v759 = vpop.permute.xlu0 %758
  %v760 = vlaneseq
  %v761 = vshrl.u32 %v760, 7
  %v762 = vadd.s32 %v761, 112
  %763 = vset.pattern.permute.xlu0 %v762
  %764 = vperm.xlu0 %763, %v575
  %v765 = vpop.permute.xlu0 %764
  %v766 = vlaneseq
  %v767 = vshrl.u32 %v766, 7
  %v768 = vadd.s32 %v767, 120
  %769 = vset.pattern.permute.xlu0 %v768
  %770 = vperm.xlu0 %769, %v575
  %v771 = vpop.permute.xlu0 %770
  %v772 = vlaneseq
  %v773 = vshrl.u32 %v772, 7
  %775 = vset.pattern.permute.xlu0 %v773
  %776 = vperm.xlu0 %775, %v576
  %v777 = vpop.permute.xlu0 %776
  %v778 = vlaneseq
  %v779 = vshrl.u32 %v778, 7
  %v780 = vadd.s32 %v779, 8
  %781 = vset.pattern.permute.xlu0 %v780
  %782 = vperm.xlu0 %781, %v576
  %v783 = vpop.permute.xlu0 %782
  %v784 = vlaneseq
  %v785 = vshrl.u32 %v784, 7
  %v786 = vadd.s32 %v785, 16
  %787 = vset.pattern.permute.xlu0 %v786
  %788 = vperm.xlu0 %787, %v576
  %v789 = vpop.permute.xlu0 %788
  %v790 = vlaneseq
  %v791 = vshrl.u32 %v790, 7
  %v792 = vadd.s32 %v791, 24
  %793 = vset.pattern.permute.xlu0 %v792
  %794 = vperm.xlu0 %793, %v576
  %v795 = vpop.permute.xlu0 %794
  %v796 = vlaneseq
  %v797 = vshrl.u32 %v796, 7
  %v798 = vadd.s32 %v797, 32
  %799 = vset.pattern.permute.xlu0 %v798
  %800 = vperm.xlu0 %799, %v576
  %v801 = vpop.permute.xlu0 %800
  %v802 = vlaneseq
  %v803 = vshrl.u32 %v802, 7
  %v804 = vadd.s32 %v803, 40
  %805 = vset.pattern.permute.xlu0 %v804
  %806 = vperm.xlu0 %805, %v576
  %v807 = vpop.permute.xlu0 %806
  %v808 = vlaneseq
  %v809 = vshrl.u32 %v808, 7
  %v810 = vadd.s32 %v809, 48
  %811 = vset.pattern.permute.xlu0 %v810
  %812 = vperm.xlu0 %811, %v576
  %v813 = vpop.permute.xlu0 %812
  %v814 = vlaneseq
  %v815 = vshrl.u32 %v814, 7
  %v816 = vadd.s32 %v815, 56
  %817 = vset.pattern.permute.xlu0 %v816
  %818 = vperm.xlu0 %817, %v576
  %v819 = vpop.permute.xlu0 %818
  %v820 = vlaneseq
  %v821 = vshrl.u32 %v820, 7
  %v822 = vadd.s32 %v821, 64
  %823 = vset.pattern.permute.xlu0 %v822
  %824 = vperm.xlu0 %823, %v576
  %v825 = vpop.permute.xlu0 %824
  %v826 = vlaneseq
  %v827 = vshrl.u32 %v826, 7
  %v828 = vadd.s32 %v827, 72
  %829 = vset.pattern.permute.xlu0 %v828
  %830 = vperm.xlu0 %829, %v576
  %v831 = vpop.permute.xlu0 %830
  %v832 = vlaneseq
  %v833 = vshrl.u32 %v832, 7
  %v834 = vadd.s32 %v833, 80
  %835 = vset.pattern.permute.xlu0 %v834
  %836 = vperm.xlu0 %835, %v576
  %v837 = vpop.permute.xlu0 %836
  %v838 = vlaneseq
  %v839 = vshrl.u32 %v838, 7
  %v840 = vadd.s32 %v839, 88
  %841 = vset.pattern.permute.xlu0 %v840
  %842 = vperm.xlu0 %841, %v576
  %v843 = vpop.permute.xlu0 %842
  %v844 = vlaneseq
  %v845 = vshrl.u32 %v844, 7
  %v846 = vadd.s32 %v845, 96
  %847 = vset.pattern.permute.xlu0 %v846
  %848 = vperm.xlu0 %847, %v576
  %v849 = vpop.permute.xlu0 %848
  %v850 = vlaneseq
  %v851 = vshrl.u32 %v850, 7
  %v852 = vadd.s32 %v851, 104
  %853 = vset.pattern.permute.xlu0 %v852
  %854 = vperm.xlu0 %853, %v576
  %v855 = vpop.permute.xlu0 %854
  %v856 = vlaneseq
  %v857 = vshrl.u32 %v856, 7
  %v858 = vadd.s32 %v857, 112
  %859 = vset.pattern.permute.xlu0 %v858
  %860 = vperm.xlu0 %859, %v576
  %v861 = vpop.permute.xlu0 %860
  %v862 = vlaneseq
  %v863 = vshrl.u32 %v862, 7
  %v864 = vadd.s32 %v863, 120
  %865 = vset.pattern.permute.xlu0 %v864
  %866 = vperm.xlu0 %865, %v576
  %v867 = vpop.permute.xlu0 %866
  %v916 = vmul.f32 %v566, %v585
  %v917 = vmul.f32 %v566, %v591
  %v918 = vmul.f32 %v566, %v597
  %v919 = vmul.f32 %v566, %v603
  %v920 = vmul.f32 %v566, %v609
  %v921 = vmul.f32 %v566, %v615
  %v922 = vmul.f32 %v566, %v621
  %v923 = vmul.f32 %v566, %v627
  %v924 = vmul.f32 %v566, %v633
  %v925 = vmul.f32 %v566, %v639
  %v926 = vmul.f32 %v566, %v645
  %v927 = vmul.f32 %v566, %v651
  %v928 = vmul.f32 %v566, %v657
  %v929 = vmul.f32 %v566, %v663
  %v930 = vmul.f32 %v566, %v669
  %v931 = vmul.f32 %v566, %v675
  %v932 = vmul.f32 %v566, %v681
  %v933 = vmul.f32 %v566, %v687
  %v934 = vmul.f32 %v566, %v693
  %v935 = vmul.f32 %v566, %v699
  %v936 = vmul.f32 %v566, %v705
  %v937 = vmul.f32 %v566, %v711
  %v938 = vmul.f32 %v566, %v717
  %v939 = vmul.f32 %v566, %v723
  %v940 = vmul.f32 %v566, %v729
  %v941 = vmul.f32 %v566, %v735
  %v942 = vmul.f32 %v566, %v741
  %v943 = vmul.f32 %v566, %v747
  %v944 = vmul.f32 %v566, %v753
  %v945 = vmul.f32 %v566, %v759
  %v946 = vmul.f32 %v566, %v765
  %v947 = vmul.f32 %v566, %v771
  %v948 = vmul.f32 %v566, %v777
  %v949 = vmul.f32 %v566, %v783
  %v950 = vmul.f32 %v566, %v789
  %v951 = vmul.f32 %v566, %v795
  %v952 = vmul.f32 %v566, %v801
  %v953 = vmul.f32 %v566, %v807
  %v954 = vmul.f32 %v566, %v813
  %v955 = vmul.f32 %v566, %v819
  %v956 = vmul.f32 %v566, %v825
  %v957 = vmul.f32 %v566, %v831
  %v958 = vmul.f32 %v566, %v837
  %v959 = vmul.f32 %v566, %v843
  %v960 = vmul.f32 %v566, %v849
  %v961 = vmul.f32 %v566, %v855
  %v962 = vmul.f32 %v566, %v861
  %v963 = vmul.f32 %v566, %v867
  %v964 = vmul.f32 %v567, %v585
  %v965 = vmul.f32 %v567, %v591
  %v966 = vmul.f32 %v567, %v597
  %v967 = vmul.f32 %v567, %v603
  %v968 = vmul.f32 %v567, %v609
  %v969 = vmul.f32 %v567, %v615
  %v970 = vmul.f32 %v567, %v621
  %v971 = vmul.f32 %v567, %v627
  %v972 = vmul.f32 %v567, %v633
  %v973 = vmul.f32 %v567, %v639
  %v974 = vmul.f32 %v567, %v645
  %v975 = vmul.f32 %v567, %v651
  %v976 = vmul.f32 %v567, %v657
  %v977 = vmul.f32 %v567, %v663
  %v978 = vmul.f32 %v567, %v669
  %v979 = vmul.f32 %v567, %v675
  %v980 = vmul.f32 %v567, %v681
  %v981 = vmul.f32 %v567, %v687
  %v982 = vmul.f32 %v567, %v693
  %v983 = vmul.f32 %v567, %v699
  %v984 = vmul.f32 %v567, %v705
  %v985 = vmul.f32 %v567, %v711
  %v986 = vmul.f32 %v567, %v717
  %v987 = vmul.f32 %v567, %v723
  %v988 = vmul.f32 %v567, %v729
  %v989 = vmul.f32 %v567, %v735
  %v990 = vmul.f32 %v567, %v741
  %v991 = vmul.f32 %v567, %v747
  %v992 = vmul.f32 %v567, %v753
  %v993 = vmul.f32 %v567, %v759
  %v994 = vmul.f32 %v567, %v765
  %v995 = vmul.f32 %v567, %v771
  %v996 = vmul.f32 %v567, %v777
  %v997 = vmul.f32 %v567, %v783
  %v998 = vmul.f32 %v567, %v789
  %v999 = vmul.f32 %v567, %v795
  %v1000 = vmul.f32 %v567, %v801
  %v1001 = vmul.f32 %v567, %v807
  %v1002 = vmul.f32 %v567, %v813
  %v1003 = vmul.f32 %v567, %v819
  %v1004 = vmul.f32 %v567, %v825
  %v1005 = vmul.f32 %v567, %v831
  %v1006 = vmul.f32 %v567, %v837
  %v1007 = vmul.f32 %v567, %v843
  %v1008 = vmul.f32 %v567, %v849
  %v1009 = vmul.f32 %v567, %v855
  %v1010 = vmul.f32 %v567, %v861
  %v1011 = vmul.f32 %v567, %v867
  %v1012 = vadd.f32 %v470, %v916
  %v1013 = vadd.f32 %v471, %v917
  %v1014 = vadd.f32 %v472, %v918
  %v1015 = vadd.f32 %v473, %v919
  %v1016 = vadd.f32 %v474, %v920
  %v1017 = vadd.f32 %v475, %v921
  %v1018 = vadd.f32 %v476, %v922
  %v1019 = vadd.f32 %v477, %v923
  %v1020 = vadd.f32 %v478, %v924
  %v1021 = vadd.f32 %v479, %v925
  %v1022 = vadd.f32 %v480, %v926
  %v1023 = vadd.f32 %v481, %v927
  %v1024 = vadd.f32 %v482, %v928
  %v1025 = vadd.f32 %v483, %v929
  %v1026 = vadd.f32 %v484, %v930
  %v1027 = vadd.f32 %v485, %v931
  %v1028 = vadd.f32 %v486, %v932
  %v1029 = vadd.f32 %v487, %v933
  %v1030 = vadd.f32 %v488, %v934
  %v1031 = vadd.f32 %v489, %v935
  %v1032 = vadd.f32 %v490, %v936
  %v1033 = vadd.f32 %v491, %v937
  %v1034 = vadd.f32 %v492, %v938
  %v1035 = vadd.f32 %v493, %v939
  %v1036 = vadd.f32 %v494, %v940
  %v1037 = vadd.f32 %v495, %v941
  %v1038 = vadd.f32 %v496, %v942
  %v1039 = vadd.f32 %v497, %v943
  %v1040 = vadd.f32 %v498, %v944
  %v1041 = vadd.f32 %v499, %v945
  %v1042 = vadd.f32 %v500, %v946
  %v1043 = vadd.f32 %v501, %v947
  %v1044 = vadd.f32 %v502, %v948
  %v1045 = vadd.f32 %v503, %v949
  %v1046 = vadd.f32 %v504, %v950
  %v1047 = vadd.f32 %v505, %v951
  %v1048 = vadd.f32 %v506, %v952
  %v1049 = vadd.f32 %v507, %v953
  %v1050 = vadd.f32 %v508, %v954
  %v1051 = vadd.f32 %v509, %v955
  %v1052 = vadd.f32 %v510, %v956
  %v1053 = vadd.f32 %v511, %v957
  %v1054 = vadd.f32 %v512, %v958
  %v1055 = vadd.f32 %v513, %v959
  %v1056 = vadd.f32 %v514, %v960
  %v1057 = vadd.f32 %v515, %v961
  %v1058 = vadd.f32 %v516, %v962
  %v1059 = vadd.f32 %v517, %v963
  %v1060 = vadd.f32 %v518, %v964
  %v1061 = vadd.f32 %v519, %v965
  %v1062 = vadd.f32 %v520, %v966
  %v1063 = vadd.f32 %v521, %v967
  %v1064 = vadd.f32 %v522, %v968
  %v1065 = vadd.f32 %v523, %v969
  %v1066 = vadd.f32 %v524, %v970
  %v1067 = vadd.f32 %v525, %v971
  %v1068 = vadd.f32 %v526, %v972
  %v1069 = vadd.f32 %v527, %v973
  %v1070 = vadd.f32 %v528, %v974
  %v1071 = vadd.f32 %v529, %v975
  %v1072 = vadd.f32 %v530, %v976
  %v1073 = vadd.f32 %v531, %v977
  %v1074 = vadd.f32 %v532, %v978
  %v1075 = vadd.f32 %v533, %v979
  %v1076 = vadd.f32 %v534, %v980
  %v1077 = vadd.f32 %v535, %v981
  %v1078 = vadd.f32 %v536, %v982
  %v1079 = vadd.f32 %v537, %v983
  %v1080 = vadd.f32 %v538, %v984
  %v1081 = vadd.f32 %v539, %v985
  %v1082 = vadd.f32 %v540, %v986
  %v1083 = vadd.f32 %v541, %v987
  %v1084 = vadd.f32 %v542, %v988
  %v1085 = vadd.f32 %v543, %v989
  %v1086 = vadd.f32 %v544, %v990
  %v1087 = vadd.f32 %v545, %v991
  %v1088 = vadd.f32 %v546, %v992
  %v1089 = vadd.f32 %v547, %v993
  %v1090 = vadd.f32 %v548, %v994
  %v1091 = vadd.f32 %v549, %v995
  %v1092 = vadd.f32 %v550, %v996
  %v1093 = vadd.f32 %v551, %v997
  %v1094 = vadd.f32 %v552, %v998
  %v1095 = vadd.f32 %v553, %v999
  %v1096 = vadd.f32 %v554, %v1000
  %v1097 = vadd.f32 %v555, %v1001
  %v1098 = vadd.f32 %v556, %v1002
  %v1099 = vadd.f32 %v557, %v1003
  %v1100 = vadd.f32 %v558, %v1004
  %v1101 = vadd.f32 %v559, %v1005
  %v1102 = vadd.f32 %v560, %v1006
  %v1103 = vadd.f32 %v561, %v1007
  %v1104 = vadd.f32 %v562, %v1008
  %v1105 = vadd.f32 %v563, %v1009
  %v1106 = vadd.f32 %v564, %v1010
  %v1107 = vadd.f32 %v565, %v1011
  %v1108 = vperm.slane %v100, 2
  %v1109 = vperm.slane %v115, 2
  %v1110 = vperm.slane %v116, 2
  %v1111 = vperm.slane %v116, 6
  %v1112 = vperm.slane %v117, 2
  %v1116 = vperm.slane %v1110, 2
  %v1117 = vperm.slane %v1111, 2
  %v1118 = vperm.slane %v1112, 2
  %v1122 = vlaneseq
  %v1123 = vshrl.u32 %v1122, 7
  %1125 = vset.pattern.permute.xlu0 %v1123
  %1126 = vperm.xlu0 %1125, %v1116
  %v1127 = vpop.permute.xlu0 %1126
  %v1128 = vlaneseq
  %v1129 = vshrl.u32 %v1128, 7
  %v1130 = vadd.s32 %v1129, 8
  %1131 = vset.pattern.permute.xlu0 %v1130
  %1132 = vperm.xlu0 %1131, %v1116
  %v1133 = vpop.permute.xlu0 %1132
  %v1134 = vlaneseq
  %v1135 = vshrl.u32 %v1134, 7
  %v1136 = vadd.s32 %v1135, 16
  %1137 = vset.pattern.permute.xlu0 %v1136
  %1138 = vperm.xlu0 %1137, %v1116
  %v1139 = vpop.permute.xlu0 %1138
  %v1140 = vlaneseq
  %v1141 = vshrl.u32 %v1140, 7
  %v1142 = vadd.s32 %v1141, 24
  %1143 = vset.pattern.permute.xlu0 %v1142
  %1144 = vperm.xlu0 %1143, %v1116
  %v1145 = vpop.permute.xlu0 %1144
  %v1146 = vlaneseq
  %v1147 = vshrl.u32 %v1146, 7
  %v1148 = vadd.s32 %v1147, 32
  %1149 = vset.pattern.permute.xlu0 %v1148
  %1150 = vperm.xlu0 %1149, %v1116
  %v1151 = vpop.permute.xlu0 %1150
  %v1152 = vlaneseq
  %v1153 = vshrl.u32 %v1152, 7
  %v1154 = vadd.s32 %v1153, 40
  %1155 = vset.pattern.permute.xlu0 %v1154
  %1156 = vperm.xlu0 %1155, %v1116
  %v1157 = vpop.permute.xlu0 %1156
  %v1158 = vlaneseq
  %v1159 = vshrl.u32 %v1158, 7
  %v1160 = vadd.s32 %v1159, 48
  %1161 = vset.pattern.permute.xlu0 %v1160
  %1162 = vperm.xlu0 %1161, %v1116
  %v1163 = vpop.permute.xlu0 %1162
  %v1164 = vlaneseq
  %v1165 = vshrl.u32 %v1164, 7
  %v1166 = vadd.s32 %v1165, 56
  %1167 = vset.pattern.permute.xlu0 %v1166
  %1168 = vperm.xlu0 %1167, %v1116
  %v1169 = vpop.permute.xlu0 %1168
  %v1170 = vlaneseq
  %v1171 = vshrl.u32 %v1170, 7
  %v1172 = vadd.s32 %v1171, 64
  %1173 = vset.pattern.permute.xlu0 %v1172
  %1174 = vperm.xlu0 %1173, %v1116
  %v1175 = vpop.permute.xlu0 %1174
  %v1176 = vlaneseq
  %v1177 = vshrl.u32 %v1176, 7
  %v1178 = vadd.s32 %v1177, 72
  %1179 = vset.pattern.permute.xlu0 %v1178
  %1180 = vperm.xlu0 %1179, %v1116
  %v1181 = vpop.permute.xlu0 %1180
  %v1182 = vlaneseq
  %v1183 = vshrl.u32 %v1182, 7
  %v1184 = vadd.s32 %v1183, 80
  %1185 = vset.pattern.permute.xlu0 %v1184
  %1186 = vperm.xlu0 %1185, %v1116
  %v1187 = vpop.permute.xlu0 %1186
  %v1188 = vlaneseq
  %v1189 = vshrl.u32 %v1188, 7
  %v1190 = vadd.s32 %v1189, 88
  %1191 = vset.pattern.permute.xlu0 %v1190
  %1192 = vperm.xlu0 %1191, %v1116
  %v1193 = vpop.permute.xlu0 %1192
  %v1194 = vlaneseq
  %v1195 = vshrl.u32 %v1194, 7
  %v1196 = vadd.s32 %v1195, 96
  %1197 = vset.pattern.permute.xlu0 %v1196
  %1198 = vperm.xlu0 %1197, %v1116
  %v1199 = vpop.permute.xlu0 %1198
  %v1200 = vlaneseq
  %v1201 = vshrl.u32 %v1200, 7
  %v1202 = vadd.s32 %v1201, 104
  %1203 = vset.pattern.permute.xlu0 %v1202
  %1204 = vperm.xlu0 %1203, %v1116
  %v1205 = vpop.permute.xlu0 %1204
  %v1206 = vlaneseq
  %v1207 = vshrl.u32 %v1206, 7
  %v1208 = vadd.s32 %v1207, 112
  %1209 = vset.pattern.permute.xlu0 %v1208
  %1210 = vperm.xlu0 %1209, %v1116
  %v1211 = vpop.permute.xlu0 %1210
  %v1212 = vlaneseq
  %v1213 = vshrl.u32 %v1212, 7
  %v1214 = vadd.s32 %v1213, 120
  %1215 = vset.pattern.permute.xlu0 %v1214
  %1216 = vperm.xlu0 %1215, %v1116
  %v1217 = vpop.permute.xlu0 %1216
  %v1218 = vlaneseq
  %v1219 = vshrl.u32 %v1218, 7
  %1221 = vset.pattern.permute.xlu0 %v1219
  %1222 = vperm.xlu0 %1221, %v1117
  %v1223 = vpop.permute.xlu0 %1222
  %v1224 = vlaneseq
  %v1225 = vshrl.u32 %v1224, 7
  %v1226 = vadd.s32 %v1225, 8
  %1227 = vset.pattern.permute.xlu0 %v1226
  %1228 = vperm.xlu0 %1227, %v1117
  %v1229 = vpop.permute.xlu0 %1228
  %v1230 = vlaneseq
  %v1231 = vshrl.u32 %v1230, 7
  %v1232 = vadd.s32 %v1231, 16
  %1233 = vset.pattern.permute.xlu0 %v1232
  %1234 = vperm.xlu0 %1233, %v1117
  %v1235 = vpop.permute.xlu0 %1234
  %v1236 = vlaneseq
  %v1237 = vshrl.u32 %v1236, 7
  %v1238 = vadd.s32 %v1237, 24
  %1239 = vset.pattern.permute.xlu0 %v1238
  %1240 = vperm.xlu0 %1239, %v1117
  %v1241 = vpop.permute.xlu0 %1240
  %v1242 = vlaneseq
  %v1243 = vshrl.u32 %v1242, 7
  %v1244 = vadd.s32 %v1243, 32
  %1245 = vset.pattern.permute.xlu0 %v1244
  %1246 = vperm.xlu0 %1245, %v1117
  %v1247 = vpop.permute.xlu0 %1246
  %v1248 = vlaneseq
  %v1249 = vshrl.u32 %v1248, 7
  %v1250 = vadd.s32 %v1249, 40
  %1251 = vset.pattern.permute.xlu0 %v1250
  %1252 = vperm.xlu0 %1251, %v1117
  %v1253 = vpop.permute.xlu0 %1252
  %v1254 = vlaneseq
  %v1255 = vshrl.u32 %v1254, 7
  %v1256 = vadd.s32 %v1255, 48
  %1257 = vset.pattern.permute.xlu0 %v1256
  %1258 = vperm.xlu0 %1257, %v1117
  %v1259 = vpop.permute.xlu0 %1258
  %v1260 = vlaneseq
  %v1261 = vshrl.u32 %v1260, 7
  %v1262 = vadd.s32 %v1261, 56
  %1263 = vset.pattern.permute.xlu0 %v1262
  %1264 = vperm.xlu0 %1263, %v1117
  %v1265 = vpop.permute.xlu0 %1264
  %v1266 = vlaneseq
  %v1267 = vshrl.u32 %v1266, 7
  %v1268 = vadd.s32 %v1267, 64
  %1269 = vset.pattern.permute.xlu0 %v1268
  %1270 = vperm.xlu0 %1269, %v1117
  %v1271 = vpop.permute.xlu0 %1270
  %v1272 = vlaneseq
  %v1273 = vshrl.u32 %v1272, 7
  %v1274 = vadd.s32 %v1273, 72
  %1275 = vset.pattern.permute.xlu0 %v1274
  %1276 = vperm.xlu0 %1275, %v1117
  %v1277 = vpop.permute.xlu0 %1276
  %v1278 = vlaneseq
  %v1279 = vshrl.u32 %v1278, 7
  %v1280 = vadd.s32 %v1279, 80
  %1281 = vset.pattern.permute.xlu0 %v1280
  %1282 = vperm.xlu0 %1281, %v1117
  %v1283 = vpop.permute.xlu0 %1282
  %v1284 = vlaneseq
  %v1285 = vshrl.u32 %v1284, 7
  %v1286 = vadd.s32 %v1285, 88
  %1287 = vset.pattern.permute.xlu0 %v1286
  %1288 = vperm.xlu0 %1287, %v1117
  %v1289 = vpop.permute.xlu0 %1288
  %v1290 = vlaneseq
  %v1291 = vshrl.u32 %v1290, 7
  %v1292 = vadd.s32 %v1291, 96
  %1293 = vset.pattern.permute.xlu0 %v1292
  %1294 = vperm.xlu0 %1293, %v1117
  %v1295 = vpop.permute.xlu0 %1294
  %v1296 = vlaneseq
  %v1297 = vshrl.u32 %v1296, 7
  %v1298 = vadd.s32 %v1297, 104
  %1299 = vset.pattern.permute.xlu0 %v1298
  %1300 = vperm.xlu0 %1299, %v1117
  %v1301 = vpop.permute.xlu0 %1300
  %v1302 = vlaneseq
  %v1303 = vshrl.u32 %v1302, 7
  %v1304 = vadd.s32 %v1303, 112
  %1305 = vset.pattern.permute.xlu0 %v1304
  %1306 = vperm.xlu0 %1305, %v1117
  %v1307 = vpop.permute.xlu0 %1306
  %v1308 = vlaneseq
  %v1309 = vshrl.u32 %v1308, 7
  %v1310 = vadd.s32 %v1309, 120
  %1311 = vset.pattern.permute.xlu0 %v1310
  %1312 = vperm.xlu0 %1311, %v1117
  %v1313 = vpop.permute.xlu0 %1312
  %v1314 = vlaneseq
  %v1315 = vshrl.u32 %v1314, 7
  %1317 = vset.pattern.permute.xlu0 %v1315
  %1318 = vperm.xlu0 %1317, %v1118
  %v1319 = vpop.permute.xlu0 %1318
  %v1320 = vlaneseq
  %v1321 = vshrl.u32 %v1320, 7
  %v1322 = vadd.s32 %v1321, 8
  %1323 = vset.pattern.permute.xlu0 %v1322
  %1324 = vperm.xlu0 %1323, %v1118
  %v1325 = vpop.permute.xlu0 %1324
  %v1326 = vlaneseq
  %v1327 = vshrl.u32 %v1326, 7
  %v1328 = vadd.s32 %v1327, 16
  %1329 = vset.pattern.permute.xlu0 %v1328
  %1330 = vperm.xlu0 %1329, %v1118
  %v1331 = vpop.permute.xlu0 %1330
  %v1332 = vlaneseq
  %v1333 = vshrl.u32 %v1332, 7
  %v1334 = vadd.s32 %v1333, 24
  %1335 = vset.pattern.permute.xlu0 %v1334
  %1336 = vperm.xlu0 %1335, %v1118
  %v1337 = vpop.permute.xlu0 %1336
  %v1338 = vlaneseq
  %v1339 = vshrl.u32 %v1338, 7
  %v1340 = vadd.s32 %v1339, 32
  %1341 = vset.pattern.permute.xlu0 %v1340
  %1342 = vperm.xlu0 %1341, %v1118
  %v1343 = vpop.permute.xlu0 %1342
  %v1344 = vlaneseq
  %v1345 = vshrl.u32 %v1344, 7
  %v1346 = vadd.s32 %v1345, 40
  %1347 = vset.pattern.permute.xlu0 %v1346
  %1348 = vperm.xlu0 %1347, %v1118
  %v1349 = vpop.permute.xlu0 %1348
  %v1350 = vlaneseq
  %v1351 = vshrl.u32 %v1350, 7
  %v1352 = vadd.s32 %v1351, 48
  %1353 = vset.pattern.permute.xlu0 %v1352
  %1354 = vperm.xlu0 %1353, %v1118
  %v1355 = vpop.permute.xlu0 %1354
  %v1356 = vlaneseq
  %v1357 = vshrl.u32 %v1356, 7
  %v1358 = vadd.s32 %v1357, 56
  %1359 = vset.pattern.permute.xlu0 %v1358
  %1360 = vperm.xlu0 %1359, %v1118
  %v1361 = vpop.permute.xlu0 %1360
  %v1362 = vlaneseq
  %v1363 = vshrl.u32 %v1362, 7
  %v1364 = vadd.s32 %v1363, 64
  %1365 = vset.pattern.permute.xlu0 %v1364
  %1366 = vperm.xlu0 %1365, %v1118
  %v1367 = vpop.permute.xlu0 %1366
  %v1368 = vlaneseq
  %v1369 = vshrl.u32 %v1368, 7
  %v1370 = vadd.s32 %v1369, 72
  %1371 = vset.pattern.permute.xlu0 %v1370
  %1372 = vperm.xlu0 %1371, %v1118
  %v1373 = vpop.permute.xlu0 %1372
  %v1374 = vlaneseq
  %v1375 = vshrl.u32 %v1374, 7
  %v1376 = vadd.s32 %v1375, 80
  %1377 = vset.pattern.permute.xlu0 %v1376
  %1378 = vperm.xlu0 %1377, %v1118
  %v1379 = vpop.permute.xlu0 %1378
  %v1380 = vlaneseq
  %v1381 = vshrl.u32 %v1380, 7
  %v1382 = vadd.s32 %v1381, 88
  %1383 = vset.pattern.permute.xlu0 %v1382
  %1384 = vperm.xlu0 %1383, %v1118
  %v1385 = vpop.permute.xlu0 %1384
  %v1386 = vlaneseq
  %v1387 = vshrl.u32 %v1386, 7
  %v1388 = vadd.s32 %v1387, 96
  %1389 = vset.pattern.permute.xlu0 %v1388
  %1390 = vperm.xlu0 %1389, %v1118
  %v1391 = vpop.permute.xlu0 %1390
  %v1392 = vlaneseq
  %v1393 = vshrl.u32 %v1392, 7
  %v1394 = vadd.s32 %v1393, 104
  %1395 = vset.pattern.permute.xlu0 %v1394
  %1396 = vperm.xlu0 %1395, %v1118
  %v1397 = vpop.permute.xlu0 %1396
  %v1398 = vlaneseq
  %v1399 = vshrl.u32 %v1398, 7
  %v1400 = vadd.s32 %v1399, 112
  %1401 = vset.pattern.permute.xlu0 %v1400
  %1402 = vperm.xlu0 %1401, %v1118
  %v1403 = vpop.permute.xlu0 %1402
  %v1404 = vlaneseq
  %v1405 = vshrl.u32 %v1404, 7
  %v1406 = vadd.s32 %v1405, 120
  %1407 = vset.pattern.permute.xlu0 %v1406
  %1408 = vperm.xlu0 %1407, %v1118
  %v1409 = vpop.permute.xlu0 %1408
  %v1458 = vmul.f32 %v1108, %v1127
  %v1459 = vmul.f32 %v1108, %v1133
  %v1460 = vmul.f32 %v1108, %v1139
  %v1461 = vmul.f32 %v1108, %v1145
  %v1462 = vmul.f32 %v1108, %v1151
  %v1463 = vmul.f32 %v1108, %v1157
  %v1464 = vmul.f32 %v1108, %v1163
  %v1465 = vmul.f32 %v1108, %v1169
  %v1466 = vmul.f32 %v1108, %v1175
  %v1467 = vmul.f32 %v1108, %v1181
  %v1468 = vmul.f32 %v1108, %v1187
  %v1469 = vmul.f32 %v1108, %v1193
  %v1470 = vmul.f32 %v1108, %v1199
  %v1471 = vmul.f32 %v1108, %v1205
  %v1472 = vmul.f32 %v1108, %v1211
  %v1473 = vmul.f32 %v1108, %v1217
  %v1474 = vmul.f32 %v1108, %v1223
  %v1475 = vmul.f32 %v1108, %v1229
  %v1476 = vmul.f32 %v1108, %v1235
  %v1477 = vmul.f32 %v1108, %v1241
  %v1478 = vmul.f32 %v1108, %v1247
  %v1479 = vmul.f32 %v1108, %v1253
  %v1480 = vmul.f32 %v1108, %v1259
  %v1481 = vmul.f32 %v1108, %v1265
  %v1482 = vmul.f32 %v1108, %v1271
  %v1483 = vmul.f32 %v1108, %v1277
  %v1484 = vmul.f32 %v1108, %v1283
  %v1485 = vmul.f32 %v1108, %v1289
  %v1486 = vmul.f32 %v1108, %v1295
  %v1487 = vmul.f32 %v1108, %v1301
  %v1488 = vmul.f32 %v1108, %v1307
  %v1489 = vmul.f32 %v1108, %v1313
  %v1490 = vmul.f32 %v1108, %v1319
  %v1491 = vmul.f32 %v1108, %v1325
  %v1492 = vmul.f32 %v1108, %v1331
  %v1493 = vmul.f32 %v1108, %v1337
  %v1494 = vmul.f32 %v1108, %v1343
  %v1495 = vmul.f32 %v1108, %v1349
  %v1496 = vmul.f32 %v1108, %v1355
  %v1497 = vmul.f32 %v1108, %v1361
  %v1498 = vmul.f32 %v1108, %v1367
  %v1499 = vmul.f32 %v1108, %v1373
  %v1500 = vmul.f32 %v1108, %v1379
  %v1501 = vmul.f32 %v1108, %v1385
  %v1502 = vmul.f32 %v1108, %v1391
  %v1503 = vmul.f32 %v1108, %v1397
  %v1504 = vmul.f32 %v1108, %v1403
  %v1505 = vmul.f32 %v1108, %v1409
  %v1506 = vmul.f32 %v1109, %v1127
  %v1507 = vmul.f32 %v1109, %v1133
  %v1508 = vmul.f32 %v1109, %v1139
  %v1509 = vmul.f32 %v1109, %v1145
  %v1510 = vmul.f32 %v1109, %v1151
  %v1511 = vmul.f32 %v1109, %v1157
  %v1512 = vmul.f32 %v1109, %v1163
  %v1513 = vmul.f32 %v1109, %v1169
  %v1514 = vmul.f32 %v1109, %v1175
  %v1515 = vmul.f32 %v1109, %v1181
  %v1516 = vmul.f32 %v1109, %v1187
  %v1517 = vmul.f32 %v1109, %v1193
  %v1518 = vmul.f32 %v1109, %v1199
  %v1519 = vmul.f32 %v1109, %v1205
  %v1520 = vmul.f32 %v1109, %v1211
  %v1521 = vmul.f32 %v1109, %v1217
  %v1522 = vmul.f32 %v1109, %v1223
  %v1523 = vmul.f32 %v1109, %v1229
  %v1524 = vmul.f32 %v1109, %v1235
  %v1525 = vmul.f32 %v1109, %v1241
  %v1526 = vmul.f32 %v1109, %v1247
  %v1527 = vmul.f32 %v1109, %v1253
  %v1528 = vmul.f32 %v1109, %v1259
  %v1529 = vmul.f32 %v1109, %v1265
  %v1530 = vmul.f32 %v1109, %v1271
  %v1531 = vmul.f32 %v1109, %v1277
  %v1532 = vmul.f32 %v1109, %v1283
  %v1533 = vmul.f32 %v1109, %v1289
  %v1534 = vmul.f32 %v1109, %v1295
  %v1535 = vmul.f32 %v1109, %v1301
  %v1536 = vmul.f32 %v1109, %v1307
  %v1537 = vmul.f32 %v1109, %v1313
  %v1538 = vmul.f32 %v1109, %v1319
  %v1539 = vmul.f32 %v1109, %v1325
  %v1540 = vmul.f32 %v1109, %v1331
  %v1541 = vmul.f32 %v1109, %v1337
  %v1542 = vmul.f32 %v1109, %v1343
  %v1543 = vmul.f32 %v1109, %v1349
  %v1544 = vmul.f32 %v1109, %v1355
  %v1545 = vmul.f32 %v1109, %v1361
  %v1546 = vmul.f32 %v1109, %v1367
  %v1547 = vmul.f32 %v1109, %v1373
  %v1548 = vmul.f32 %v1109, %v1379
  %v1549 = vmul.f32 %v1109, %v1385
  %v1550 = vmul.f32 %v1109, %v1391
  %v1551 = vmul.f32 %v1109, %v1397
  %v1552 = vmul.f32 %v1109, %v1403
  %v1553 = vmul.f32 %v1109, %v1409
  %v1554 = vadd.f32 %v1012, %v1458
  %v1555 = vadd.f32 %v1013, %v1459
  %v1556 = vadd.f32 %v1014, %v1460
  %v1557 = vadd.f32 %v1015, %v1461
  %v1558 = vadd.f32 %v1016, %v1462
  %v1559 = vadd.f32 %v1017, %v1463
  %v1560 = vadd.f32 %v1018, %v1464
  %v1561 = vadd.f32 %v1019, %v1465
  %v1562 = vadd.f32 %v1020, %v1466
  %v1563 = vadd.f32 %v1021, %v1467
  %v1564 = vadd.f32 %v1022, %v1468
  %v1565 = vadd.f32 %v1023, %v1469
  %v1566 = vadd.f32 %v1024, %v1470
  %v1567 = vadd.f32 %v1025, %v1471
  %v1568 = vadd.f32 %v1026, %v1472
  %v1569 = vadd.f32 %v1027, %v1473
  %v1570 = vadd.f32 %v1028, %v1474
  %v1571 = vadd.f32 %v1029, %v1475
  %v1572 = vadd.f32 %v1030, %v1476
  %v1573 = vadd.f32 %v1031, %v1477
  %v1574 = vadd.f32 %v1032, %v1478
  %v1575 = vadd.f32 %v1033, %v1479
  %v1576 = vadd.f32 %v1034, %v1480
  %v1577 = vadd.f32 %v1035, %v1481
  %v1578 = vadd.f32 %v1036, %v1482
  %v1579 = vadd.f32 %v1037, %v1483
  %v1580 = vadd.f32 %v1038, %v1484
  %v1581 = vadd.f32 %v1039, %v1485
  %v1582 = vadd.f32 %v1040, %v1486
  %v1583 = vadd.f32 %v1041, %v1487
  %v1584 = vadd.f32 %v1042, %v1488
  %v1585 = vadd.f32 %v1043, %v1489
  %v1586 = vadd.f32 %v1044, %v1490
  %v1587 = vadd.f32 %v1045, %v1491
  %v1588 = vadd.f32 %v1046, %v1492
  %v1589 = vadd.f32 %v1047, %v1493
  %v1590 = vadd.f32 %v1048, %v1494
  %v1591 = vadd.f32 %v1049, %v1495
  %v1592 = vadd.f32 %v1050, %v1496
  %v1593 = vadd.f32 %v1051, %v1497
  %v1594 = vadd.f32 %v1052, %v1498
  %v1595 = vadd.f32 %v1053, %v1499
  %v1596 = vadd.f32 %v1054, %v1500
  %v1597 = vadd.f32 %v1055, %v1501
  %v1598 = vadd.f32 %v1056, %v1502
  %v1599 = vadd.f32 %v1057, %v1503
  %v1600 = vadd.f32 %v1058, %v1504
  %v1601 = vadd.f32 %v1059, %v1505
  %v1602 = vadd.f32 %v1060, %v1506
  %v1603 = vadd.f32 %v1061, %v1507
  %v1604 = vadd.f32 %v1062, %v1508
  %v1605 = vadd.f32 %v1063, %v1509
  %v1606 = vadd.f32 %v1064, %v1510
  %v1607 = vadd.f32 %v1065, %v1511
  %v1608 = vadd.f32 %v1066, %v1512
  %v1609 = vadd.f32 %v1067, %v1513
  %v1610 = vadd.f32 %v1068, %v1514
  %v1611 = vadd.f32 %v1069, %v1515
  %v1612 = vadd.f32 %v1070, %v1516
  %v1613 = vadd.f32 %v1071, %v1517
  %v1614 = vadd.f32 %v1072, %v1518
  %v1615 = vadd.f32 %v1073, %v1519
  %v1616 = vadd.f32 %v1074, %v1520
  %v1617 = vadd.f32 %v1075, %v1521
  %v1618 = vadd.f32 %v1076, %v1522
  %v1619 = vadd.f32 %v1077, %v1523
  %v1620 = vadd.f32 %v1078, %v1524
  %v1621 = vadd.f32 %v1079, %v1525
  %v1622 = vadd.f32 %v1080, %v1526
  %v1623 = vadd.f32 %v1081, %v1527
  %v1624 = vadd.f32 %v1082, %v1528
  %v1625 = vadd.f32 %v1083, %v1529
  %v1626 = vadd.f32 %v1084, %v1530
  %v1627 = vadd.f32 %v1085, %v1531
  %v1628 = vadd.f32 %v1086, %v1532
  %v1629 = vadd.f32 %v1087, %v1533
  %v1630 = vadd.f32 %v1088, %v1534
  %v1631 = vadd.f32 %v1089, %v1535
  %v1632 = vadd.f32 %v1090, %v1536
  %v1633 = vadd.f32 %v1091, %v1537
  %v1634 = vadd.f32 %v1092, %v1538
  %v1635 = vadd.f32 %v1093, %v1539
  %v1636 = vadd.f32 %v1094, %v1540
  %v1637 = vadd.f32 %v1095, %v1541
  %v1638 = vadd.f32 %v1096, %v1542
  %v1639 = vadd.f32 %v1097, %v1543
  %v1640 = vadd.f32 %v1098, %v1544
  %v1641 = vadd.f32 %v1099, %v1545
  %v1642 = vadd.f32 %v1100, %v1546
  %v1643 = vadd.f32 %v1101, %v1547
  %v1644 = vadd.f32 %v1102, %v1548
  %v1645 = vadd.f32 %v1103, %v1549
  %v1646 = vadd.f32 %v1104, %v1550
  %v1647 = vadd.f32 %v1105, %v1551
  %v1648 = vadd.f32 %v1106, %v1552
  %v1649 = vadd.f32 %v1107, %v1553
  %v1650 = vperm.slane %v100, 3
  %v1651 = vperm.slane %v115, 3
  %v1652 = vperm.slane %v116, 3
  %v1653 = vperm.slane %v116, 7
  %v1654 = vperm.slane %v117, 3
  %v1658 = vperm.slane %v1652, 3
  %v1659 = vperm.slane %v1653, 3
  %v1660 = vperm.slane %v1654, 3
  %v1664 = vlaneseq
  %v1665 = vshrl.u32 %v1664, 7
  %1667 = vset.pattern.permute.xlu0 %v1665
  %1668 = vperm.xlu0 %1667, %v1658
  %v1669 = vpop.permute.xlu0 %1668
  %v1670 = vlaneseq
  %v1671 = vshrl.u32 %v1670, 7
  %v1672 = vadd.s32 %v1671, 8
  %1673 = vset.pattern.permute.xlu0 %v1672
  %1674 = vperm.xlu0 %1673, %v1658
  %v1675 = vpop.permute.xlu0 %1674
  %v1676 = vlaneseq
  %v1677 = vshrl.u32 %v1676, 7
  %v1678 = vadd.s32 %v1677, 16
  %1679 = vset.pattern.permute.xlu0 %v1678
  %1680 = vperm.xlu0 %1679, %v1658
  %v1681 = vpop.permute.xlu0 %1680
  %v1682 = vlaneseq
  %v1683 = vshrl.u32 %v1682, 7
  %v1684 = vadd.s32 %v1683, 24
  %1685 = vset.pattern.permute.xlu0 %v1684
  %1686 = vperm.xlu0 %1685, %v1658
  %v1687 = vpop.permute.xlu0 %1686
  %v1688 = vlaneseq
  %v1689 = vshrl.u32 %v1688, 7
  %v1690 = vadd.s32 %v1689, 32
  %1691 = vset.pattern.permute.xlu0 %v1690
  %1692 = vperm.xlu0 %1691, %v1658
  %v1693 = vpop.permute.xlu0 %1692
  %v1694 = vlaneseq
  %v1695 = vshrl.u32 %v1694, 7
  %v1696 = vadd.s32 %v1695, 40
  %1697 = vset.pattern.permute.xlu0 %v1696
  %1698 = vperm.xlu0 %1697, %v1658
  %v1699 = vpop.permute.xlu0 %1698
  %v1700 = vlaneseq
  %v1701 = vshrl.u32 %v1700, 7
  %v1702 = vadd.s32 %v1701, 48
  %1703 = vset.pattern.permute.xlu0 %v1702
  %1704 = vperm.xlu0 %1703, %v1658
  %v1705 = vpop.permute.xlu0 %1704
  %v1706 = vlaneseq
  %v1707 = vshrl.u32 %v1706, 7
  %v1708 = vadd.s32 %v1707, 56
  %1709 = vset.pattern.permute.xlu0 %v1708
  %1710 = vperm.xlu0 %1709, %v1658
  %v1711 = vpop.permute.xlu0 %1710
  %v1712 = vlaneseq
  %v1713 = vshrl.u32 %v1712, 7
  %v1714 = vadd.s32 %v1713, 64
  %1715 = vset.pattern.permute.xlu0 %v1714
  %1716 = vperm.xlu0 %1715, %v1658
  %v1717 = vpop.permute.xlu0 %1716
  %v1718 = vlaneseq
  %v1719 = vshrl.u32 %v1718, 7
  %v1720 = vadd.s32 %v1719, 72
  %1721 = vset.pattern.permute.xlu0 %v1720
  %1722 = vperm.xlu0 %1721, %v1658
  %v1723 = vpop.permute.xlu0 %1722
  %v1724 = vlaneseq
  %v1725 = vshrl.u32 %v1724, 7
  %v1726 = vadd.s32 %v1725, 80
  %1727 = vset.pattern.permute.xlu0 %v1726
  %1728 = vperm.xlu0 %1727, %v1658
  %v1729 = vpop.permute.xlu0 %1728
  %v1730 = vlaneseq
  %v1731 = vshrl.u32 %v1730, 7
  %v1732 = vadd.s32 %v1731, 88
  %1733 = vset.pattern.permute.xlu0 %v1732
  %1734 = vperm.xlu0 %1733, %v1658
  %v1735 = vpop.permute.xlu0 %1734
  %v1736 = vlaneseq
  %v1737 = vshrl.u32 %v1736, 7
  %v1738 = vadd.s32 %v1737, 96
  %1739 = vset.pattern.permute.xlu0 %v1738
  %1740 = vperm.xlu0 %1739, %v1658
  %v1741 = vpop.permute.xlu0 %1740
  %v1742 = vlaneseq
  %v1743 = vshrl.u32 %v1742, 7
  %v1744 = vadd.s32 %v1743, 104
  %1745 = vset.pattern.permute.xlu0 %v1744
  %1746 = vperm.xlu0 %1745, %v1658
  %v1747 = vpop.permute.xlu0 %1746
  %v1748 = vlaneseq
  %v1749 = vshrl.u32 %v1748, 7
  %v1750 = vadd.s32 %v1749, 112
  %1751 = vset.pattern.permute.xlu0 %v1750
  %1752 = vperm.xlu0 %1751, %v1658
  %v1753 = vpop.permute.xlu0 %1752
  %v1754 = vlaneseq
  %v1755 = vshrl.u32 %v1754, 7
  %v1756 = vadd.s32 %v1755, 120
  %1757 = vset.pattern.permute.xlu0 %v1756
  %1758 = vperm.xlu0 %1757, %v1658
  %v1759 = vpop.permute.xlu0 %1758
  %v1760 = vlaneseq
  %v1761 = vshrl.u32 %v1760, 7
  %1763 = vset.pattern.permute.xlu0 %v1761
  %1764 = vperm.xlu0 %1763, %v1659
  %v1765 = vpop.permute.xlu0 %1764
  %v1766 = vlaneseq
  %v1767 = vshrl.u32 %v1766, 7
  %v1768 = vadd.s32 %v1767, 8
  %1769 = vset.pattern.permute.xlu0 %v1768
  %1770 = vperm.xlu0 %1769, %v1659
  %v1771 = vpop.permute.xlu0 %1770
  %v1772 = vlaneseq
  %v1773 = vshrl.u32 %v1772, 7
  %v1774 = vadd.s32 %v1773, 16
  %1775 = vset.pattern.permute.xlu0 %v1774
  %1776 = vperm.xlu0 %1775, %v1659
  %v1777 = vpop.permute.xlu0 %1776
  %v1778 = vlaneseq
  %v1779 = vshrl.u32 %v1778, 7
  %v1780 = vadd.s32 %v1779, 24
  %1781 = vset.pattern.permute.xlu0 %v1780
  %1782 = vperm.xlu0 %1781, %v1659
  %v1783 = vpop.permute.xlu0 %1782
  %v1784 = vlaneseq
  %v1785 = vshrl.u32 %v1784, 7
  %v1786 = vadd.s32 %v1785, 32
  %1787 = vset.pattern.permute.xlu0 %v1786
  %1788 = vperm.xlu0 %1787, %v1659
  %v1789 = vpop.permute.xlu0 %1788
  %v1790 = vlaneseq
  %v1791 = vshrl.u32 %v1790, 7
  %v1792 = vadd.s32 %v1791, 40
  %1793 = vset.pattern.permute.xlu0 %v1792
  %1794 = vperm.xlu0 %1793, %v1659
  %v1795 = vpop.permute.xlu0 %1794
  %v1796 = vlaneseq
  %v1797 = vshrl.u32 %v1796, 7
  %v1798 = vadd.s32 %v1797, 48
  %1799 = vset.pattern.permute.xlu0 %v1798
  %1800 = vperm.xlu0 %1799, %v1659
  %v1801 = vpop.permute.xlu0 %1800
  %v1802 = vlaneseq
  %v1803 = vshrl.u32 %v1802, 7
  %v1804 = vadd.s32 %v1803, 56
  %1805 = vset.pattern.permute.xlu0 %v1804
  %1806 = vperm.xlu0 %1805, %v1659
  %v1807 = vpop.permute.xlu0 %1806
  %v1808 = vlaneseq
  %v1809 = vshrl.u32 %v1808, 7
  %v1810 = vadd.s32 %v1809, 64
  %1811 = vset.pattern.permute.xlu0 %v1810
  %1812 = vperm.xlu0 %1811, %v1659
  %v1813 = vpop.permute.xlu0 %1812
  %v1814 = vlaneseq
  %v1815 = vshrl.u32 %v1814, 7
  %v1816 = vadd.s32 %v1815, 72
  %1817 = vset.pattern.permute.xlu0 %v1816
  %1818 = vperm.xlu0 %1817, %v1659
  %v1819 = vpop.permute.xlu0 %1818
  %v1820 = vlaneseq
  %v1821 = vshrl.u32 %v1820, 7
  %v1822 = vadd.s32 %v1821, 80
  %1823 = vset.pattern.permute.xlu0 %v1822
  %1824 = vperm.xlu0 %1823, %v1659
  %v1825 = vpop.permute.xlu0 %1824
  %v1826 = vlaneseq
  %v1827 = vshrl.u32 %v1826, 7
  %v1828 = vadd.s32 %v1827, 88
  %1829 = vset.pattern.permute.xlu0 %v1828
  %1830 = vperm.xlu0 %1829, %v1659
  %v1831 = vpop.permute.xlu0 %1830
  %v1832 = vlaneseq
  %v1833 = vshrl.u32 %v1832, 7
  %v1834 = vadd.s32 %v1833, 96
  %1835 = vset.pattern.permute.xlu0 %v1834
  %1836 = vperm.xlu0 %1835, %v1659
  %v1837 = vpop.permute.xlu0 %1836
  %v1838 = vlaneseq
  %v1839 = vshrl.u32 %v1838, 7
  %v1840 = vadd.s32 %v1839, 104
  %1841 = vset.pattern.permute.xlu0 %v1840
  %1842 = vperm.xlu0 %1841, %v1659
  %v1843 = vpop.permute.xlu0 %1842
  %v1844 = vlaneseq
  %v1845 = vshrl.u32 %v1844, 7
  %v1846 = vadd.s32 %v1845, 112
  %1847 = vset.pattern.permute.xlu0 %v1846
  %1848 = vperm.xlu0 %1847, %v1659
  %v1849 = vpop.permute.xlu0 %1848
  %v1850 = vlaneseq
  %v1851 = vshrl.u32 %v1850, 7
  %v1852 = vadd.s32 %v1851, 120
  %1853 = vset.pattern.permute.xlu0 %v1852
  %1854 = vperm.xlu0 %1853, %v1659
  %v1855 = vpop.permute.xlu0 %1854
  %v1856 = vlaneseq
  %v1857 = vshrl.u32 %v1856, 7
  %1859 = vset.pattern.permute.xlu0 %v1857
  %1860 = vperm.xlu0 %1859, %v1660
  %v1861 = vpop.permute.xlu0 %1860
  %v1862 = vlaneseq
  %v1863 = vshrl.u32 %v1862, 7
  %v1864 = vadd.s32 %v1863, 8
  %1865 = vset.pattern.permute.xlu0 %v1864
  %1866 = vperm.xlu0 %1865, %v1660
  %v1867 = vpop.permute.xlu0 %1866
  %v1868 = vlaneseq
  %v1869 = vshrl.u32 %v1868, 7
  %v1870 = vadd.s32 %v1869, 16
  %1871 = vset.pattern.permute.xlu0 %v1870
  %1872 = vperm.xlu0 %1871, %v1660
  %v1873 = vpop.permute.xlu0 %1872
  %v1874 = vlaneseq
  %v1875 = vshrl.u32 %v1874, 7
  %v1876 = vadd.s32 %v1875, 24
  %1877 = vset.pattern.permute.xlu0 %v1876
  %1878 = vperm.xlu0 %1877, %v1660
  %v1879 = vpop.permute.xlu0 %1878
  %v1880 = vlaneseq
  %v1881 = vshrl.u32 %v1880, 7
  %v1882 = vadd.s32 %v1881, 32
  %1883 = vset.pattern.permute.xlu0 %v1882
  %1884 = vperm.xlu0 %1883, %v1660
  %v1885 = vpop.permute.xlu0 %1884
  %v1886 = vlaneseq
  %v1887 = vshrl.u32 %v1886, 7
  %v1888 = vadd.s32 %v1887, 40
  %1889 = vset.pattern.permute.xlu0 %v1888
  %1890 = vperm.xlu0 %1889, %v1660
  %v1891 = vpop.permute.xlu0 %1890
  %v1892 = vlaneseq
  %v1893 = vshrl.u32 %v1892, 7
  %v1894 = vadd.s32 %v1893, 48
  %1895 = vset.pattern.permute.xlu0 %v1894
  %1896 = vperm.xlu0 %1895, %v1660
  %v1897 = vpop.permute.xlu0 %1896
  %v1898 = vlaneseq
  %v1899 = vshrl.u32 %v1898, 7
  %v1900 = vadd.s32 %v1899, 56
  %1901 = vset.pattern.permute.xlu0 %v1900
  %1902 = vperm.xlu0 %1901, %v1660
  %v1903 = vpop.permute.xlu0 %1902
  %v1904 = vlaneseq
  %v1905 = vshrl.u32 %v1904, 7
  %v1906 = vadd.s32 %v1905, 64
  %1907 = vset.pattern.permute.xlu0 %v1906
  %1908 = vperm.xlu0 %1907, %v1660
  %v1909 = vpop.permute.xlu0 %1908
  %v1910 = vlaneseq
  %v1911 = vshrl.u32 %v1910, 7
  %v1912 = vadd.s32 %v1911, 72
  %1913 = vset.pattern.permute.xlu0 %v1912
  %1914 = vperm.xlu0 %1913, %v1660
  %v1915 = vpop.permute.xlu0 %1914
  %v1916 = vlaneseq
  %v1917 = vshrl.u32 %v1916, 7
  %v1918 = vadd.s32 %v1917, 80
  %1919 = vset.pattern.permute.xlu0 %v1918
  %1920 = vperm.xlu0 %1919, %v1660
  %v1921 = vpop.permute.xlu0 %1920
  %v1922 = vlaneseq
  %v1923 = vshrl.u32 %v1922, 7
  %v1924 = vadd.s32 %v1923, 88
  %1925 = vset.pattern.permute.xlu0 %v1924
  %1926 = vperm.xlu0 %1925, %v1660
  %v1927 = vpop.permute.xlu0 %1926
  %v1928 = vlaneseq
  %v1929 = vshrl.u32 %v1928, 7
  %v1930 = vadd.s32 %v1929, 96
  %1931 = vset.pattern.permute.xlu0 %v1930
  %1932 = vperm.xlu0 %1931, %v1660
  %v1933 = vpop.permute.xlu0 %1932
  %v1934 = vlaneseq
  %v1935 = vshrl.u32 %v1934, 7
  %v1936 = vadd.s32 %v1935, 104
  %1937 = vset.pattern.permute.xlu0 %v1936
  %1938 = vperm.xlu0 %1937, %v1660
  %v1939 = vpop.permute.xlu0 %1938
  %v1940 = vlaneseq
  %v1941 = vshrl.u32 %v1940, 7
  %v1942 = vadd.s32 %v1941, 112
  %1943 = vset.pattern.permute.xlu0 %v1942
  %1944 = vperm.xlu0 %1943, %v1660
  %v1945 = vpop.permute.xlu0 %1944
  %v1946 = vlaneseq
  %v1947 = vshrl.u32 %v1946, 7
  %v1948 = vadd.s32 %v1947, 120
  %1949 = vset.pattern.permute.xlu0 %v1948
  %1950 = vperm.xlu0 %1949, %v1660
  %v1951 = vpop.permute.xlu0 %1950
  %v2000 = vmul.f32 %v1650, %v1669
  %v2001 = vmul.f32 %v1650, %v1675
  %v2002 = vmul.f32 %v1650, %v1681
  %v2003 = vmul.f32 %v1650, %v1687
  %v2004 = vmul.f32 %v1650, %v1693
  %v2005 = vmul.f32 %v1650, %v1699
  %v2006 = vmul.f32 %v1650, %v1705
  %v2007 = vmul.f32 %v1650, %v1711
  %v2008 = vmul.f32 %v1650, %v1717
  %v2009 = vmul.f32 %v1650, %v1723
  %v2010 = vmul.f32 %v1650, %v1729
  %v2011 = vmul.f32 %v1650, %v1735
  %v2012 = vmul.f32 %v1650, %v1741
  %v2013 = vmul.f32 %v1650, %v1747
  %v2014 = vmul.f32 %v1650, %v1753
  %v2015 = vmul.f32 %v1650, %v1759
  %v2016 = vmul.f32 %v1650, %v1765
  %v2017 = vmul.f32 %v1650, %v1771
  %v2018 = vmul.f32 %v1650, %v1777
  %v2019 = vmul.f32 %v1650, %v1783
  %v2020 = vmul.f32 %v1650, %v1789
  %v2021 = vmul.f32 %v1650, %v1795
  %v2022 = vmul.f32 %v1650, %v1801
  %v2023 = vmul.f32 %v1650, %v1807
  %v2024 = vmul.f32 %v1650, %v1813
  %v2025 = vmul.f32 %v1650, %v1819
  %v2026 = vmul.f32 %v1650, %v1825
  %v2027 = vmul.f32 %v1650, %v1831
  %v2028 = vmul.f32 %v1650, %v1837
  %v2029 = vmul.f32 %v1650, %v1843
  %v2030 = vmul.f32 %v1650, %v1849
  %v2031 = vmul.f32 %v1650, %v1855
  %v2032 = vmul.f32 %v1650, %v1861
  %v2033 = vmul.f32 %v1650, %v1867
  %v2034 = vmul.f32 %v1650, %v1873
  %v2035 = vmul.f32 %v1650, %v1879
  %v2036 = vmul.f32 %v1650, %v1885
  %v2037 = vmul.f32 %v1650, %v1891
  %v2038 = vmul.f32 %v1650, %v1897
  %v2039 = vmul.f32 %v1650, %v1903
  %v2040 = vmul.f32 %v1650, %v1909
  %v2041 = vmul.f32 %v1650, %v1915
  %v2042 = vmul.f32 %v1650, %v1921
  %v2043 = vmul.f32 %v1650, %v1927
  %v2044 = vmul.f32 %v1650, %v1933
  %v2045 = vmul.f32 %v1650, %v1939
  %v2046 = vmul.f32 %v1650, %v1945
  %v2047 = vmul.f32 %v1650, %v1951
  %v2048 = vmul.f32 %v1651, %v1669
  %v2049 = vmul.f32 %v1651, %v1675
  %v2050 = vmul.f32 %v1651, %v1681
  %v2051 = vmul.f32 %v1651, %v1687
  %v2052 = vmul.f32 %v1651, %v1693
  %v2053 = vmul.f32 %v1651, %v1699
  %v2054 = vmul.f32 %v1651, %v1705
  %v2055 = vmul.f32 %v1651, %v1711
  %v2056 = vmul.f32 %v1651, %v1717
  %v2057 = vmul.f32 %v1651, %v1723
  %v2058 = vmul.f32 %v1651, %v1729
  %v2059 = vmul.f32 %v1651, %v1735
  %v2060 = vmul.f32 %v1651, %v1741
  %v2061 = vmul.f32 %v1651, %v1747
  %v2062 = vmul.f32 %v1651, %v1753
  %v2063 = vmul.f32 %v1651, %v1759
  %v2064 = vmul.f32 %v1651, %v1765
  %v2065 = vmul.f32 %v1651, %v1771
  %v2066 = vmul.f32 %v1651, %v1777
  %v2067 = vmul.f32 %v1651, %v1783
  %v2068 = vmul.f32 %v1651, %v1789
  %v2069 = vmul.f32 %v1651, %v1795
  %v2070 = vmul.f32 %v1651, %v1801
  %v2071 = vmul.f32 %v1651, %v1807
  %v2072 = vmul.f32 %v1651, %v1813
  %v2073 = vmul.f32 %v1651, %v1819
  %v2074 = vmul.f32 %v1651, %v1825
  %v2075 = vmul.f32 %v1651, %v1831
  %v2076 = vmul.f32 %v1651, %v1837
  %v2077 = vmul.f32 %v1651, %v1843
  %v2078 = vmul.f32 %v1651, %v1849
  %v2079 = vmul.f32 %v1651, %v1855
  %v2080 = vmul.f32 %v1651, %v1861
  %v2081 = vmul.f32 %v1651, %v1867
  %v2082 = vmul.f32 %v1651, %v1873
  %v2083 = vmul.f32 %v1651, %v1879
  %v2084 = vmul.f32 %v1651, %v1885
  %v2085 = vmul.f32 %v1651, %v1891
  %v2086 = vmul.f32 %v1651, %v1897
  %v2087 = vmul.f32 %v1651, %v1903
  %v2088 = vmul.f32 %v1651, %v1909
  %v2089 = vmul.f32 %v1651, %v1915
  %v2090 = vmul.f32 %v1651, %v1921
  %v2091 = vmul.f32 %v1651, %v1927
  %v2092 = vmul.f32 %v1651, %v1933
  %v2093 = vmul.f32 %v1651, %v1939
  %v2094 = vmul.f32 %v1651, %v1945
  %v2095 = vmul.f32 %v1651, %v1951
  %v2096 = vadd.f32 %v1554, %v2000
  %v2097 = vadd.f32 %v1555, %v2001
  %v2098 = vadd.f32 %v1556, %v2002
  %v2099 = vadd.f32 %v1557, %v2003
  %v2100 = vadd.f32 %v1558, %v2004
  %v2101 = vadd.f32 %v1559, %v2005
  %v2102 = vadd.f32 %v1560, %v2006
  %v2103 = vadd.f32 %v1561, %v2007
  %v2104 = vadd.f32 %v1562, %v2008
  %v2105 = vadd.f32 %v1563, %v2009
  %v2106 = vadd.f32 %v1564, %v2010
  %v2107 = vadd.f32 %v1565, %v2011
  %v2108 = vadd.f32 %v1566, %v2012
  %v2109 = vadd.f32 %v1567, %v2013
  %v2110 = vadd.f32 %v1568, %v2014
  %v2111 = vadd.f32 %v1569, %v2015
  %v2112 = vadd.f32 %v1570, %v2016
  %v2113 = vadd.f32 %v1571, %v2017
  %v2114 = vadd.f32 %v1572, %v2018
  %v2115 = vadd.f32 %v1573, %v2019
  %v2116 = vadd.f32 %v1574, %v2020
  %v2117 = vadd.f32 %v1575, %v2021
  %v2118 = vadd.f32 %v1576, %v2022
  %v2119 = vadd.f32 %v1577, %v2023
  %v2120 = vadd.f32 %v1578, %v2024
  %v2121 = vadd.f32 %v1579, %v2025
  %v2122 = vadd.f32 %v1580, %v2026
  %v2123 = vadd.f32 %v1581, %v2027
  %v2124 = vadd.f32 %v1582, %v2028
  %v2125 = vadd.f32 %v1583, %v2029
  %v2126 = vadd.f32 %v1584, %v2030
  %v2127 = vadd.f32 %v1585, %v2031
  %v2128 = vadd.f32 %v1586, %v2032
  %v2129 = vadd.f32 %v1587, %v2033
  %v2130 = vadd.f32 %v1588, %v2034
  %v2131 = vadd.f32 %v1589, %v2035
  %v2132 = vadd.f32 %v1590, %v2036
  %v2133 = vadd.f32 %v1591, %v2037
  %v2134 = vadd.f32 %v1592, %v2038
  %v2135 = vadd.f32 %v1593, %v2039
  %v2136 = vadd.f32 %v1594, %v2040
  %v2137 = vadd.f32 %v1595, %v2041
  %v2138 = vadd.f32 %v1596, %v2042
  %v2139 = vadd.f32 %v1597, %v2043
  %v2140 = vadd.f32 %v1598, %v2044
  %v2141 = vadd.f32 %v1599, %v2045
  %v2142 = vadd.f32 %v1600, %v2046
  %v2143 = vadd.f32 %v1601, %v2047
  %v2144 = vadd.f32 %v1602, %v2048
  %v2145 = vadd.f32 %v1603, %v2049
  %v2146 = vadd.f32 %v1604, %v2050
  %v2147 = vadd.f32 %v1605, %v2051
  %v2148 = vadd.f32 %v1606, %v2052
  %v2149 = vadd.f32 %v1607, %v2053
  %v2150 = vadd.f32 %v1608, %v2054
  %v2151 = vadd.f32 %v1609, %v2055
  %v2152 = vadd.f32 %v1610, %v2056
  %v2153 = vadd.f32 %v1611, %v2057
  %v2154 = vadd.f32 %v1612, %v2058
  %v2155 = vadd.f32 %v1613, %v2059
  %v2156 = vadd.f32 %v1614, %v2060
  %v2157 = vadd.f32 %v1615, %v2061
  %v2158 = vadd.f32 %v1616, %v2062
  %v2159 = vadd.f32 %v1617, %v2063
  %v2160 = vadd.f32 %v1618, %v2064
  %v2161 = vadd.f32 %v1619, %v2065
  %v2162 = vadd.f32 %v1620, %v2066
  %v2163 = vadd.f32 %v1621, %v2067
  %v2164 = vadd.f32 %v1622, %v2068
  %v2165 = vadd.f32 %v1623, %v2069
  %v2166 = vadd.f32 %v1624, %v2070
  %v2167 = vadd.f32 %v1625, %v2071
  %v2168 = vadd.f32 %v1626, %v2072
  %v2169 = vadd.f32 %v1627, %v2073
  %v2170 = vadd.f32 %v1628, %v2074
  %v2171 = vadd.f32 %v1629, %v2075
  %v2172 = vadd.f32 %v1630, %v2076
  %v2173 = vadd.f32 %v1631, %v2077
  %v2174 = vadd.f32 %v1632, %v2078
  %v2175 = vadd.f32 %v1633, %v2079
  %v2176 = vadd.f32 %v1634, %v2080
  %v2177 = vadd.f32 %v1635, %v2081
  %v2178 = vadd.f32 %v1636, %v2082
  %v2179 = vadd.f32 %v1637, %v2083
  %v2180 = vadd.f32 %v1638, %v2084
  %v2181 = vadd.f32 %v1639, %v2085
  %v2182 = vadd.f32 %v1640, %v2086
  %v2183 = vadd.f32 %v1641, %v2087
  %v2184 = vadd.f32 %v1642, %v2088
  %v2185 = vadd.f32 %v1643, %v2089
  %v2186 = vadd.f32 %v1644, %v2090
  %v2187 = vadd.f32 %v1645, %v2091
  %v2188 = vadd.f32 %v1646, %v2092
  %v2189 = vadd.f32 %v1647, %v2093
  %v2190 = vadd.f32 %v1648, %v2094
  %v2191 = vadd.f32 %v1649, %v2095
  %v2192 = vmul.f32 %v2096, %v2096
  %v2193 = vmul.f32 %v2097, %v2097
  %v2194 = vmul.f32 %v2098, %v2098
  %v2195 = vmul.f32 %v2099, %v2099
  %v2196 = vmul.f32 %v2100, %v2100
  %v2197 = vmul.f32 %v2101, %v2101
  %v2198 = vmul.f32 %v2102, %v2102
  %v2199 = vmul.f32 %v2103, %v2103
  %v2200 = vmul.f32 %v2104, %v2104
  %v2201 = vmul.f32 %v2105, %v2105
  %v2202 = vmul.f32 %v2106, %v2106
  %v2203 = vmul.f32 %v2107, %v2107
  %v2204 = vmul.f32 %v2108, %v2108
  %v2205 = vmul.f32 %v2109, %v2109
  %v2206 = vmul.f32 %v2110, %v2110
  %v2207 = vmul.f32 %v2111, %v2111
  %v2208 = vmul.f32 %v2112, %v2112
  %v2209 = vmul.f32 %v2113, %v2113
  %v2210 = vmul.f32 %v2114, %v2114
  %v2211 = vmul.f32 %v2115, %v2115
  %v2212 = vmul.f32 %v2116, %v2116
  %v2213 = vmul.f32 %v2117, %v2117
  %v2214 = vmul.f32 %v2118, %v2118
  %v2215 = vmul.f32 %v2119, %v2119
  %v2216 = vmul.f32 %v2120, %v2120
  %v2217 = vmul.f32 %v2121, %v2121
  %v2218 = vmul.f32 %v2122, %v2122
  %v2219 = vmul.f32 %v2123, %v2123
  %v2220 = vmul.f32 %v2124, %v2124
  %v2221 = vmul.f32 %v2125, %v2125
  %v2222 = vmul.f32 %v2126, %v2126
  %v2223 = vmul.f32 %v2127, %v2127
  %v2224 = vmul.f32 %v2128, %v2128
  %v2225 = vmul.f32 %v2129, %v2129
  %v2226 = vmul.f32 %v2130, %v2130
  %v2227 = vmul.f32 %v2131, %v2131
  %v2228 = vmul.f32 %v2132, %v2132
  %v2229 = vmul.f32 %v2133, %v2133
  %v2230 = vmul.f32 %v2134, %v2134
  %v2231 = vmul.f32 %v2135, %v2135
  %v2232 = vmul.f32 %v2136, %v2136
  %v2233 = vmul.f32 %v2137, %v2137
  %v2234 = vmul.f32 %v2138, %v2138
  %v2235 = vmul.f32 %v2139, %v2139
  %v2236 = vmul.f32 %v2140, %v2140
  %v2237 = vmul.f32 %v2141, %v2141
  %v2238 = vmul.f32 %v2142, %v2142
  %v2239 = vmul.f32 %v2143, %v2143
  %v2240 = vmul.f32 %v2144, %v2144
  %v2241 = vmul.f32 %v2145, %v2145
  %v2242 = vmul.f32 %v2146, %v2146
  %v2243 = vmul.f32 %v2147, %v2147
  %v2244 = vmul.f32 %v2148, %v2148
  %v2245 = vmul.f32 %v2149, %v2149
  %v2246 = vmul.f32 %v2150, %v2150
  %v2247 = vmul.f32 %v2151, %v2151
  %v2248 = vmul.f32 %v2152, %v2152
  %v2249 = vmul.f32 %v2153, %v2153
  %v2250 = vmul.f32 %v2154, %v2154
  %v2251 = vmul.f32 %v2155, %v2155
  %v2252 = vmul.f32 %v2156, %v2156
  %v2253 = vmul.f32 %v2157, %v2157
  %v2254 = vmul.f32 %v2158, %v2158
  %v2255 = vmul.f32 %v2159, %v2159
  %v2256 = vmul.f32 %v2160, %v2160
  %v2257 = vmul.f32 %v2161, %v2161
  %v2258 = vmul.f32 %v2162, %v2162
  %v2259 = vmul.f32 %v2163, %v2163
  %v2260 = vmul.f32 %v2164, %v2164
  %v2261 = vmul.f32 %v2165, %v2165
  %v2262 = vmul.f32 %v2166, %v2166
  %v2263 = vmul.f32 %v2167, %v2167
  %v2264 = vmul.f32 %v2168, %v2168
  %v2265 = vmul.f32 %v2169, %v2169
  %v2266 = vmul.f32 %v2170, %v2170
  %v2267 = vmul.f32 %v2171, %v2171
  %v2268 = vmul.f32 %v2172, %v2172
  %v2269 = vmul.f32 %v2173, %v2173
  %v2270 = vmul.f32 %v2174, %v2174
  %v2271 = vmul.f32 %v2175, %v2175
  %v2272 = vmul.f32 %v2176, %v2176
  %v2273 = vmul.f32 %v2177, %v2177
  %v2274 = vmul.f32 %v2178, %v2178
  %v2275 = vmul.f32 %v2179, %v2179
  %v2276 = vmul.f32 %v2180, %v2180
  %v2277 = vmul.f32 %v2181, %v2181
  %v2278 = vmul.f32 %v2182, %v2182
  %v2279 = vmul.f32 %v2183, %v2183
  %v2280 = vmul.f32 %v2184, %v2184
  %v2281 = vmul.f32 %v2185, %v2185
  %v2282 = vmul.f32 %v2186, %v2186
  %v2283 = vmul.f32 %v2187, %v2187
  %v2284 = vmul.f32 %v2188, %v2188
  %v2285 = vmul.f32 %v2189, %v2189
  %v2286 = vmul.f32 %v2190, %v2190
  %v2287 = vmul.f32 %v2191, %v2191
  %2384 = vset.pattern.permute.xlu0 0
  %2385 = vperm.xlu0 %2384, %v2192
  %v2386 = vpop.permute.xlu0 %2385
  %2387 = vset.pattern.permute.xlu0 0
  %2388 = vperm.xlu0 %2387, %v2193
  %v2389 = vpop.permute.xlu0 %2388
  %2390 = vset.pattern.permute.xlu0 0
  %2391 = vperm.xlu0 %2390, %v2194
  %v2392 = vpop.permute.xlu0 %2391
  %2393 = vset.pattern.permute.xlu0 0
  %2394 = vperm.xlu0 %2393, %v2195
  %v2395 = vpop.permute.xlu0 %2394
  %2396 = vset.pattern.permute.xlu0 0
  %2397 = vperm.xlu0 %2396, %v2196
  %v2398 = vpop.permute.xlu0 %2397
  %2399 = vset.pattern.permute.xlu0 0
  %2400 = vperm.xlu0 %2399, %v2197
  %v2401 = vpop.permute.xlu0 %2400
  %2402 = vset.pattern.permute.xlu0 0
  %2403 = vperm.xlu0 %2402, %v2198
  %v2404 = vpop.permute.xlu0 %2403
  %2405 = vset.pattern.permute.xlu0 0
  %2406 = vperm.xlu0 %2405, %v2199
  %v2407 = vpop.permute.xlu0 %2406
  %2408 = vset.pattern.permute.xlu0 0
  %2409 = vperm.xlu0 %2408, %v2200
  %v2410 = vpop.permute.xlu0 %2409
  %2411 = vset.pattern.permute.xlu0 0
  %2412 = vperm.xlu0 %2411, %v2201
  %v2413 = vpop.permute.xlu0 %2412
  %2414 = vset.pattern.permute.xlu0 0
  %2415 = vperm.xlu0 %2414, %v2202
  %v2416 = vpop.permute.xlu0 %2415
  %2417 = vset.pattern.permute.xlu0 0
  %2418 = vperm.xlu0 %2417, %v2203
  %v2419 = vpop.permute.xlu0 %2418
  %2420 = vset.pattern.permute.xlu0 0
  %2421 = vperm.xlu0 %2420, %v2204
  %v2422 = vpop.permute.xlu0 %2421
  %2423 = vset.pattern.permute.xlu0 0
  %2424 = vperm.xlu0 %2423, %v2205
  %v2425 = vpop.permute.xlu0 %2424
  %2426 = vset.pattern.permute.xlu0 0
  %2427 = vperm.xlu0 %2426, %v2206
  %v2428 = vpop.permute.xlu0 %2427
  %2429 = vset.pattern.permute.xlu0 0
  %2430 = vperm.xlu0 %2429, %v2207
  %v2431 = vpop.permute.xlu0 %2430
  %2432 = vset.pattern.permute.xlu0 0
  %2433 = vperm.xlu0 %2432, %v2208
  %v2434 = vpop.permute.xlu0 %2433
  %2435 = vset.pattern.permute.xlu0 0
  %2436 = vperm.xlu0 %2435, %v2209
  %v2437 = vpop.permute.xlu0 %2436
  %2438 = vset.pattern.permute.xlu0 0
  %2439 = vperm.xlu0 %2438, %v2210
  %v2440 = vpop.permute.xlu0 %2439
  %2441 = vset.pattern.permute.xlu0 0
  %2442 = vperm.xlu0 %2441, %v2211
  %v2443 = vpop.permute.xlu0 %2442
  %2444 = vset.pattern.permute.xlu0 0
  %2445 = vperm.xlu0 %2444, %v2212
  %v2446 = vpop.permute.xlu0 %2445
  %2447 = vset.pattern.permute.xlu0 0
  %2448 = vperm.xlu0 %2447, %v2213
  %v2449 = vpop.permute.xlu0 %2448
  %2450 = vset.pattern.permute.xlu0 0
  %2451 = vperm.xlu0 %2450, %v2214
  %v2452 = vpop.permute.xlu0 %2451
  %2453 = vset.pattern.permute.xlu0 0
  %2454 = vperm.xlu0 %2453, %v2215
  %v2455 = vpop.permute.xlu0 %2454
  %2456 = vset.pattern.permute.xlu0 0
  %2457 = vperm.xlu0 %2456, %v2216
  %v2458 = vpop.permute.xlu0 %2457
  %2459 = vset.pattern.permute.xlu0 0
  %2460 = vperm.xlu0 %2459, %v2217
  %v2461 = vpop.permute.xlu0 %2460
  %2462 = vset.pattern.permute.xlu0 0
  %2463 = vperm.xlu0 %2462, %v2218
  %v2464 = vpop.permute.xlu0 %2463
  %2465 = vset.pattern.permute.xlu0 0
  %2466 = vperm.xlu0 %2465, %v2219
  %v2467 = vpop.permute.xlu0 %2466
  %2468 = vset.pattern.permute.xlu0 0
  %2469 = vperm.xlu0 %2468, %v2220
  %v2470 = vpop.permute.xlu0 %2469
  %2471 = vset.pattern.permute.xlu0 0
  %2472 = vperm.xlu0 %2471, %v2221
  %v2473 = vpop.permute.xlu0 %2472
  %2474 = vset.pattern.permute.xlu0 0
  %2475 = vperm.xlu0 %2474, %v2222
  %v2476 = vpop.permute.xlu0 %2475
  %2477 = vset.pattern.permute.xlu0 0
  %2478 = vperm.xlu0 %2477, %v2223
  %v2479 = vpop.permute.xlu0 %2478
  %2480 = vset.pattern.permute.xlu0 0
  %2481 = vperm.xlu0 %2480, %v2224
  %v2482 = vpop.permute.xlu0 %2481
  %2483 = vset.pattern.permute.xlu0 0
  %2484 = vperm.xlu0 %2483, %v2225
  %v2485 = vpop.permute.xlu0 %2484
  %2486 = vset.pattern.permute.xlu0 0
  %2487 = vperm.xlu0 %2486, %v2226
  %v2488 = vpop.permute.xlu0 %2487
  %2489 = vset.pattern.permute.xlu0 0
  %2490 = vperm.xlu0 %2489, %v2227
  %v2491 = vpop.permute.xlu0 %2490
  %2492 = vset.pattern.permute.xlu0 0
  %2493 = vperm.xlu0 %2492, %v2228
  %v2494 = vpop.permute.xlu0 %2493
  %2495 = vset.pattern.permute.xlu0 0
  %2496 = vperm.xlu0 %2495, %v2229
  %v2497 = vpop.permute.xlu0 %2496
  %2498 = vset.pattern.permute.xlu0 0
  %2499 = vperm.xlu0 %2498, %v2230
  %v2500 = vpop.permute.xlu0 %2499
  %2501 = vset.pattern.permute.xlu0 0
  %2502 = vperm.xlu0 %2501, %v2231
  %v2503 = vpop.permute.xlu0 %2502
  %2504 = vset.pattern.permute.xlu0 0
  %2505 = vperm.xlu0 %2504, %v2232
  %v2506 = vpop.permute.xlu0 %2505
  %2507 = vset.pattern.permute.xlu0 0
  %2508 = vperm.xlu0 %2507, %v2233
  %v2509 = vpop.permute.xlu0 %2508
  %2510 = vset.pattern.permute.xlu0 0
  %2511 = vperm.xlu0 %2510, %v2234
  %v2512 = vpop.permute.xlu0 %2511
  %2513 = vset.pattern.permute.xlu0 0
  %2514 = vperm.xlu0 %2513, %v2235
  %v2515 = vpop.permute.xlu0 %2514
  %2516 = vset.pattern.permute.xlu0 0
  %2517 = vperm.xlu0 %2516, %v2236
  %v2518 = vpop.permute.xlu0 %2517
  %2519 = vset.pattern.permute.xlu0 0
  %2520 = vperm.xlu0 %2519, %v2237
  %v2521 = vpop.permute.xlu0 %2520
  %2522 = vset.pattern.permute.xlu0 0
  %2523 = vperm.xlu0 %2522, %v2238
  %v2524 = vpop.permute.xlu0 %2523
  %2525 = vset.pattern.permute.xlu0 0
  %2526 = vperm.xlu0 %2525, %v2239
  %v2527 = vpop.permute.xlu0 %2526
  %2528 = vset.pattern.permute.xlu0 0
  %2529 = vperm.xlu0 %2528, %v2240
  %v2530 = vpop.permute.xlu0 %2529
  %2531 = vset.pattern.permute.xlu0 0
  %2532 = vperm.xlu0 %2531, %v2241
  %v2533 = vpop.permute.xlu0 %2532
  %2534 = vset.pattern.permute.xlu0 0
  %2535 = vperm.xlu0 %2534, %v2242
  %v2536 = vpop.permute.xlu0 %2535
  %2537 = vset.pattern.permute.xlu0 0
  %2538 = vperm.xlu0 %2537, %v2243
  %v2539 = vpop.permute.xlu0 %2538
  %2540 = vset.pattern.permute.xlu0 0
  %2541 = vperm.xlu0 %2540, %v2244
  %v2542 = vpop.permute.xlu0 %2541
  %2543 = vset.pattern.permute.xlu0 0
  %2544 = vperm.xlu0 %2543, %v2245
  %v2545 = vpop.permute.xlu0 %2544
  %2546 = vset.pattern.permute.xlu0 0
  %2547 = vperm.xlu0 %2546, %v2246
  %v2548 = vpop.permute.xlu0 %2547
  %2549 = vset.pattern.permute.xlu0 0
  %2550 = vperm.xlu0 %2549, %v2247
  %v2551 = vpop.permute.xlu0 %2550
  %2552 = vset.pattern.permute.xlu0 0
  %2553 = vperm.xlu0 %2552, %v2248
  %v2554 = vpop.permute.xlu0 %2553
  %2555 = vset.pattern.permute.xlu0 0
  %2556 = vperm.xlu0 %2555, %v2249
  %v2557 = vpop.permute.xlu0 %2556
  %2558 = vset.pattern.permute.xlu0 0
  %2559 = vperm.xlu0 %2558, %v2250
  %v2560 = vpop.permute.xlu0 %2559
  %2561 = vset.pattern.permute.xlu0 0
  %2562 = vperm.xlu0 %2561, %v2251
  %v2563 = vpop.permute.xlu0 %2562
  %2564 = vset.pattern.permute.xlu0 0
  %2565 = vperm.xlu0 %2564, %v2252
  %v2566 = vpop.permute.xlu0 %2565
  %2567 = vset.pattern.permute.xlu0 0
  %2568 = vperm.xlu0 %2567, %v2253
  %v2569 = vpop.permute.xlu0 %2568
  %2570 = vset.pattern.permute.xlu0 0
  %2571 = vperm.xlu0 %2570, %v2254
  %v2572 = vpop.permute.xlu0 %2571
  %2573 = vset.pattern.permute.xlu0 0
  %2574 = vperm.xlu0 %2573, %v2255
  %v2575 = vpop.permute.xlu0 %2574
  %2576 = vset.pattern.permute.xlu0 0
  %2577 = vperm.xlu0 %2576, %v2256
  %v2578 = vpop.permute.xlu0 %2577
  %2579 = vset.pattern.permute.xlu0 0
  %2580 = vperm.xlu0 %2579, %v2257
  %v2581 = vpop.permute.xlu0 %2580
  %2582 = vset.pattern.permute.xlu0 0
  %2583 = vperm.xlu0 %2582, %v2258
  %v2584 = vpop.permute.xlu0 %2583
  %2585 = vset.pattern.permute.xlu0 0
  %2586 = vperm.xlu0 %2585, %v2259
  %v2587 = vpop.permute.xlu0 %2586
  %2588 = vset.pattern.permute.xlu0 0
  %2589 = vperm.xlu0 %2588, %v2260
  %v2590 = vpop.permute.xlu0 %2589
  %2591 = vset.pattern.permute.xlu0 0
  %2592 = vperm.xlu0 %2591, %v2261
  %v2593 = vpop.permute.xlu0 %2592
  %2594 = vset.pattern.permute.xlu0 0
  %2595 = vperm.xlu0 %2594, %v2262
  %v2596 = vpop.permute.xlu0 %2595
  %2597 = vset.pattern.permute.xlu0 0
  %2598 = vperm.xlu0 %2597, %v2263
  %v2599 = vpop.permute.xlu0 %2598
  %2600 = vset.pattern.permute.xlu0 0
  %2601 = vperm.xlu0 %2600, %v2264
  %v2602 = vpop.permute.xlu0 %2601
  %2603 = vset.pattern.permute.xlu0 0
  %2604 = vperm.xlu0 %2603, %v2265
  %v2605 = vpop.permute.xlu0 %2604
  %2606 = vset.pattern.permute.xlu0 0
  %2607 = vperm.xlu0 %2606, %v2266
  %v2608 = vpop.permute.xlu0 %2607
  %2609 = vset.pattern.permute.xlu0 0
  %2610 = vperm.xlu0 %2609, %v2267
  %v2611 = vpop.permute.xlu0 %2610
  %2612 = vset.pattern.permute.xlu0 0
  %2613 = vperm.xlu0 %2612, %v2268
  %v2614 = vpop.permute.xlu0 %2613
  %2615 = vset.pattern.permute.xlu0 0
  %2616 = vperm.xlu0 %2615, %v2269
  %v2617 = vpop.permute.xlu0 %2616
  %2618 = vset.pattern.permute.xlu0 0
  %2619 = vperm.xlu0 %2618, %v2270
  %v2620 = vpop.permute.xlu0 %2619
  %2621 = vset.pattern.permute.xlu0 0
  %2622 = vperm.xlu0 %2621, %v2271
  %v2623 = vpop.permute.xlu0 %2622
  %2624 = vset.pattern.permute.xlu0 0
  %2625 = vperm.xlu0 %2624, %v2272
  %v2626 = vpop.permute.xlu0 %2625
  %2627 = vset.pattern.permute.xlu0 0
  %2628 = vperm.xlu0 %2627, %v2273
  %v2629 = vpop.permute.xlu0 %2628
  %2630 = vset.pattern.permute.xlu0 0
  %2631 = vperm.xlu0 %2630, %v2274
  %v2632 = vpop.permute.xlu0 %2631
  %2633 = vset.pattern.permute.xlu0 0
  %2634 = vperm.xlu0 %2633, %v2275
  %v2635 = vpop.permute.xlu0 %2634
  %2636 = vset.pattern.permute.xlu0 0
  %2637 = vperm.xlu0 %2636, %v2276
  %v2638 = vpop.permute.xlu0 %2637
  %2639 = vset.pattern.permute.xlu0 0
  %2640 = vperm.xlu0 %2639, %v2277
  %v2641 = vpop.permute.xlu0 %2640
  %2642 = vset.pattern.permute.xlu0 0
  %2643 = vperm.xlu0 %2642, %v2278
  %v2644 = vpop.permute.xlu0 %2643
  %2645 = vset.pattern.permute.xlu0 0
  %2646 = vperm.xlu0 %2645, %v2279
  %v2647 = vpop.permute.xlu0 %2646
  %2648 = vset.pattern.permute.xlu0 0
  %2649 = vperm.xlu0 %2648, %v2280
  %v2650 = vpop.permute.xlu0 %2649
  %2651 = vset.pattern.permute.xlu0 0
  %2652 = vperm.xlu0 %2651, %v2281
  %v2653 = vpop.permute.xlu0 %2652
  %2654 = vset.pattern.permute.xlu0 0
  %2655 = vperm.xlu0 %2654, %v2282
  %v2656 = vpop.permute.xlu0 %2655
  %2657 = vset.pattern.permute.xlu0 0
  %2658 = vperm.xlu0 %2657, %v2283
  %v2659 = vpop.permute.xlu0 %2658
  %2660 = vset.pattern.permute.xlu0 0
  %2661 = vperm.xlu0 %2660, %v2284
  %v2662 = vpop.permute.xlu0 %2661
  %2663 = vset.pattern.permute.xlu0 0
  %2664 = vperm.xlu0 %2663, %v2285
  %v2665 = vpop.permute.xlu0 %2664
  %2666 = vset.pattern.permute.xlu0 0
  %2667 = vperm.xlu0 %2666, %v2286
  %v2668 = vpop.permute.xlu0 %2667
  %2669 = vset.pattern.permute.xlu0 0
  %2670 = vperm.xlu0 %2669, %v2287
  %v2671 = vpop.permute.xlu0 %2670
  %v2672 = vlaneseq
  %v2673 = vand.u32 %v2672, 127
  %v2674 = vperm.slane %v2386, %v2673
  %v2675 = vadd.s32 %v2673, 4294967288
  %v2676 = vperm.slane %v2389, %v2675
  %vm2677 = vcmask 130112
  %v2678 = vsel %vm2677, %v2676, %v2674
  %v2679 = vadd.s32 %v2673, 4294967280
  %v2680 = vperm.slane %v2392, %v2679
  %vm2681 = vcmask 195712
  %v2682 = vsel %vm2681, %v2680, %v2678
  %v2683 = vadd.s32 %v2673, 4294967272
  %v2684 = vperm.slane %v2395, %v2683
  %vm2685 = vcmask 261312
  %v2686 = vsel %vm2685, %v2684, %v2682
  %v2687 = vadd.s32 %v2673, 4294967264
  %v2688 = vperm.slane %v2398, %v2687
  %vm2689 = vcmask 326912
  %v2690 = vsel %vm2689, %v2688, %v2686
  %v2691 = vadd.s32 %v2673, 4294967256
  %v2692 = vperm.slane %v2401, %v2691
  %vm2693 = vcmask 392512
  %v2694 = vsel %vm2693, %v2692, %v2690
  %v2695 = vadd.s32 %v2673, 4294967248
  %v2696 = vperm.slane %v2404, %v2695
  %vm2697 = vcmask 458112
  %v2698 = vsel %vm2697, %v2696, %v2694
  %v2699 = vadd.s32 %v2673, 4294967240
  %v2700 = vperm.slane %v2407, %v2699
  %vm2701 = vcmask 523712
  %v2702 = vsel %vm2701, %v2700, %v2698
  %v2703 = vadd.s32 %v2673, 4294967232
  %v2704 = vperm.slane %v2410, %v2703
  %vm2705 = vcmask 589312
  %v2706 = vsel %vm2705, %v2704, %v2702
  %v2707 = vadd.s32 %v2673, 4294967224
  %v2708 = vperm.slane %v2413, %v2707
  %vm2709 = vcmask 654912
  %v2710 = vsel %vm2709, %v2708, %v2706
  %v2711 = vadd.s32 %v2673, 4294967216
  %v2712 = vperm.slane %v2416, %v2711
  %vm2713 = vcmask 720512
  %v2714 = vsel %vm2713, %v2712, %v2710
  %v2715 = vadd.s32 %v2673, 4294967208
  %v2716 = vperm.slane %v2419, %v2715
  %vm2717 = vcmask 786112
  %v2718 = vsel %vm2717, %v2716, %v2714
  %v2719 = vadd.s32 %v2673, 4294967200
  %v2720 = vperm.slane %v2422, %v2719
  %vm2721 = vcmask 851712
  %v2722 = vsel %vm2721, %v2720, %v2718
  %v2723 = vadd.s32 %v2673, 4294967192
  %v2724 = vperm.slane %v2425, %v2723
  %vm2725 = vcmask 917312
  %v2726 = vsel %vm2725, %v2724, %v2722
  %v2727 = vadd.s32 %v2673, 4294967184
  %v2728 = vperm.slane %v2428, %v2727
  %vm2729 = vcmask 982912
  %v2730 = vsel %vm2729, %v2728, %v2726
  %v2731 = vadd.s32 %v2673, 4294967176
  %v2732 = vperm.slane %v2431, %v2731
  %vm2733 = vcmask 1048512
  %v2734 = vsel %vm2733, %v2732, %v2730
  %v2735 = vperm.slane %v2434, %v2673
  %v2736 = vperm.slane %v2437, %v2675
  %v2737 = vsel %vm2677, %v2736, %v2735
  %v2738 = vperm.slane %v2440, %v2679
  %v2739 = vsel %vm2681, %v2738, %v2737
  %v2740 = vperm.slane %v2443, %v2683
  %v2741 = vsel %vm2685, %v2740, %v2739
  %v2742 = vperm.slane %v2446, %v2687
  %v2743 = vsel %vm2689, %v2742, %v2741
  %v2744 = vperm.slane %v2449, %v2691
  %v2745 = vsel %vm2693, %v2744, %v2743
  %v2746 = vperm.slane %v2452, %v2695
  %v2747 = vsel %vm2697, %v2746, %v2745
  %v2748 = vperm.slane %v2455, %v2699
  %v2749 = vsel %vm2701, %v2748, %v2747
  %v2750 = vperm.slane %v2458, %v2703
  %v2751 = vsel %vm2705, %v2750, %v2749
  %v2752 = vperm.slane %v2461, %v2707
  %v2753 = vsel %vm2709, %v2752, %v2751
  %v2754 = vperm.slane %v2464, %v2711
  %v2755 = vsel %vm2713, %v2754, %v2753
  %v2756 = vperm.slane %v2467, %v2715
  %v2757 = vsel %vm2717, %v2756, %v2755
  %v2758 = vperm.slane %v2470, %v2719
  %v2759 = vsel %vm2721, %v2758, %v2757
  %v2760 = vperm.slane %v2473, %v2723
  %v2761 = vsel %vm2725, %v2760, %v2759
  %v2762 = vperm.slane %v2476, %v2727
  %v2763 = vsel %vm2729, %v2762, %v2761
  %v2764 = vperm.slane %v2479, %v2731
  %v2765 = vsel %vm2733, %v2764, %v2763
  %v2766 = vperm.slane %v2482, %v2673
  %v2767 = vperm.slane %v2485, %v2675
  %v2768 = vsel %vm2677, %v2767, %v2766
  %v2769 = vperm.slane %v2488, %v2679
  %v2770 = vsel %vm2681, %v2769, %v2768
  %v2771 = vperm.slane %v2491, %v2683
  %v2772 = vsel %vm2685, %v2771, %v2770
  %v2773 = vperm.slane %v2494, %v2687
  %v2774 = vsel %vm2689, %v2773, %v2772
  %v2775 = vperm.slane %v2497, %v2691
  %v2776 = vsel %vm2693, %v2775, %v2774
  %v2777 = vperm.slane %v2500, %v2695
  %v2778 = vsel %vm2697, %v2777, %v2776
  %v2779 = vperm.slane %v2503, %v2699
  %v2780 = vsel %vm2701, %v2779, %v2778
  %v2781 = vperm.slane %v2506, %v2703
  %v2782 = vsel %vm2705, %v2781, %v2780
  %v2783 = vperm.slane %v2509, %v2707
  %v2784 = vsel %vm2709, %v2783, %v2782
  %v2785 = vperm.slane %v2512, %v2711
  %v2786 = vsel %vm2713, %v2785, %v2784
  %v2787 = vperm.slane %v2515, %v2715
  %v2788 = vsel %vm2717, %v2787, %v2786
  %v2789 = vperm.slane %v2518, %v2719
  %v2790 = vsel %vm2721, %v2789, %v2788
  %v2791 = vperm.slane %v2521, %v2723
  %v2792 = vsel %vm2725, %v2791, %v2790
  %v2793 = vperm.slane %v2524, %v2727
  %v2794 = vsel %vm2729, %v2793, %v2792
  %v2795 = vperm.slane %v2527, %v2731
  %v2796 = vsel %vm2733, %v2795, %v2794
  %v2797 = vperm.slane %v2530, %v2673
  %v2798 = vperm.slane %v2533, %v2675
  %v2799 = vsel %vm2677, %v2798, %v2797
  %v2800 = vperm.slane %v2536, %v2679
  %v2801 = vsel %vm2681, %v2800, %v2799
  %v2802 = vperm.slane %v2539, %v2683
  %v2803 = vsel %vm2685, %v2802, %v2801
  %v2804 = vperm.slane %v2542, %v2687
  %v2805 = vsel %vm2689, %v2804, %v2803
  %v2806 = vperm.slane %v2545, %v2691
  %v2807 = vsel %vm2693, %v2806, %v2805
  %v2808 = vperm.slane %v2548, %v2695
  %v2809 = vsel %vm2697, %v2808, %v2807
  %v2810 = vperm.slane %v2551, %v2699
  %v2811 = vsel %vm2701, %v2810, %v2809
  %v2812 = vperm.slane %v2554, %v2703
  %v2813 = vsel %vm2705, %v2812, %v2811
  %v2814 = vperm.slane %v2557, %v2707
  %v2815 = vsel %vm2709, %v2814, %v2813
  %v2816 = vperm.slane %v2560, %v2711
  %v2817 = vsel %vm2713, %v2816, %v2815
  %v2818 = vperm.slane %v2563, %v2715
  %v2819 = vsel %vm2717, %v2818, %v2817
  %v2820 = vperm.slane %v2566, %v2719
  %v2821 = vsel %vm2721, %v2820, %v2819
  %v2822 = vperm.slane %v2569, %v2723
  %v2823 = vsel %vm2725, %v2822, %v2821
  %v2824 = vperm.slane %v2572, %v2727
  %v2825 = vsel %vm2729, %v2824, %v2823
  %v2826 = vperm.slane %v2575, %v2731
  %v2827 = vsel %vm2733, %v2826, %v2825
  %v2828 = vperm.slane %v2578, %v2673
  %v2829 = vperm.slane %v2581, %v2675
  %v2830 = vsel %vm2677, %v2829, %v2828
  %v2831 = vperm.slane %v2584, %v2679
  %v2832 = vsel %vm2681, %v2831, %v2830
  %v2833 = vperm.slane %v2587, %v2683
  %v2834 = vsel %vm2685, %v2833, %v2832
  %v2835 = vperm.slane %v2590, %v2687
  %v2836 = vsel %vm2689, %v2835, %v2834
  %v2837 = vperm.slane %v2593, %v2691
  %v2838 = vsel %vm2693, %v2837, %v2836
  %v2839 = vperm.slane %v2596, %v2695
  %v2840 = vsel %vm2697, %v2839, %v2838
  %v2841 = vperm.slane %v2599, %v2699
  %v2842 = vsel %vm2701, %v2841, %v2840
  %v2843 = vperm.slane %v2602, %v2703
  %v2844 = vsel %vm2705, %v2843, %v2842
  %v2845 = vperm.slane %v2605, %v2707
  %v2846 = vsel %vm2709, %v2845, %v2844
  %v2847 = vperm.slane %v2608, %v2711
  %v2848 = vsel %vm2713, %v2847, %v2846
  %v2849 = vperm.slane %v2611, %v2715
  %v2850 = vsel %vm2717, %v2849, %v2848
  %v2851 = vperm.slane %v2614, %v2719
  %v2852 = vsel %vm2721, %v2851, %v2850
  %v2853 = vperm.slane %v2617, %v2723
  %v2854 = vsel %vm2725, %v2853, %v2852
  %v2855 = vperm.slane %v2620, %v2727
  %v2856 = vsel %vm2729, %v2855, %v2854
  %v2857 = vperm.slane %v2623, %v2731
  %v2858 = vsel %vm2733, %v2857, %v2856
  %v2859 = vperm.slane %v2626, %v2673
  %v2860 = vperm.slane %v2629, %v2675
  %v2861 = vsel %vm2677, %v2860, %v2859
  %v2862 = vperm.slane %v2632, %v2679
  %v2863 = vsel %vm2681, %v2862, %v2861
  %v2864 = vperm.slane %v2635, %v2683
  %v2865 = vsel %vm2685, %v2864, %v2863
  %v2866 = vperm.slane %v2638, %v2687
  %v2867 = vsel %vm2689, %v2866, %v2865
  %v2868 = vperm.slane %v2641, %v2691
  %v2869 = vsel %vm2693, %v2868, %v2867
  %v2870 = vperm.slane %v2644, %v2695
  %v2871 = vsel %vm2697, %v2870, %v2869
  %v2872 = vperm.slane %v2647, %v2699
  %v2873 = vsel %vm2701, %v2872, %v2871
  %v2874 = vperm.slane %v2650, %v2703
  %v2875 = vsel %vm2705, %v2874, %v2873
  %v2876 = vperm.slane %v2653, %v2707
  %v2877 = vsel %vm2709, %v2876, %v2875
  %v2878 = vperm.slane %v2656, %v2711
  %v2879 = vsel %vm2713, %v2878, %v2877
  %v2880 = vperm.slane %v2659, %v2715
  %v2881 = vsel %vm2717, %v2880, %v2879
  %v2882 = vperm.slane %v2662, %v2719
  %v2883 = vsel %vm2721, %v2882, %v2881
  %v2884 = vperm.slane %v2665, %v2723
  %v2885 = vsel %vm2725, %v2884, %v2883
  %v2886 = vperm.slane %v2668, %v2727
  %v2887 = vsel %vm2729, %v2886, %v2885
  %v2888 = vperm.slane %v2671, %v2731
  %v2889 = vsel %vm2733, %v2888, %v2887
  %v2890 = vsel %vm38, %v2827, %v2734
  %v2891 = vsel %vm38, %v2858, %v2765
  %v2892 = vsel %vm38, %v2889, %v2796
  %v2896 = vsel %vm23, %v2890, 0.0
  %v2897 = vsel %vm23, %v2891, 0.0
  %v2898 = vadd.f32 %v2896, %v2897
  %v2899 = vsel %vm23, %v2892, 0.0
  %v2900 = vadd.f32 %v2898, %v2899
  %2901 = vadd.xlane.f32.xlu0 %v2900
  %v2902 = vpop.xlane.xlu0 %2901
  %v2903 = vmax.f32 %v2902, 1e-24
  %v2904 = vrsqrt.pop %v2903
  %v2905 = vmul.f32 %v2904, %v2903
  %v2906 = vmul.f32 %v2905, %v2904
  %v2907 = vmul.f32 0.5, %v2906
  %v2908 = vsub.f32 1.5, %v2907
  %v2909 = vmul.f32 %v2904, %v2908
  %vm2910 = vweird.f32 %v2903
  %vm2911 = vweird.f32 %v2904
  %vm2912 = vmor %vm2910, %vm2911
  %v2913 = vsel %vm2912, %v2904, %v2909
  %v2915 = vperm.slane %v2913, 0
  %v2916 = vperm.slane %v2913, 1
  %v2919 = vmul.f32 %v2096, %v2915
  %v2920 = vmul.f32 %v2097, %v2915
  %v2921 = vmul.f32 %v2098, %v2915
  %v2922 = vmul.f32 %v2099, %v2915
  %v2923 = vmul.f32 %v2100, %v2915
  %v2924 = vmul.f32 %v2101, %v2915
  %v2925 = vmul.f32 %v2102, %v2915
  %v2926 = vmul.f32 %v2103, %v2915
  %v2927 = vmul.f32 %v2104, %v2915
  %v2928 = vmul.f32 %v2105, %v2915
  %v2929 = vmul.f32 %v2106, %v2915
  %v2930 = vmul.f32 %v2107, %v2915
  %v2931 = vmul.f32 %v2108, %v2915
  %v2932 = vmul.f32 %v2109, %v2915
  %v2933 = vmul.f32 %v2110, %v2915
  %v2934 = vmul.f32 %v2111, %v2915
  %v2935 = vmul.f32 %v2112, %v2915
  %v2936 = vmul.f32 %v2113, %v2915
  %v2937 = vmul.f32 %v2114, %v2915
  %v2938 = vmul.f32 %v2115, %v2915
  %v2939 = vmul.f32 %v2116, %v2915
  %v2940 = vmul.f32 %v2117, %v2915
  %v2941 = vmul.f32 %v2118, %v2915
  %v2942 = vmul.f32 %v2119, %v2915
  %v2943 = vmul.f32 %v2120, %v2915
  %v2944 = vmul.f32 %v2121, %v2915
  %v2945 = vmul.f32 %v2122, %v2915
  %v2946 = vmul.f32 %v2123, %v2915
  %v2947 = vmul.f32 %v2124, %v2915
  %v2948 = vmul.f32 %v2125, %v2915
  %v2949 = vmul.f32 %v2126, %v2915
  %v2950 = vmul.f32 %v2127, %v2915
  %v2951 = vmul.f32 %v2128, %v2915
  %v2952 = vmul.f32 %v2129, %v2915
  %v2953 = vmul.f32 %v2130, %v2915
  %v2954 = vmul.f32 %v2131, %v2915
  %v2955 = vmul.f32 %v2132, %v2915
  %v2956 = vmul.f32 %v2133, %v2915
  %v2957 = vmul.f32 %v2134, %v2915
  %v2958 = vmul.f32 %v2135, %v2915
  %v2959 = vmul.f32 %v2136, %v2915
  %v2960 = vmul.f32 %v2137, %v2915
  %v2961 = vmul.f32 %v2138, %v2915
  %v2962 = vmul.f32 %v2139, %v2915
  %v2963 = vmul.f32 %v2140, %v2915
  %v2964 = vmul.f32 %v2141, %v2915
  %v2965 = vmul.f32 %v2142, %v2915
  %v2966 = vmul.f32 %v2143, %v2915
  %v2967 = vmul.f32 %v2144, %v2916
  %v2968 = vmul.f32 %v2145, %v2916
  %v2969 = vmul.f32 %v2146, %v2916
  %v2970 = vmul.f32 %v2147, %v2916
  %v2971 = vmul.f32 %v2148, %v2916
  %v2972 = vmul.f32 %v2149, %v2916
  %v2973 = vmul.f32 %v2150, %v2916
  %v2974 = vmul.f32 %v2151, %v2916
  %v2975 = vmul.f32 %v2152, %v2916
  %v2976 = vmul.f32 %v2153, %v2916
  %v2977 = vmul.f32 %v2154, %v2916
  %v2978 = vmul.f32 %v2155, %v2916
  %v2979 = vmul.f32 %v2156, %v2916
  %v2980 = vmul.f32 %v2157, %v2916
  %v2981 = vmul.f32 %v2158, %v2916
  %v2982 = vmul.f32 %v2159, %v2916
  %v2983 = vmul.f32 %v2160, %v2916
  %v2984 = vmul.f32 %v2161, %v2916
  %v2985 = vmul.f32 %v2162, %v2916
  %v2986 = vmul.f32 %v2163, %v2916
  %v2987 = vmul.f32 %v2164, %v2916
  %v2988 = vmul.f32 %v2165, %v2916
  %v2989 = vmul.f32 %v2166, %v2916
  %v2990 = vmul.f32 %v2167, %v2916
  %v2991 = vmul.f32 %v2168, %v2916
  %v2992 = vmul.f32 %v2169, %v2916
  %v2993 = vmul.f32 %v2170, %v2916
  %v2994 = vmul.f32 %v2171, %v2916
  %v2995 = vmul.f32 %v2172, %v2916
  %v2996 = vmul.f32 %v2173, %v2916
  %v2997 = vmul.f32 %v2174, %v2916
  %v2998 = vmul.f32 %v2175, %v2916
  %v2999 = vmul.f32 %v2176, %v2916
  %v3000 = vmul.f32 %v2177, %v2916
  %v3001 = vmul.f32 %v2178, %v2916
  %v3002 = vmul.f32 %v2179, %v2916
  %v3003 = vmul.f32 %v2180, %v2916
  %v3004 = vmul.f32 %v2181, %v2916
  %v3005 = vmul.f32 %v2182, %v2916
  %v3006 = vmul.f32 %v2183, %v2916
  %v3007 = vmul.f32 %v2184, %v2916
  %v3008 = vmul.f32 %v2185, %v2916
  %v3009 = vmul.f32 %v2186, %v2916
  %v3010 = vmul.f32 %v2187, %v2916
  %v3011 = vmul.f32 %v2188, %v2916
  %v3012 = vmul.f32 %v2189, %v2916
  %v3013 = vmul.f32 %v2190, %v2916
  %v3014 = vmul.f32 %v2191, %v2916
  %v3111 = vrot.slane %v2919, 2
  %v3112 = vrot.slane %v2919, 4
  %v3113 = vrot.slane %v2919, 6
  %v3114 = vrot.slane %v2920, 2
  %v3115 = vrot.slane %v2920, 4
  %v3116 = vrot.slane %v2920, 6
  %v3117 = vrot.slane %v2921, 2
  %v3118 = vrot.slane %v2921, 4
  %v3119 = vrot.slane %v2921, 6
  %v3120 = vrot.slane %v2922, 2
  %v3121 = vrot.slane %v2922, 4
  %v3122 = vrot.slane %v2922, 6
  %v3123 = vrot.slane %v2923, 2
  %v3124 = vrot.slane %v2923, 4
  %v3125 = vrot.slane %v2923, 6
  %v3126 = vrot.slane %v2924, 2
  %v3127 = vrot.slane %v2924, 4
  %v3128 = vrot.slane %v2924, 6
  %v3129 = vrot.slane %v2925, 2
  %v3130 = vrot.slane %v2925, 4
  %v3131 = vrot.slane %v2925, 6
  %v3132 = vrot.slane %v2926, 2
  %v3133 = vrot.slane %v2926, 4
  %v3134 = vrot.slane %v2926, 6
  %v3135 = vrot.slane %v2927, 2
  %v3136 = vrot.slane %v2927, 4
  %v3137 = vrot.slane %v2927, 6
  %v3138 = vrot.slane %v2928, 2
  %v3139 = vrot.slane %v2928, 4
  %v3140 = vrot.slane %v2928, 6
  %v3141 = vrot.slane %v2929, 2
  %v3142 = vrot.slane %v2929, 4
  %v3143 = vrot.slane %v2929, 6
  %v3144 = vrot.slane %v2930, 2
  %v3145 = vrot.slane %v2930, 4
  %v3146 = vrot.slane %v2930, 6
  %v3147 = vrot.slane %v2931, 2
  %v3148 = vrot.slane %v2931, 4
  %v3149 = vrot.slane %v2931, 6
  %v3150 = vrot.slane %v2932, 2
  %v3151 = vrot.slane %v2932, 4
  %v3152 = vrot.slane %v2932, 6
  %v3153 = vrot.slane %v2933, 2
  %v3154 = vrot.slane %v2933, 4
  %v3155 = vrot.slane %v2933, 6
  %v3156 = vrot.slane %v2934, 2
  %v3157 = vrot.slane %v2934, 4
  %v3158 = vrot.slane %v2934, 6
  %v3159 = vrot.slane %v2935, 2
  %v3160 = vrot.slane %v2935, 4
  %v3161 = vrot.slane %v2935, 6
  %v3162 = vrot.slane %v2936, 2
  %v3163 = vrot.slane %v2936, 4
  %v3164 = vrot.slane %v2936, 6
  %v3165 = vrot.slane %v2937, 2
  %v3166 = vrot.slane %v2937, 4
  %v3167 = vrot.slane %v2937, 6
  %v3168 = vrot.slane %v2938, 2
  %v3169 = vrot.slane %v2938, 4
  %v3170 = vrot.slane %v2938, 6
  %v3171 = vrot.slane %v2939, 2
  %v3172 = vrot.slane %v2939, 4
  %v3173 = vrot.slane %v2939, 6
  %v3174 = vrot.slane %v2940, 2
  %v3175 = vrot.slane %v2940, 4
  %v3176 = vrot.slane %v2940, 6
  %v3177 = vrot.slane %v2941, 2
  %v3178 = vrot.slane %v2941, 4
  %v3179 = vrot.slane %v2941, 6
  %v3180 = vrot.slane %v2942, 2
  %v3181 = vrot.slane %v2942, 4
  %v3182 = vrot.slane %v2942, 6
  %v3183 = vrot.slane %v2943, 2
  %v3184 = vrot.slane %v2943, 4
  %v3185 = vrot.slane %v2943, 6
  %v3186 = vrot.slane %v2944, 2
  %v3187 = vrot.slane %v2944, 4
  %v3188 = vrot.slane %v2944, 6
  %v3189 = vrot.slane %v2945, 2
  %v3190 = vrot.slane %v2945, 4
  %v3191 = vrot.slane %v2945, 6
  %v3192 = vrot.slane %v2946, 2
  %v3193 = vrot.slane %v2946, 4
  %v3194 = vrot.slane %v2946, 6
  %v3195 = vrot.slane %v2947, 2
  %v3196 = vrot.slane %v2947, 4
  %v3197 = vrot.slane %v2947, 6
  %v3198 = vrot.slane %v2948, 2
  %v3199 = vrot.slane %v2948, 4
  %v3200 = vrot.slane %v2948, 6
  %v3201 = vrot.slane %v2949, 2
  %v3202 = vrot.slane %v2949, 4
  %v3203 = vrot.slane %v2949, 6
  %v3204 = vrot.slane %v2950, 2
  %v3205 = vrot.slane %v2950, 4
  %v3206 = vrot.slane %v2950, 6
  %v3207 = vrot.slane %v2951, 2
  %v3208 = vrot.slane %v2951, 4
  %v3209 = vrot.slane %v2951, 6
  %v3210 = vrot.slane %v2952, 2
  %v3211 = vrot.slane %v2952, 4
  %v3212 = vrot.slane %v2952, 6
  %v3213 = vrot.slane %v2953, 2
  %v3214 = vrot.slane %v2953, 4
  %v3215 = vrot.slane %v2953, 6
  %v3216 = vrot.slane %v2954, 2
  %v3217 = vrot.slane %v2954, 4
  %v3218 = vrot.slane %v2954, 6
  %v3219 = vrot.slane %v2955, 2
  %v3220 = vrot.slane %v2955, 4
  %v3221 = vrot.slane %v2955, 6
  %v3222 = vrot.slane %v2956, 2
  %v3223 = vrot.slane %v2956, 4
  %v3224 = vrot.slane %v2956, 6
  %v3225 = vrot.slane %v2957, 2
  %v3226 = vrot.slane %v2957, 4
  %v3227 = vrot.slane %v2957, 6
  %v3228 = vrot.slane %v2958, 2
  %v3229 = vrot.slane %v2958, 4
  %v3230 = vrot.slane %v2958, 6
  %v3231 = vrot.slane %v2959, 2
  %v3232 = vrot.slane %v2959, 4
  %v3233 = vrot.slane %v2959, 6
  %v3234 = vrot.slane %v2960, 2
  %v3235 = vrot.slane %v2960, 4
  %v3236 = vrot.slane %v2960, 6
  %v3237 = vrot.slane %v2961, 2
  %v3238 = vrot.slane %v2961, 4
  %v3239 = vrot.slane %v2961, 6
  %v3240 = vrot.slane %v2962, 2
  %v3241 = vrot.slane %v2962, 4
  %v3242 = vrot.slane %v2962, 6
  %v3243 = vrot.slane %v2963, 2
  %v3244 = vrot.slane %v2963, 4
  %v3245 = vrot.slane %v2963, 6
  %v3246 = vrot.slane %v2964, 2
  %v3247 = vrot.slane %v2964, 4
  %v3248 = vrot.slane %v2964, 6
  %v3249 = vrot.slane %v2965, 2
  %v3250 = vrot.slane %v2965, 4
  %v3251 = vrot.slane %v2965, 6
  %v3252 = vrot.slane %v2966, 2
  %v3253 = vrot.slane %v2966, 4
  %v3254 = vrot.slane %v2966, 6
  %v3255 = vrot.slane %v2967, 2
  %v3256 = vrot.slane %v2967, 4
  %v3257 = vrot.slane %v2967, 6
  %v3258 = vrot.slane %v2968, 2
  %v3259 = vrot.slane %v2968, 4
  %v3260 = vrot.slane %v2968, 6
  %v3261 = vrot.slane %v2969, 2
  %v3262 = vrot.slane %v2969, 4
  %v3263 = vrot.slane %v2969, 6
  %v3264 = vrot.slane %v2970, 2
  %v3265 = vrot.slane %v2970, 4
  %v3266 = vrot.slane %v2970, 6
  %v3267 = vrot.slane %v2971, 2
  %v3268 = vrot.slane %v2971, 4
  %v3269 = vrot.slane %v2971, 6
  %v3270 = vrot.slane %v2972, 2
  %v3271 = vrot.slane %v2972, 4
  %v3272 = vrot.slane %v2972, 6
  %v3273 = vrot.slane %v2973, 2
  %v3274 = vrot.slane %v2973, 4
  %v3275 = vrot.slane %v2973, 6
  %v3276 = vrot.slane %v2974, 2
  %v3277 = vrot.slane %v2974, 4
  %v3278 = vrot.slane %v2974, 6
  %v3279 = vrot.slane %v2975, 2
  %v3280 = vrot.slane %v2975, 4
  %v3281 = vrot.slane %v2975, 6
  %v3282 = vrot.slane %v2976, 2
  %v3283 = vrot.slane %v2976, 4
  %v3284 = vrot.slane %v2976, 6
  %v3285 = vrot.slane %v2977, 2
  %v3286 = vrot.slane %v2977, 4
  %v3287 = vrot.slane %v2977, 6
  %v3288 = vrot.slane %v2978, 2
  %v3289 = vrot.slane %v2978, 4
  %v3290 = vrot.slane %v2978, 6
  %v3291 = vrot.slane %v2979, 2
  %v3292 = vrot.slane %v2979, 4
  %v3293 = vrot.slane %v2979, 6
  %v3294 = vrot.slane %v2980, 2
  %v3295 = vrot.slane %v2980, 4
  %v3296 = vrot.slane %v2980, 6
  %v3297 = vrot.slane %v2981, 2
  %v3298 = vrot.slane %v2981, 4
  %v3299 = vrot.slane %v2981, 6
  %v3300 = vrot.slane %v2982, 2
  %v3301 = vrot.slane %v2982, 4
  %v3302 = vrot.slane %v2982, 6
  %v3303 = vrot.slane %v2983, 2
  %v3304 = vrot.slane %v2983, 4
  %v3305 = vrot.slane %v2983, 6
  %v3306 = vrot.slane %v2984, 2
  %v3307 = vrot.slane %v2984, 4
  %v3308 = vrot.slane %v2984, 6
  %v3309 = vrot.slane %v2985, 2
  %v3310 = vrot.slane %v2985, 4
  %v3311 = vrot.slane %v2985, 6
  %v3312 = vrot.slane %v2986, 2
  %v3313 = vrot.slane %v2986, 4
  %v3314 = vrot.slane %v2986, 6
  %v3315 = vrot.slane %v2987, 2
  %v3316 = vrot.slane %v2987, 4
  %v3317 = vrot.slane %v2987, 6
  %v3318 = vrot.slane %v2988, 2
  %v3319 = vrot.slane %v2988, 4
  %v3320 = vrot.slane %v2988, 6
  %v3321 = vrot.slane %v2989, 2
  %v3322 = vrot.slane %v2989, 4
  %v3323 = vrot.slane %v2989, 6
  %v3324 = vrot.slane %v2990, 2
  %v3325 = vrot.slane %v2990, 4
  %v3326 = vrot.slane %v2990, 6
  %v3327 = vrot.slane %v2991, 2
  %v3328 = vrot.slane %v2991, 4
  %v3329 = vrot.slane %v2991, 6
  %v3330 = vrot.slane %v2992, 2
  %v3331 = vrot.slane %v2992, 4
  %v3332 = vrot.slane %v2992, 6
  %v3333 = vrot.slane %v2993, 2
  %v3334 = vrot.slane %v2993, 4
  %v3335 = vrot.slane %v2993, 6
  %v3336 = vrot.slane %v2994, 2
  %v3337 = vrot.slane %v2994, 4
  %v3338 = vrot.slane %v2994, 6
  %v3339 = vrot.slane %v2995, 2
  %v3340 = vrot.slane %v2995, 4
  %v3341 = vrot.slane %v2995, 6
  %v3342 = vrot.slane %v2996, 2
  %v3343 = vrot.slane %v2996, 4
  %v3344 = vrot.slane %v2996, 6
  %v3345 = vrot.slane %v2997, 2
  %v3346 = vrot.slane %v2997, 4
  %v3347 = vrot.slane %v2997, 6
  %v3348 = vrot.slane %v2998, 2
  %v3349 = vrot.slane %v2998, 4
  %v3350 = vrot.slane %v2998, 6
  %v3351 = vrot.slane %v2999, 2
  %v3352 = vrot.slane %v2999, 4
  %v3353 = vrot.slane %v2999, 6
  %v3354 = vrot.slane %v3000, 2
  %v3355 = vrot.slane %v3000, 4
  %v3356 = vrot.slane %v3000, 6
  %v3357 = vrot.slane %v3001, 2
  %v3358 = vrot.slane %v3001, 4
  %v3359 = vrot.slane %v3001, 6
  %v3360 = vrot.slane %v3002, 2
  %v3361 = vrot.slane %v3002, 4
  %v3362 = vrot.slane %v3002, 6
  %v3363 = vrot.slane %v3003, 2
  %v3364 = vrot.slane %v3003, 4
  %v3365 = vrot.slane %v3003, 6
  %v3366 = vrot.slane %v3004, 2
  %v3367 = vrot.slane %v3004, 4
  %v3368 = vrot.slane %v3004, 6
  %v3369 = vrot.slane %v3005, 2
  %v3370 = vrot.slane %v3005, 4
  %v3371 = vrot.slane %v3005, 6
  %v3372 = vrot.slane %v3006, 2
  %v3373 = vrot.slane %v3006, 4
  %v3374 = vrot.slane %v3006, 6
  %v3375 = vrot.slane %v3007, 2
  %v3376 = vrot.slane %v3007, 4
  %v3377 = vrot.slane %v3007, 6
  %v3378 = vrot.slane %v3008, 2
  %v3379 = vrot.slane %v3008, 4
  %v3380 = vrot.slane %v3008, 6
  %v3381 = vrot.slane %v3009, 2
  %v3382 = vrot.slane %v3009, 4
  %v3383 = vrot.slane %v3009, 6
  %v3384 = vrot.slane %v3010, 2
  %v3385 = vrot.slane %v3010, 4
  %v3386 = vrot.slane %v3010, 6
  %v3387 = vrot.slane %v3011, 2
  %v3388 = vrot.slane %v3011, 4
  %v3389 = vrot.slane %v3011, 6
  %v3390 = vrot.slane %v3012, 2
  %v3391 = vrot.slane %v3012, 4
  %v3392 = vrot.slane %v3012, 6
  %v3393 = vrot.slane %v3013, 2
  %v3394 = vrot.slane %v3013, 4
  %v3395 = vrot.slane %v3013, 6
  %v3396 = vrot.slane %v3014, 2
  %v3397 = vrot.slane %v3014, 4
  %v3398 = vrot.slane %v3014, 6
  %3399 = vst [vmem:[#allocation1] ss:$4 sm:$0xff] %v2919
  %s3400 = scalar_lea.vmem [#allocation1], 1
  %3401 = vst [vmem:[%s3400] ss:$4 sm:$0xff] %v3111
  %s3402 = scalar_lea.vmem [#allocation1], 2
  %3403 = vst [vmem:[%s3402] ss:$4 sm:$0xff] %v3112
  %s3404 = scalar_lea.vmem [#allocation1], 3
  %3405 = vst [vmem:[%s3404] ss:$4 sm:$0xff] %v3113
  %s3406 = scalar_lea.vmem [#allocation1], 32
  %3407 = vst [vmem:[%s3406] ss:$4 sm:$0xff] %v2920
  %s3408 = scalar_lea.vmem [#allocation1], 33
  %3409 = vst [vmem:[%s3408] ss:$4 sm:$0xff] %v3114
  %s3410 = scalar_lea.vmem [#allocation1], 34
  %3411 = vst [vmem:[%s3410] ss:$4 sm:$0xff] %v3115
  %s3412 = scalar_lea.vmem [#allocation1], 35
  %3413 = vst [vmem:[%s3412] ss:$4 sm:$0xff] %v3116
  %v3414 = vld.sshfl [vmem:[#allocation1] sm:$0xff pattern:$0x73625140]
  %v3415 = vld.sshfl [vmem:[#allocation1 + $0x20] sm:$0xff pattern:$0x73625140]
  %3416 = vst [vmem:[#allocation1] ss:$4 sm:$0xff] %v2921
  %3417 = vst [vmem:[%s3400] ss:$4 sm:$0xff] %v3117
  %3418 = vst [vmem:[%s3402] ss:$4 sm:$0xff] %v3118
  %3419 = vst [vmem:[%s3404] ss:$4 sm:$0xff] %v3119
  %3420 = vst [vmem:[%s3406] ss:$4 sm:$0xff] %v2922
  %3421 = vst [vmem:[%s3408] ss:$4 sm:$0xff] %v3120
  %3422 = vst [vmem:[%s3410] ss:$4 sm:$0xff] %v3121
  %3423 = vst [vmem:[%s3412] ss:$4 sm:$0xff] %v3122
  %v3424 = vld.sshfl [vmem:[#allocation1] sm:$0xff pattern:$0x73625140]
  %v3425 = vld.sshfl [vmem:[#allocation1 + $0x20] sm:$0xff pattern:$0x73625140]
  %3426 = vst [vmem:[#allocation1] ss:$4 sm:$0xff] %v2923
  %3427 = vst [vmem:[%s3400] ss:$4 sm:$0xff] %v3123
  %3428 = vst [vmem:[%s3402] ss:$4 sm:$0xff] %v3124
  %3429 = vst [vmem:[%s3404] ss:$4 sm:$0xff] %v3125
  %3430 = vst [vmem:[%s3406] ss:$4 sm:$0xff] %v2924
  %3431 = vst [vmem:[%s3408] ss:$4 sm:$0xff] %v3126
  %3432 = vst [vmem:[%s3410] ss:$4 sm:$0xff] %v3127
  %3433 = vst [vmem:[%s3412] ss:$4 sm:$0xff] %v3128
  %v3434 = vld.sshfl [vmem:[#allocation1] sm:$0xff pattern:$0x73625140]
  %v3435 = vld.sshfl [vmem:[#allocation1 + $0x20] sm:$0xff pattern:$0x73625140]
  %3436 = vst [vmem:[#allocation1] ss:$4 sm:$0xff] %v2925
  %3437 = vst [vmem:[%s3400] ss:$4 sm:$0xff] %v3129
  %3438 = vst [vmem:[%s3402] ss:$4 sm:$0xff] %v3130
  %3439 = vst [vmem:[%s3404] ss:$4 sm:$0xff] %v3131
  %3440 = vst [vmem:[%s3406] ss:$4 sm:$0xff] %v2926
  %3441 = vst [vmem:[%s3408] ss:$4 sm:$0xff] %v3132
  %3442 = vst [vmem:[%s3410] ss:$4 sm:$0xff] %v3133
  %3443 = vst [vmem:[%s3412] ss:$4 sm:$0xff] %v3134
  %v3444 = vld.sshfl [vmem:[#allocation1] sm:$0xff pattern:$0x73625140]
  %v3445 = vld.sshfl [vmem:[#allocation1 + $0x20] sm:$0xff pattern:$0x73625140]
  %3446 = vst [vmem:[#allocation1] ss:$4 sm:$0xff] %v2927
  %3447 = vst [vmem:[%s3400] ss:$4 sm:$0xff] %v3135
  %3448 = vst [vmem:[%s3402] ss:$4 sm:$0xff] %v3136
  %3449 = vst [vmem:[%s3404] ss:$4 sm:$0xff] %v3137
  %3450 = vst [vmem:[%s3406] ss:$4 sm:$0xff] %v2928
  %3451 = vst [vmem:[%s3408] ss:$4 sm:$0xff] %v3138
  %3452 = vst [vmem:[%s3410] ss:$4 sm:$0xff] %v3139
  %3453 = vst [vmem:[%s3412] ss:$4 sm:$0xff] %v3140
  %v3454 = vld.sshfl [vmem:[#allocation1] sm:$0xff pattern:$0x73625140]
  %v3455 = vld.sshfl [vmem:[#allocation1 + $0x20] sm:$0xff pattern:$0x73625140]
  %3456 = vst [vmem:[#allocation1] ss:$4 sm:$0xff] %v2929
  %3457 = vst [vmem:[%s3400] ss:$4 sm:$0xff] %v3141
  %3458 = vst [vmem:[%s3402] ss:$4 sm:$0xff] %v3142
  %3459 = vst [vmem:[%s3404] ss:$4 sm:$0xff] %v3143
  %3460 = vst [vmem:[%s3406] ss:$4 sm:$0xff] %v2930
  %3461 = vst [vmem:[%s3408] ss:$4 sm:$0xff] %v3144
  %3462 = vst [vmem:[%s3410] ss:$4 sm:$0xff] %v3145
  %3463 = vst [vmem:[%s3412] ss:$4 sm:$0xff] %v3146
  %v3464 = vld.sshfl [vmem:[#allocation1] sm:$0xff pattern:$0x73625140]
  %v3465 = vld.sshfl [vmem:[#allocation1 + $0x20] sm:$0xff pattern:$0x73625140]
  %3466 = vst [vmem:[#allocation1] ss:$4 sm:$0xff] %v2931
  %3467 = vst [vmem:[%s3400] ss:$4 sm:$0xff] %v3147
  %3468 = vst [vmem:[%s3402] ss:$4 sm:$0xff] %v3148
  %3469 = vst [vmem:[%s3404] ss:$4 sm:$0xff] %v3149
  %3470 = vst [vmem:[%s3406] ss:$4 sm:$0xff] %v2932
  %3471 = vst [vmem:[%s3408] ss:$4 sm:$0xff] %v3150
  %3472 = vst [vmem:[%s3410] ss:$4 sm:$0xff] %v3151
  %3473 = vst [vmem:[%s3412] ss:$4 sm:$0xff] %v3152
  %v3474 = vld.sshfl [vmem:[#allocation1] sm:$0xff pattern:$0x73625140]
  %v3475 = vld.sshfl [vmem:[#allocation1 + $0x20] sm:$0xff pattern:$0x73625140]
  %3476 = vst [vmem:[#allocation1] ss:$4 sm:$0xff] %v2933
  %3477 = vst [vmem:[%s3400] ss:$4 sm:$0xff] %v3153
  %3478 = vst [vmem:[%s3402] ss:$4 sm:$0xff] %v3154
  %3479 = vst [vmem:[%s3404] ss:$4 sm:$0xff] %v3155
  %3480 = vst [vmem:[%s3406] ss:$4 sm:$0xff] %v2934
  %3481 = vst [vmem:[%s3408] ss:$4 sm:$0xff] %v3156
  %3482 = vst [vmem:[%s3410] ss:$4 sm:$0xff] %v3157
  %3483 = vst [vmem:[%s3412] ss:$4 sm:$0xff] %v3158
  %v3484 = vld.sshfl [vmem:[#allocation1] sm:$0xff pattern:$0x73625140]
  %v3485 = vld.sshfl [vmem:[#allocation1 + $0x20] sm:$0xff pattern:$0x73625140]
  %3486 = vst [vmem:[#allocation1] ss:$4 sm:$0xff] %v2935
  %3487 = vst [vmem:[%s3400] ss:$4 sm:$0xff] %v3159
  %3488 = vst [vmem:[%s3402] ss:$4 sm:$0xff] %v3160
  %3489 = vst [vmem:[%s3404] ss:$4 sm:$0xff] %v3161
  %3490 = vst [vmem:[%s3406] ss:$4 sm:$0xff] %v2936
  %3491 = vst [vmem:[%s3408] ss:$4 sm:$0xff] %v3162
  %3492 = vst [vmem:[%s3410] ss:$4 sm:$0xff] %v3163
  %3493 = vst [vmem:[%s3412] ss:$4 sm:$0xff] %v3164
  %v3494 = vld.sshfl [vmem:[#allocation1] sm:$0xff pattern:$0x73625140]
  %v3495 = vld.sshfl [vmem:[#allocation1 + $0x20] sm:$0xff pattern:$0x73625140]
  %3496 = vst [vmem:[#allocation1] ss:$4 sm:$0xff] %v2937
  %3497 = vst [vmem:[%s3400] ss:$4 sm:$0xff] %v3165
  %3498 = vst [vmem:[%s3402] ss:$4 sm:$0xff] %v3166
  %3499 = vst [vmem:[%s3404] ss:$4 sm:$0xff] %v3167
  %3500 = vst [vmem:[%s3406] ss:$4 sm:$0xff] %v2938
  %3501 = vst [vmem:[%s3408] ss:$4 sm:$0xff] %v3168
  %3502 = vst [vmem:[%s3410] ss:$4 sm:$0xff] %v3169
  %3503 = vst [vmem:[%s3412] ss:$4 sm:$0xff] %v3170
  %v3504 = vld.sshfl [vmem:[#allocation1] sm:$0xff pattern:$0x73625140]
  %v3505 = vld.sshfl [vmem:[#allocation1 + $0x20] sm:$0xff pattern:$0x73625140]
  %3506 = vst [vmem:[#allocation1] ss:$4 sm:$0xff] %v2939
  %3507 = vst [vmem:[%s3400] ss:$4 sm:$0xff] %v3171
  %3508 = vst [vmem:[%s3402] ss:$4 sm:$0xff] %v3172
  %3509 = vst [vmem:[%s3404] ss:$4 sm:$0xff] %v3173
  %3510 = vst [vmem:[%s3406] ss:$4 sm:$0xff] %v2940
  %3511 = vst [vmem:[%s3408] ss:$4 sm:$0xff] %v3174
  %3512 = vst [vmem:[%s3410] ss:$4 sm:$0xff] %v3175
  %3513 = vst [vmem:[%s3412] ss:$4 sm:$0xff] %v3176
  %v3514 = vld.sshfl [vmem:[#allocation1] sm:$0xff pattern:$0x73625140]
  %v3515 = vld.sshfl [vmem:[#allocation1 + $0x20] sm:$0xff pattern:$0x73625140]
  %3516 = vst [vmem:[#allocation1] ss:$4 sm:$0xff] %v2941
  %3517 = vst [vmem:[%s3400] ss:$4 sm:$0xff] %v3177
  %3518 = vst [vmem:[%s3402] ss:$4 sm:$0xff] %v3178
  %3519 = vst [vmem:[%s3404] ss:$4 sm:$0xff] %v3179
  %3520 = vst [vmem:[%s3406] ss:$4 sm:$0xff] %v2942
  %3521 = vst [vmem:[%s3408] ss:$4 sm:$0xff] %v3180
  %3522 = vst [vmem:[%s3410] ss:$4 sm:$0xff] %v3181
  %3523 = vst [vmem:[%s3412] ss:$4 sm:$0xff] %v3182
  %v3524 = vld.sshfl [vmem:[#allocation1] sm:$0xff pattern:$0x73625140]
  %v3525 = vld.sshfl [vmem:[#allocation1 + $0x20] sm:$0xff pattern:$0x73625140]
  %3526 = vst [vmem:[#allocation1] ss:$4 sm:$0xff] %v2943
  %3527 = vst [vmem:[%s3400] ss:$4 sm:$0xff] %v3183
  %3528 = vst [vmem:[%s3402] ss:$4 sm:$0xff] %v3184
  %3529 = vst [vmem:[%s3404] ss:$4 sm:$0xff] %v3185
  %3530 = vst [vmem:[%s3406] ss:$4 sm:$0xff] %v2944
  %3531 = vst [vmem:[%s3408] ss:$4 sm:$0xff] %v3186
  %3532 = vst [vmem:[%s3410] ss:$4 sm:$0xff] %v3187
  %3533 = vst [vmem:[%s3412] ss:$4 sm:$0xff] %v3188
  %v3534 = vld.sshfl [vmem:[#allocation1] sm:$0xff pattern:$0x73625140]
  %v3535 = vld.sshfl [vmem:[#allocation1 + $0x20] sm:$0xff pattern:$0x73625140]
  %3536 = vst [vmem:[#allocation1] ss:$4 sm:$0xff] %v2945
  %3537 = vst [vmem:[%s3400] ss:$4 sm:$0xff] %v3189
  %3538 = vst [vmem:[%s3402] ss:$4 sm:$0xff] %v3190
  %3539 = vst [vmem:[%s3404] ss:$4 sm:$0xff] %v3191
  %3540 = vst [vmem:[%s3406] ss:$4 sm:$0xff] %v2946
  %3541 = vst [vmem:[%s3408] ss:$4 sm:$0xff] %v3192
  %3542 = vst [vmem:[%s3410] ss:$4 sm:$0xff] %v3193
  %3543 = vst [vmem:[%s3412] ss:$4 sm:$0xff] %v3194
  %v3544 = vld.sshfl [vmem:[#allocation1] sm:$0xff pattern:$0x73625140]
  %v3545 = vld.sshfl [vmem:[#allocation1 + $0x20] sm:$0xff pattern:$0x73625140]
  %3546 = vst [vmem:[#allocation1] ss:$4 sm:$0xff] %v2947
  %3547 = vst [vmem:[%s3400] ss:$4 sm:$0xff] %v3195
  %3548 = vst [vmem:[%s3402] ss:$4 sm:$0xff] %v3196
  %3549 = vst [vmem:[%s3404] ss:$4 sm:$0xff] %v3197
  %3550 = vst [vmem:[%s3406] ss:$4 sm:$0xff] %v2948
  %3551 = vst [vmem:[%s3408] ss:$4 sm:$0xff] %v3198
  %3552 = vst [vmem:[%s3410] ss:$4 sm:$0xff] %v3199
  %3553 = vst [vmem:[%s3412] ss:$4 sm:$0xff] %v3200
  %v3554 = vld.sshfl [vmem:[#allocation1] sm:$0xff pattern:$0x73625140]
  %v3555 = vld.sshfl [vmem:[#allocation1 + $0x20] sm:$0xff pattern:$0x73625140]
  %3556 = vst [vmem:[#allocation1] ss:$4 sm:$0xff] %v2949
  %3557 = vst [vmem:[%s3400] ss:$4 sm:$0xff] %v3201
  %3558 = vst [vmem:[%s3402] ss:$4 sm:$0xff] %v3202
  %3559 = vst [vmem:[%s3404] ss:$4 sm:$0xff] %v3203
  %3560 = vst [vmem:[%s3406] ss:$4 sm:$0xff] %v2950
  %3561 = vst [vmem:[%s3408] ss:$4 sm:$0xff] %v3204
  %3562 = vst [vmem:[%s3410] ss:$4 sm:$0xff] %v3205
  %3563 = vst [vmem:[%s3412] ss:$4 sm:$0xff] %v3206
  %v3564 = vld.sshfl [vmem:[#allocation1] sm:$0xff pattern:$0x73625140]
  %v3565 = vld.sshfl [vmem:[#allocation1 + $0x20] sm:$0xff pattern:$0x73625140]
  %3566 = vst [vmem:[#allocation1] ss:$4 sm:$0xff] %v2951
  %3567 = vst [vmem:[%s3400] ss:$4 sm:$0xff] %v3207
  %3568 = vst [vmem:[%s3402] ss:$4 sm:$0xff] %v3208
  %3569 = vst [vmem:[%s3404] ss:$4 sm:$0xff] %v3209
  %3570 = vst [vmem:[%s3406] ss:$4 sm:$0xff] %v2952
  %3571 = vst [vmem:[%s3408] ss:$4 sm:$0xff] %v3210
  %3572 = vst [vmem:[%s3410] ss:$4 sm:$0xff] %v3211
  %3573 = vst [vmem:[%s3412] ss:$4 sm:$0xff] %v3212
  %v3574 = vld.sshfl [vmem:[#allocation1] sm:$0xff pattern:$0x73625140]
  %v3575 = vld.sshfl [vmem:[#allocation1 + $0x20] sm:$0xff pattern:$0x73625140]
  %3576 = vst [vmem:[#allocation1] ss:$4 sm:$0xff] %v2953
  %3577 = vst [vmem:[%s3400] ss:$4 sm:$0xff] %v3213
  %3578 = vst [vmem:[%s3402] ss:$4 sm:$0xff] %v3214
  %3579 = vst [vmem:[%s3404] ss:$4 sm:$0xff] %v3215
  %3580 = vst [vmem:[%s3406] ss:$4 sm:$0xff] %v2954
  %3581 = vst [vmem:[%s3408] ss:$4 sm:$0xff] %v3216
  %3582 = vst [vmem:[%s3410] ss:$4 sm:$0xff] %v3217
  %3583 = vst [vmem:[%s3412] ss:$4 sm:$0xff] %v3218
  %v3584 = vld.sshfl [vmem:[#allocation1] sm:$0xff pattern:$0x73625140]
  %v3585 = vld.sshfl [vmem:[#allocation1 + $0x20] sm:$0xff pattern:$0x73625140]
  %3586 = vst [vmem:[#allocation1] ss:$4 sm:$0xff] %v2955
  %3587 = vst [vmem:[%s3400] ss:$4 sm:$0xff] %v3219
  %3588 = vst [vmem:[%s3402] ss:$4 sm:$0xff] %v3220
  %3589 = vst [vmem:[%s3404] ss:$4 sm:$0xff] %v3221
  %3590 = vst [vmem:[%s3406] ss:$4 sm:$0xff] %v2956
  %3591 = vst [vmem:[%s3408] ss:$4 sm:$0xff] %v3222
  %3592 = vst [vmem:[%s3410] ss:$4 sm:$0xff] %v3223
  %3593 = vst [vmem:[%s3412] ss:$4 sm:$0xff] %v3224
  %v3594 = vld.sshfl [vmem:[#allocation1] sm:$0xff pattern:$0x73625140]
  %v3595 = vld.sshfl [vmem:[#allocation1 + $0x20] sm:$0xff pattern:$0x73625140]
  %3596 = vst [vmem:[#allocation1] ss:$4 sm:$0xff] %v2957
  %3597 = vst [vmem:[%s3400] ss:$4 sm:$0xff] %v3225
  %3598 = vst [vmem:[%s3402] ss:$4 sm:$0xff] %v3226
  %3599 = vst [vmem:[%s3404] ss:$4 sm:$0xff] %v3227
  %3600 = vst [vmem:[%s3406] ss:$4 sm:$0xff] %v2958
  %3601 = vst [vmem:[%s3408] ss:$4 sm:$0xff] %v3228
  %3602 = vst [vmem:[%s3410] ss:$4 sm:$0xff] %v3229
  %3603 = vst [vmem:[%s3412] ss:$4 sm:$0xff] %v3230
  %v3604 = vld.sshfl [vmem:[#allocation1] sm:$0xff pattern:$0x73625140]
  %v3605 = vld.sshfl [vmem:[#allocation1 + $0x20] sm:$0xff pattern:$0x73625140]
  %3606 = vst [vmem:[#allocation1] ss:$4 sm:$0xff] %v2959
  %3607 = vst [vmem:[%s3400] ss:$4 sm:$0xff] %v3231
  %3608 = vst [vmem:[%s3402] ss:$4 sm:$0xff] %v3232
  %3609 = vst [vmem:[%s3404] ss:$4 sm:$0xff] %v3233
  %3610 = vst [vmem:[%s3406] ss:$4 sm:$0xff] %v2960
  %3611 = vst [vmem:[%s3408] ss:$4 sm:$0xff] %v3234
  %3612 = vst [vmem:[%s3410] ss:$4 sm:$0xff] %v3235
  %3613 = vst [vmem:[%s3412] ss:$4 sm:$0xff] %v3236
  %v3614 = vld.sshfl [vmem:[#allocation1] sm:$0xff pattern:$0x73625140]
  %v3615 = vld.sshfl [vmem:[#allocation1 + $0x20] sm:$0xff pattern:$0x73625140]
  %3616 = vst [vmem:[#allocation1] ss:$4 sm:$0xff] %v2961
  %3617 = vst [vmem:[%s3400] ss:$4 sm:$0xff] %v3237
  %3618 = vst [vmem:[%s3402] ss:$4 sm:$0xff] %v3238
  %3619 = vst [vmem:[%s3404] ss:$4 sm:$0xff] %v3239
  %3620 = vst [vmem:[%s3406] ss:$4 sm:$0xff] %v2962
  %3621 = vst [vmem:[%s3408] ss:$4 sm:$0xff] %v3240
  %3622 = vst [vmem:[%s3410] ss:$4 sm:$0xff] %v3241
  %3623 = vst [vmem:[%s3412] ss:$4 sm:$0xff] %v3242
  %v3624 = vld.sshfl [vmem:[#allocation1] sm:$0xff pattern:$0x73625140]
  %v3625 = vld.sshfl [vmem:[#allocation1 + $0x20] sm:$0xff pattern:$0x73625140]
  %3626 = vst [vmem:[#allocation1] ss:$4 sm:$0xff] %v2963
  %3627 = vst [vmem:[%s3400] ss:$4 sm:$0xff] %v3243
  %3628 = vst [vmem:[%s3402] ss:$4 sm:$0xff] %v3244
  %3629 = vst [vmem:[%s3404] ss:$4 sm:$0xff] %v3245
  %3630 = vst [vmem:[%s3406] ss:$4 sm:$0xff] %v2964
  %3631 = vst [vmem:[%s3408] ss:$4 sm:$0xff] %v3246
  %3632 = vst [vmem:[%s3410] ss:$4 sm:$0xff] %v3247
  %3633 = vst [vmem:[%s3412] ss:$4 sm:$0xff] %v3248
  %v3634 = vld.sshfl [vmem:[#allocation1] sm:$0xff pattern:$0x73625140]
  %v3635 = vld.sshfl [vmem:[#allocation1 + $0x20] sm:$0xff pattern:$0x73625140]
  %3636 = vst [vmem:[#allocation1] ss:$4 sm:$0xff] %v2965
  %3637 = vst [vmem:[%s3400] ss:$4 sm:$0xff] %v3249
  %3638 = vst [vmem:[%s3402] ss:$4 sm:$0xff] %v3250
  %3639 = vst [vmem:[%s3404] ss:$4 sm:$0xff] %v3251
  %3640 = vst [vmem:[%s3406] ss:$4 sm:$0xff] %v2966
  %3641 = vst [vmem:[%s3408] ss:$4 sm:$0xff] %v3252
  %3642 = vst [vmem:[%s3410] ss:$4 sm:$0xff] %v3253
  %3643 = vst [vmem:[%s3412] ss:$4 sm:$0xff] %v3254
  %v3644 = vld.sshfl [vmem:[#allocation1] sm:$0xff pattern:$0x73625140]
  %v3645 = vld.sshfl [vmem:[#allocation1 + $0x20] sm:$0xff pattern:$0x73625140]
  %3646 = vst [vmem:[#allocation1] ss:$4 sm:$0xff] %v2967
  %3647 = vst [vmem:[%s3400] ss:$4 sm:$0xff] %v3255
  %3648 = vst [vmem:[%s3402] ss:$4 sm:$0xff] %v3256
  %3649 = vst [vmem:[%s3404] ss:$4 sm:$0xff] %v3257
  %3650 = vst [vmem:[%s3406] ss:$4 sm:$0xff] %v2968
  %3651 = vst [vmem:[%s3408] ss:$4 sm:$0xff] %v3258
  %3652 = vst [vmem:[%s3410] ss:$4 sm:$0xff] %v3259
  %3653 = vst [vmem:[%s3412] ss:$4 sm:$0xff] %v3260
  %v3654 = vld.sshfl [vmem:[#allocation1] sm:$0xff pattern:$0x73625140]
  %v3655 = vld.sshfl [vmem:[#allocation1 + $0x20] sm:$0xff pattern:$0x73625140]
  %3656 = vst [vmem:[#allocation1] ss:$4 sm:$0xff] %v2969
  %3657 = vst [vmem:[%s3400] ss:$4 sm:$0xff] %v3261
  %3658 = vst [vmem:[%s3402] ss:$4 sm:$0xff] %v3262
  %3659 = vst [vmem:[%s3404] ss:$4 sm:$0xff] %v3263
  %3660 = vst [vmem:[%s3406] ss:$4 sm:$0xff] %v2970
  %3661 = vst [vmem:[%s3408] ss:$4 sm:$0xff] %v3264
  %3662 = vst [vmem:[%s3410] ss:$4 sm:$0xff] %v3265
  %3663 = vst [vmem:[%s3412] ss:$4 sm:$0xff] %v3266
  %v3664 = vld.sshfl [vmem:[#allocation1] sm:$0xff pattern:$0x73625140]
  %v3665 = vld.sshfl [vmem:[#allocation1 + $0x20] sm:$0xff pattern:$0x73625140]
  %3666 = vst [vmem:[#allocation1] ss:$4 sm:$0xff] %v2971
  %3667 = vst [vmem:[%s3400] ss:$4 sm:$0xff] %v3267
  %3668 = vst [vmem:[%s3402] ss:$4 sm:$0xff] %v3268
  %3669 = vst [vmem:[%s3404] ss:$4 sm:$0xff] %v3269
  %3670 = vst [vmem:[%s3406] ss:$4 sm:$0xff] %v2972
  %3671 = vst [vmem:[%s3408] ss:$4 sm:$0xff] %v3270
  %3672 = vst [vmem:[%s3410] ss:$4 sm:$0xff] %v3271
  %3673 = vst [vmem:[%s3412] ss:$4 sm:$0xff] %v3272
  %v3674 = vld.sshfl [vmem:[#allocation1] sm:$0xff pattern:$0x73625140]
  %v3675 = vld.sshfl [vmem:[#allocation1 + $0x20] sm:$0xff pattern:$0x73625140]
  %3676 = vst [vmem:[#allocation1] ss:$4 sm:$0xff] %v2973
  %3677 = vst [vmem:[%s3400] ss:$4 sm:$0xff] %v3273
  %3678 = vst [vmem:[%s3402] ss:$4 sm:$0xff] %v3274
  %3679 = vst [vmem:[%s3404] ss:$4 sm:$0xff] %v3275
  %3680 = vst [vmem:[%s3406] ss:$4 sm:$0xff] %v2974
  %3681 = vst [vmem:[%s3408] ss:$4 sm:$0xff] %v3276
  %3682 = vst [vmem:[%s3410] ss:$4 sm:$0xff] %v3277
  %3683 = vst [vmem:[%s3412] ss:$4 sm:$0xff] %v3278
  %v3684 = vld.sshfl [vmem:[#allocation1] sm:$0xff pattern:$0x73625140]
  %v3685 = vld.sshfl [vmem:[#allocation1 + $0x20] sm:$0xff pattern:$0x73625140]
  %3686 = vst [vmem:[#allocation1] ss:$4 sm:$0xff] %v2975
  %3687 = vst [vmem:[%s3400] ss:$4 sm:$0xff] %v3279
  %3688 = vst [vmem:[%s3402] ss:$4 sm:$0xff] %v3280
  %3689 = vst [vmem:[%s3404] ss:$4 sm:$0xff] %v3281
  %3690 = vst [vmem:[%s3406] ss:$4 sm:$0xff] %v2976
  %3691 = vst [vmem:[%s3408] ss:$4 sm:$0xff] %v3282
  %3692 = vst [vmem:[%s3410] ss:$4 sm:$0xff] %v3283
  %3693 = vst [vmem:[%s3412] ss:$4 sm:$0xff] %v3284
  %v3694 = vld.sshfl [vmem:[#allocation1] sm:$0xff pattern:$0x73625140]
  %v3695 = vld.sshfl [vmem:[#allocation1 + $0x20] sm:$0xff pattern:$0x73625140]
  %3696 = vst [vmem:[#allocation1] ss:$4 sm:$0xff] %v2977
  %3697 = vst [vmem:[%s3400] ss:$4 sm:$0xff] %v3285
  %3698 = vst [vmem:[%s3402] ss:$4 sm:$0xff] %v3286
  %3699 = vst [vmem:[%s3404] ss:$4 sm:$0xff] %v3287
  %3700 = vst [vmem:[%s3406] ss:$4 sm:$0xff] %v2978
  %3701 = vst [vmem:[%s3408] ss:$4 sm:$0xff] %v3288
  %3702 = vst [vmem:[%s3410] ss:$4 sm:$0xff] %v3289
  %3703 = vst [vmem:[%s3412] ss:$4 sm:$0xff] %v3290
  %v3704 = vld.sshfl [vmem:[#allocation1] sm:$0xff pattern:$0x73625140]
  %v3705 = vld.sshfl [vmem:[#allocation1 + $0x20] sm:$0xff pattern:$0x73625140]
  %3706 = vst [vmem:[#allocation1] ss:$4 sm:$0xff] %v2979
  %3707 = vst [vmem:[%s3400] ss:$4 sm:$0xff] %v3291
  %3708 = vst [vmem:[%s3402] ss:$4 sm:$0xff] %v3292
  %3709 = vst [vmem:[%s3404] ss:$4 sm:$0xff] %v3293
  %3710 = vst [vmem:[%s3406] ss:$4 sm:$0xff] %v2980
  %3711 = vst [vmem:[%s3408] ss:$4 sm:$0xff] %v3294
  %3712 = vst [vmem:[%s3410] ss:$4 sm:$0xff] %v3295
  %3713 = vst [vmem:[%s3412] ss:$4 sm:$0xff] %v3296
  %v3714 = vld.sshfl [vmem:[#allocation1] sm:$0xff pattern:$0x73625140]
  %v3715 = vld.sshfl [vmem:[#allocation1 + $0x20] sm:$0xff pattern:$0x73625140]
  %3716 = vst [vmem:[#allocation1] ss:$4 sm:$0xff] %v2981
  %3717 = vst [vmem:[%s3400] ss:$4 sm:$0xff] %v3297
  %3718 = vst [vmem:[%s3402] ss:$4 sm:$0xff] %v3298
  %3719 = vst [vmem:[%s3404] ss:$4 sm:$0xff] %v3299
  %3720 = vst [vmem:[%s3406] ss:$4 sm:$0xff] %v2982
  %3721 = vst [vmem:[%s3408] ss:$4 sm:$0xff] %v3300
  %3722 = vst [vmem:[%s3410] ss:$4 sm:$0xff] %v3301
  %3723 = vst [vmem:[%s3412] ss:$4 sm:$0xff] %v3302
  %v3724 = vld.sshfl [vmem:[#allocation1] sm:$0xff pattern:$0x73625140]
  %v3725 = vld.sshfl [vmem:[#allocation1 + $0x20] sm:$0xff pattern:$0x73625140]
  %3726 = vst [vmem:[#allocation1] ss:$4 sm:$0xff] %v2983
  %3727 = vst [vmem:[%s3400] ss:$4 sm:$0xff] %v3303
  %3728 = vst [vmem:[%s3402] ss:$4 sm:$0xff] %v3304
  %3729 = vst [vmem:[%s3404] ss:$4 sm:$0xff] %v3305
  %3730 = vst [vmem:[%s3406] ss:$4 sm:$0xff] %v2984
  %3731 = vst [vmem:[%s3408] ss:$4 sm:$0xff] %v3306
  %3732 = vst [vmem:[%s3410] ss:$4 sm:$0xff] %v3307
  %3733 = vst [vmem:[%s3412] ss:$4 sm:$0xff] %v3308
  %v3734 = vld.sshfl [vmem:[#allocation1] sm:$0xff pattern:$0x73625140]
  %v3735 = vld.sshfl [vmem:[#allocation1 + $0x20] sm:$0xff pattern:$0x73625140]
  %3736 = vst [vmem:[#allocation1] ss:$4 sm:$0xff] %v2985
  %3737 = vst [vmem:[%s3400] ss:$4 sm:$0xff] %v3309
  %3738 = vst [vmem:[%s3402] ss:$4 sm:$0xff] %v3310
  %3739 = vst [vmem:[%s3404] ss:$4 sm:$0xff] %v3311
  %3740 = vst [vmem:[%s3406] ss:$4 sm:$0xff] %v2986
  %3741 = vst [vmem:[%s3408] ss:$4 sm:$0xff] %v3312
  %3742 = vst [vmem:[%s3410] ss:$4 sm:$0xff] %v3313
  %3743 = vst [vmem:[%s3412] ss:$4 sm:$0xff] %v3314
  %v3744 = vld.sshfl [vmem:[#allocation1] sm:$0xff pattern:$0x73625140]
  %v3745 = vld.sshfl [vmem:[#allocation1 + $0x20] sm:$0xff pattern:$0x73625140]
  %3746 = vst [vmem:[#allocation1] ss:$4 sm:$0xff] %v2987
  %3747 = vst [vmem:[%s3400] ss:$4 sm:$0xff] %v3315
  %3748 = vst [vmem:[%s3402] ss:$4 sm:$0xff] %v3316
  %3749 = vst [vmem:[%s3404] ss:$4 sm:$0xff] %v3317
  %3750 = vst [vmem:[%s3406] ss:$4 sm:$0xff] %v2988
  %3751 = vst [vmem:[%s3408] ss:$4 sm:$0xff] %v3318
  %3752 = vst [vmem:[%s3410] ss:$4 sm:$0xff] %v3319
  %3753 = vst [vmem:[%s3412] ss:$4 sm:$0xff] %v3320
  %v3754 = vld.sshfl [vmem:[#allocation1] sm:$0xff pattern:$0x73625140]
  %v3755 = vld.sshfl [vmem:[#allocation1 + $0x20] sm:$0xff pattern:$0x73625140]
  %3756 = vst [vmem:[#allocation1] ss:$4 sm:$0xff] %v2989
  %3757 = vst [vmem:[%s3400] ss:$4 sm:$0xff] %v3321
  %3758 = vst [vmem:[%s3402] ss:$4 sm:$0xff] %v3322
  %3759 = vst [vmem:[%s3404] ss:$4 sm:$0xff] %v3323
  %3760 = vst [vmem:[%s3406] ss:$4 sm:$0xff] %v2990
  %3761 = vst [vmem:[%s3408] ss:$4 sm:$0xff] %v3324
  %3762 = vst [vmem:[%s3410] ss:$4 sm:$0xff] %v3325
  %3763 = vst [vmem:[%s3412] ss:$4 sm:$0xff] %v3326
  %v3764 = vld.sshfl [vmem:[#allocation1] sm:$0xff pattern:$0x73625140]
  %v3765 = vld.sshfl [vmem:[#allocation1 + $0x20] sm:$0xff pattern:$0x73625140]
  %3766 = vst [vmem:[#allocation1] ss:$4 sm:$0xff] %v2991
  %3767 = vst [vmem:[%s3400] ss:$4 sm:$0xff] %v3327
  %3768 = vst [vmem:[%s3402] ss:$4 sm:$0xff] %v3328
  %3769 = vst [vmem:[%s3404] ss:$4 sm:$0xff] %v3329
  %3770 = vst [vmem:[%s3406] ss:$4 sm:$0xff] %v2992
  %3771 = vst [vmem:[%s3408] ss:$4 sm:$0xff] %v3330
  %3772 = vst [vmem:[%s3410] ss:$4 sm:$0xff] %v3331
  %3773 = vst [vmem:[%s3412] ss:$4 sm:$0xff] %v3332
  %v3774 = vld.sshfl [vmem:[#allocation1] sm:$0xff pattern:$0x73625140]
  %v3775 = vld.sshfl [vmem:[#allocation1 + $0x20] sm:$0xff pattern:$0x73625140]
  %3776 = vst [vmem:[#allocation1] ss:$4 sm:$0xff] %v2993
  %3777 = vst [vmem:[%s3400] ss:$4 sm:$0xff] %v3333
  %3778 = vst [vmem:[%s3402] ss:$4 sm:$0xff] %v3334
  %3779 = vst [vmem:[%s3404] ss:$4 sm:$0xff] %v3335
  %3780 = vst [vmem:[%s3406] ss:$4 sm:$0xff] %v2994
  %3781 = vst [vmem:[%s3408] ss:$4 sm:$0xff] %v3336
  %3782 = vst [vmem:[%s3410] ss:$4 sm:$0xff] %v3337
  %3783 = vst [vmem:[%s3412] ss:$4 sm:$0xff] %v3338
  %v3784 = vld.sshfl [vmem:[#allocation1] sm:$0xff pattern:$0x73625140]
  %v3785 = vld.sshfl [vmem:[#allocation1 + $0x20] sm:$0xff pattern:$0x73625140]
  %3786 = vst [vmem:[#allocation1] ss:$4 sm:$0xff] %v2995
  %3787 = vst [vmem:[%s3400] ss:$4 sm:$0xff] %v3339
  %3788 = vst [vmem:[%s3402] ss:$4 sm:$0xff] %v3340
  %3789 = vst [vmem:[%s3404] ss:$4 sm:$0xff] %v3341
  %3790 = vst [vmem:[%s3406] ss:$4 sm:$0xff] %v2996
  %3791 = vst [vmem:[%s3408] ss:$4 sm:$0xff] %v3342
  %3792 = vst [vmem:[%s3410] ss:$4 sm:$0xff] %v3343
  %3793 = vst [vmem:[%s3412] ss:$4 sm:$0xff] %v3344
  %v3794 = vld.sshfl [vmem:[#allocation1] sm:$0xff pattern:$0x73625140]
  %v3795 = vld.sshfl [vmem:[#allocation1 + $0x20] sm:$0xff pattern:$0x73625140]
  %3796 = vst [vmem:[#allocation1] ss:$4 sm:$0xff] %v2997
  %3797 = vst [vmem:[%s3400] ss:$4 sm:$0xff] %v3345
  %3798 = vst [vmem:[%s3402] ss:$4 sm:$0xff] %v3346
  %3799 = vst [vmem:[%s3404] ss:$4 sm:$0xff] %v3347
  %3800 = vst [vmem:[%s3406] ss:$4 sm:$0xff] %v2998
  %3801 = vst [vmem:[%s3408] ss:$4 sm:$0xff] %v3348
  %3802 = vst [vmem:[%s3410] ss:$4 sm:$0xff] %v3349
  %3803 = vst [vmem:[%s3412] ss:$4 sm:$0xff] %v3350
  %v3804 = vld.sshfl [vmem:[#allocation1] sm:$0xff pattern:$0x73625140]
  %v3805 = vld.sshfl [vmem:[#allocation1 + $0x20] sm:$0xff pattern:$0x73625140]
  %3806 = vst [vmem:[#allocation1] ss:$4 sm:$0xff] %v2999
  %3807 = vst [vmem:[%s3400] ss:$4 sm:$0xff] %v3351
  %3808 = vst [vmem:[%s3402] ss:$4 sm:$0xff] %v3352
  %3809 = vst [vmem:[%s3404] ss:$4 sm:$0xff] %v3353
  %3810 = vst [vmem:[%s3406] ss:$4 sm:$0xff] %v3000
  %3811 = vst [vmem:[%s3408] ss:$4 sm:$0xff] %v3354
  %3812 = vst [vmem:[%s3410] ss:$4 sm:$0xff] %v3355
  %3813 = vst [vmem:[%s3412] ss:$4 sm:$0xff] %v3356
  %v3814 = vld.sshfl [vmem:[#allocation1] sm:$0xff pattern:$0x73625140]
  %v3815 = vld.sshfl [vmem:[#allocation1 + $0x20] sm:$0xff pattern:$0x73625140]
  %3816 = vst [vmem:[#allocation1] ss:$4 sm:$0xff] %v3001
  %3817 = vst [vmem:[%s3400] ss:$4 sm:$0xff] %v3357
  %3818 = vst [vmem:[%s3402] ss:$4 sm:$0xff] %v3358
  %3819 = vst [vmem:[%s3404] ss:$4 sm:$0xff] %v3359
  %3820 = vst [vmem:[%s3406] ss:$4 sm:$0xff] %v3002
  %3821 = vst [vmem:[%s3408] ss:$4 sm:$0xff] %v3360
  %3822 = vst [vmem:[%s3410] ss:$4 sm:$0xff] %v3361
  %3823 = vst [vmem:[%s3412] ss:$4 sm:$0xff] %v3362
  %v3824 = vld.sshfl [vmem:[#allocation1] sm:$0xff pattern:$0x73625140]
  %v3825 = vld.sshfl [vmem:[#allocation1 + $0x20] sm:$0xff pattern:$0x73625140]
  %3826 = vst [vmem:[#allocation1] ss:$4 sm:$0xff] %v3003
  %3827 = vst [vmem:[%s3400] ss:$4 sm:$0xff] %v3363
  %3828 = vst [vmem:[%s3402] ss:$4 sm:$0xff] %v3364
  %3829 = vst [vmem:[%s3404] ss:$4 sm:$0xff] %v3365
  %3830 = vst [vmem:[%s3406] ss:$4 sm:$0xff] %v3004
  %3831 = vst [vmem:[%s3408] ss:$4 sm:$0xff] %v3366
  %3832 = vst [vmem:[%s3410] ss:$4 sm:$0xff] %v3367
  %3833 = vst [vmem:[%s3412] ss:$4 sm:$0xff] %v3368
  %v3834 = vld.sshfl [vmem:[#allocation1] sm:$0xff pattern:$0x73625140]
  %v3835 = vld.sshfl [vmem:[#allocation1 + $0x20] sm:$0xff pattern:$0x73625140]
  %3836 = vst [vmem:[#allocation1] ss:$4 sm:$0xff] %v3005
  %3837 = vst [vmem:[%s3400] ss:$4 sm:$0xff] %v3369
  %3838 = vst [vmem:[%s3402] ss:$4 sm:$0xff] %v3370
  %3839 = vst [vmem:[%s3404] ss:$4 sm:$0xff] %v3371
  %3840 = vst [vmem:[%s3406] ss:$4 sm:$0xff] %v3006
  %3841 = vst [vmem:[%s3408] ss:$4 sm:$0xff] %v3372
  %3842 = vst [vmem:[%s3410] ss:$4 sm:$0xff] %v3373
  %3843 = vst [vmem:[%s3412] ss:$4 sm:$0xff] %v3374
  %v3844 = vld.sshfl [vmem:[#allocation1] sm:$0xff pattern:$0x73625140]
  %v3845 = vld.sshfl [vmem:[#allocation1 + $0x20] sm:$0xff pattern:$0x73625140]
  %3846 = vst [vmem:[#allocation1] ss:$4 sm:$0xff] %v3007
  %3847 = vst [vmem:[%s3400] ss:$4 sm:$0xff] %v3375
  %3848 = vst [vmem:[%s3402] ss:$4 sm:$0xff] %v3376
  %3849 = vst [vmem:[%s3404] ss:$4 sm:$0xff] %v3377
  %3850 = vst [vmem:[%s3406] ss:$4 sm:$0xff] %v3008
  %3851 = vst [vmem:[%s3408] ss:$4 sm:$0xff] %v3378
  %3852 = vst [vmem:[%s3410] ss:$4 sm:$0xff] %v3379
  %3853 = vst [vmem:[%s3412] ss:$4 sm:$0xff] %v3380
  %v3854 = vld.sshfl [vmem:[#allocation1] sm:$0xff pattern:$0x73625140]
  %v3855 = vld.sshfl [vmem:[#allocation1 + $0x20] sm:$0xff pattern:$0x73625140]
  %3856 = vst [vmem:[#allocation1] ss:$4 sm:$0xff] %v3009
  %3857 = vst [vmem:[%s3400] ss:$4 sm:$0xff] %v3381
  %3858 = vst [vmem:[%s3402] ss:$4 sm:$0xff] %v3382
  %3859 = vst [vmem:[%s3404] ss:$4 sm:$0xff] %v3383
  %3860 = vst [vmem:[%s3406] ss:$4 sm:$0xff] %v3010
  %3861 = vst [vmem:[%s3408] ss:$4 sm:$0xff] %v3384
  %3862 = vst [vmem:[%s3410] ss:$4 sm:$0xff] %v3385
  %3863 = vst [vmem:[%s3412] ss:$4 sm:$0xff] %v3386
  %v3864 = vld.sshfl [vmem:[#allocation1] sm:$0xff pattern:$0x73625140]
  %v3865 = vld.sshfl [vmem:[#allocation1 + $0x20] sm:$0xff pattern:$0x73625140]
  %3866 = vst [vmem:[#allocation1] ss:$4 sm:$0xff] %v3011
  %3867 = vst [vmem:[%s3400] ss:$4 sm:$0xff] %v3387
  %3868 = vst [vmem:[%s3402] ss:$4 sm:$0xff] %v3388
  %3869 = vst [vmem:[%s3404] ss:$4 sm:$0xff] %v3389
  %3870 = vst [vmem:[%s3406] ss:$4 sm:$0xff] %v3012
  %3871 = vst [vmem:[%s3408] ss:$4 sm:$0xff] %v3390
  %3872 = vst [vmem:[%s3410] ss:$4 sm:$0xff] %v3391
  %3873 = vst [vmem:[%s3412] ss:$4 sm:$0xff] %v3392
  %v3874 = vld.sshfl [vmem:[#allocation1] sm:$0xff pattern:$0x73625140]
  %v3875 = vld.sshfl [vmem:[#allocation1 + $0x20] sm:$0xff pattern:$0x73625140]
  %3876 = vst [vmem:[#allocation1] ss:$4 sm:$0xff] %v3013
  %3877 = vst [vmem:[%s3400] ss:$4 sm:$0xff] %v3393
  %3878 = vst [vmem:[%s3402] ss:$4 sm:$0xff] %v3394
  %3879 = vst [vmem:[%s3404] ss:$4 sm:$0xff] %v3395
  %3880 = vst [vmem:[%s3406] ss:$4 sm:$0xff] %v3014
  %3881 = vst [vmem:[%s3408] ss:$4 sm:$0xff] %v3396
  %3882 = vst [vmem:[%s3410] ss:$4 sm:$0xff] %v3397
  %3883 = vst [vmem:[%s3412] ss:$4 sm:$0xff] %v3398
  %v3884 = vld.sshfl [vmem:[#allocation1] sm:$0xff pattern:$0x73625140]
  %v3885 = vld.sshfl [vmem:[#allocation1 + $0x20] sm:$0xff pattern:$0x73625140]
  %3886 = vset.pattern.permute.xlu0 0
  %3887 = vperm.xlu0 %3886, %v3414
  %v3888 = vpop.permute.xlu0 %3887
  %3889 = vset.pattern.permute.xlu0 0
  %3890 = vperm.xlu0 %3889, %v3415
  %v3891 = vpop.permute.xlu0 %3890
  %3892 = vset.pattern.permute.xlu0 0
  %3893 = vperm.xlu0 %3892, %v3424
  %v3894 = vpop.permute.xlu0 %3893
  %3895 = vset.pattern.permute.xlu0 0
  %3896 = vperm.xlu0 %3895, %v3425
  %v3897 = vpop.permute.xlu0 %3896
  %3898 = vset.pattern.permute.xlu0 0
  %3899 = vperm.xlu0 %3898, %v3434
  %v3900 = vpop.permute.xlu0 %3899
  %3901 = vset.pattern.permute.xlu0 0
  %3902 = vperm.xlu0 %3901, %v3435
  %v3903 = vpop.permute.xlu0 %3902
  %3904 = vset.pattern.permute.xlu0 0
  %3905 = vperm.xlu0 %3904, %v3444
  %v3906 = vpop.permute.xlu0 %3905
  %3907 = vset.pattern.permute.xlu0 0
  %3908 = vperm.xlu0 %3907, %v3445
  %v3909 = vpop.permute.xlu0 %3908
  %3910 = vset.pattern.permute.xlu0 0
  %3911 = vperm.xlu0 %3910, %v3454
  %v3912 = vpop.permute.xlu0 %3911
  %3913 = vset.pattern.permute.xlu0 0
  %3914 = vperm.xlu0 %3913, %v3455
  %v3915 = vpop.permute.xlu0 %3914
  %3916 = vset.pattern.permute.xlu0 0
  %3917 = vperm.xlu0 %3916, %v3464
  %v3918 = vpop.permute.xlu0 %3917
  %3919 = vset.pattern.permute.xlu0 0
  %3920 = vperm.xlu0 %3919, %v3465
  %v3921 = vpop.permute.xlu0 %3920
  %3922 = vset.pattern.permute.xlu0 0
  %3923 = vperm.xlu0 %3922, %v3474
  %v3924 = vpop.permute.xlu0 %3923
  %3925 = vset.pattern.permute.xlu0 0
  %3926 = vperm.xlu0 %3925, %v3475
  %v3927 = vpop.permute.xlu0 %3926
  %3928 = vset.pattern.permute.xlu0 0
  %3929 = vperm.xlu0 %3928, %v3484
  %v3930 = vpop.permute.xlu0 %3929
  %3931 = vset.pattern.permute.xlu0 0
  %3932 = vperm.xlu0 %3931, %v3485
  %v3933 = vpop.permute.xlu0 %3932
  %3934 = vset.pattern.permute.xlu0 0
  %3935 = vperm.xlu0 %3934, %v3494
  %v3936 = vpop.permute.xlu0 %3935
  %3937 = vset.pattern.permute.xlu0 0
  %3938 = vperm.xlu0 %3937, %v3495
  %v3939 = vpop.permute.xlu0 %3938
  %3940 = vset.pattern.permute.xlu0 0
  %3941 = vperm.xlu0 %3940, %v3504
  %v3942 = vpop.permute.xlu0 %3941
  %3943 = vset.pattern.permute.xlu0 0
  %3944 = vperm.xlu0 %3943, %v3505
  %v3945 = vpop.permute.xlu0 %3944
  %3946 = vset.pattern.permute.xlu0 0
  %3947 = vperm.xlu0 %3946, %v3514
  %v3948 = vpop.permute.xlu0 %3947
  %3949 = vset.pattern.permute.xlu0 0
  %3950 = vperm.xlu0 %3949, %v3515
  %v3951 = vpop.permute.xlu0 %3950
  %3952 = vset.pattern.permute.xlu0 0
  %3953 = vperm.xlu0 %3952, %v3524
  %v3954 = vpop.permute.xlu0 %3953
  %3955 = vset.pattern.permute.xlu0 0
  %3956 = vperm.xlu0 %3955, %v3525
  %v3957 = vpop.permute.xlu0 %3956
  %3958 = vset.pattern.permute.xlu0 0
  %3959 = vperm.xlu0 %3958, %v3534
  %v3960 = vpop.permute.xlu0 %3959
  %3961 = vset.pattern.permute.xlu0 0
  %3962 = vperm.xlu0 %3961, %v3535
  %v3963 = vpop.permute.xlu0 %3962
  %3964 = vset.pattern.permute.xlu0 0
  %3965 = vperm.xlu0 %3964, %v3544
  %v3966 = vpop.permute.xlu0 %3965
  %3967 = vset.pattern.permute.xlu0 0
  %3968 = vperm.xlu0 %3967, %v3545
  %v3969 = vpop.permute.xlu0 %3968
  %3970 = vset.pattern.permute.xlu0 0
  %3971 = vperm.xlu0 %3970, %v3554
  %v3972 = vpop.permute.xlu0 %3971
  %3973 = vset.pattern.permute.xlu0 0
  %3974 = vperm.xlu0 %3973, %v3555
  %v3975 = vpop.permute.xlu0 %3974
  %3976 = vset.pattern.permute.xlu0 0
  %3977 = vperm.xlu0 %3976, %v3564
  %v3978 = vpop.permute.xlu0 %3977
  %3979 = vset.pattern.permute.xlu0 0
  %3980 = vperm.xlu0 %3979, %v3565
  %v3981 = vpop.permute.xlu0 %3980
  %3982 = vset.pattern.permute.xlu0 0
  %3983 = vperm.xlu0 %3982, %v3574
  %v3984 = vpop.permute.xlu0 %3983
  %3985 = vset.pattern.permute.xlu0 0
  %3986 = vperm.xlu0 %3985, %v3575
  %v3987 = vpop.permute.xlu0 %3986
  %3988 = vset.pattern.permute.xlu0 0
  %3989 = vperm.xlu0 %3988, %v3584
  %v3990 = vpop.permute.xlu0 %3989
  %3991 = vset.pattern.permute.xlu0 0
  %3992 = vperm.xlu0 %3991, %v3585
  %v3993 = vpop.permute.xlu0 %3992
  %3994 = vset.pattern.permute.xlu0 0
  %3995 = vperm.xlu0 %3994, %v3594
  %v3996 = vpop.permute.xlu0 %3995
  %3997 = vset.pattern.permute.xlu0 0
  %3998 = vperm.xlu0 %3997, %v3595
  %v3999 = vpop.permute.xlu0 %3998
  %4000 = vset.pattern.permute.xlu0 0
  %4001 = vperm.xlu0 %4000, %v3604
  %v4002 = vpop.permute.xlu0 %4001
  %4003 = vset.pattern.permute.xlu0 0
  %4004 = vperm.xlu0 %4003, %v3605
  %v4005 = vpop.permute.xlu0 %4004
  %4006 = vset.pattern.permute.xlu0 0
  %4007 = vperm.xlu0 %4006, %v3614
  %v4008 = vpop.permute.xlu0 %4007
  %4009 = vset.pattern.permute.xlu0 0
  %4010 = vperm.xlu0 %4009, %v3615
  %v4011 = vpop.permute.xlu0 %4010
  %4012 = vset.pattern.permute.xlu0 0
  %4013 = vperm.xlu0 %4012, %v3624
  %v4014 = vpop.permute.xlu0 %4013
  %4015 = vset.pattern.permute.xlu0 0
  %4016 = vperm.xlu0 %4015, %v3625
  %v4017 = vpop.permute.xlu0 %4016
  %4018 = vset.pattern.permute.xlu0 0
  %4019 = vperm.xlu0 %4018, %v3634
  %v4020 = vpop.permute.xlu0 %4019
  %4021 = vset.pattern.permute.xlu0 0
  %4022 = vperm.xlu0 %4021, %v3635
  %v4023 = vpop.permute.xlu0 %4022
  %4024 = vset.pattern.permute.xlu0 0
  %4025 = vperm.xlu0 %4024, %v3644
  %v4026 = vpop.permute.xlu0 %4025
  %4027 = vset.pattern.permute.xlu0 0
  %4028 = vperm.xlu0 %4027, %v3645
  %v4029 = vpop.permute.xlu0 %4028
  %4030 = vset.pattern.permute.xlu0 0
  %4031 = vperm.xlu0 %4030, %v3654
  %v4032 = vpop.permute.xlu0 %4031
  %4033 = vset.pattern.permute.xlu0 0
  %4034 = vperm.xlu0 %4033, %v3655
  %v4035 = vpop.permute.xlu0 %4034
  %4036 = vset.pattern.permute.xlu0 0
  %4037 = vperm.xlu0 %4036, %v3664
  %v4038 = vpop.permute.xlu0 %4037
  %4039 = vset.pattern.permute.xlu0 0
  %4040 = vperm.xlu0 %4039, %v3665
  %v4041 = vpop.permute.xlu0 %4040
  %4042 = vset.pattern.permute.xlu0 0
  %4043 = vperm.xlu0 %4042, %v3674
  %v4044 = vpop.permute.xlu0 %4043
  %4045 = vset.pattern.permute.xlu0 0
  %4046 = vperm.xlu0 %4045, %v3675
  %v4047 = vpop.permute.xlu0 %4046
  %4048 = vset.pattern.permute.xlu0 0
  %4049 = vperm.xlu0 %4048, %v3684
  %v4050 = vpop.permute.xlu0 %4049
  %4051 = vset.pattern.permute.xlu0 0
  %4052 = vperm.xlu0 %4051, %v3685
  %v4053 = vpop.permute.xlu0 %4052
  %4054 = vset.pattern.permute.xlu0 0
  %4055 = vperm.xlu0 %4054, %v3694
  %v4056 = vpop.permute.xlu0 %4055
  %4057 = vset.pattern.permute.xlu0 0
  %4058 = vperm.xlu0 %4057, %v3695
  %v4059 = vpop.permute.xlu0 %4058
  %4060 = vset.pattern.permute.xlu0 0
  %4061 = vperm.xlu0 %4060, %v3704
  %v4062 = vpop.permute.xlu0 %4061
  %4063 = vset.pattern.permute.xlu0 0
  %4064 = vperm.xlu0 %4063, %v3705
  %v4065 = vpop.permute.xlu0 %4064
  %4066 = vset.pattern.permute.xlu0 0
  %4067 = vperm.xlu0 %4066, %v3714
  %v4068 = vpop.permute.xlu0 %4067
  %4069 = vset.pattern.permute.xlu0 0
  %4070 = vperm.xlu0 %4069, %v3715
  %v4071 = vpop.permute.xlu0 %4070
  %4072 = vset.pattern.permute.xlu0 0
  %4073 = vperm.xlu0 %4072, %v3724
  %v4074 = vpop.permute.xlu0 %4073
  %4075 = vset.pattern.permute.xlu0 0
  %4076 = vperm.xlu0 %4075, %v3725
  %v4077 = vpop.permute.xlu0 %4076
  %4078 = vset.pattern.permute.xlu0 0
  %4079 = vperm.xlu0 %4078, %v3734
  %v4080 = vpop.permute.xlu0 %4079
  %4081 = vset.pattern.permute.xlu0 0
  %4082 = vperm.xlu0 %4081, %v3735
  %v4083 = vpop.permute.xlu0 %4082
  %4084 = vset.pattern.permute.xlu0 0
  %4085 = vperm.xlu0 %4084, %v3744
  %v4086 = vpop.permute.xlu0 %4085
  %4087 = vset.pattern.permute.xlu0 0
  %4088 = vperm.xlu0 %4087, %v3745
  %v4089 = vpop.permute.xlu0 %4088
  %4090 = vset.pattern.permute.xlu0 0
  %4091 = vperm.xlu0 %4090, %v3754
  %v4092 = vpop.permute.xlu0 %4091
  %4093 = vset.pattern.permute.xlu0 0
  %4094 = vperm.xlu0 %4093, %v3755
  %v4095 = vpop.permute.xlu0 %4094
  %4096 = vset.pattern.permute.xlu0 0
  %4097 = vperm.xlu0 %4096, %v3764
  %v4098 = vpop.permute.xlu0 %4097
  %4099 = vset.pattern.permute.xlu0 0
  %4100 = vperm.xlu0 %4099, %v3765
  %v4101 = vpop.permute.xlu0 %4100
  %4102 = vset.pattern.permute.xlu0 0
  %4103 = vperm.xlu0 %4102, %v3774
  %v4104 = vpop.permute.xlu0 %4103
  %4105 = vset.pattern.permute.xlu0 0
  %4106 = vperm.xlu0 %4105, %v3775
  %v4107 = vpop.permute.xlu0 %4106
  %4108 = vset.pattern.permute.xlu0 0
  %4109 = vperm.xlu0 %4108, %v3784
  %v4110 = vpop.permute.xlu0 %4109
  %4111 = vset.pattern.permute.xlu0 0
  %4112 = vperm.xlu0 %4111, %v3785
  %v4113 = vpop.permute.xlu0 %4112
  %4114 = vset.pattern.permute.xlu0 0
  %4115 = vperm.xlu0 %4114, %v3794
  %v4116 = vpop.permute.xlu0 %4115
  %4117 = vset.pattern.permute.xlu0 0
  %4118 = vperm.xlu0 %4117, %v3795
  %v4119 = vpop.permute.xlu0 %4118
  %4120 = vset.pattern.permute.xlu0 0
  %4121 = vperm.xlu0 %4120, %v3804
  %v4122 = vpop.permute.xlu0 %4121
  %4123 = vset.pattern.permute.xlu0 0
  %4124 = vperm.xlu0 %4123, %v3805
  %v4125 = vpop.permute.xlu0 %4124
  %4126 = vset.pattern.permute.xlu0 0
  %4127 = vperm.xlu0 %4126, %v3814
  %v4128 = vpop.permute.xlu0 %4127
  %4129 = vset.pattern.permute.xlu0 0
  %4130 = vperm.xlu0 %4129, %v3815
  %v4131 = vpop.permute.xlu0 %4130
  %4132 = vset.pattern.permute.xlu0 0
  %4133 = vperm.xlu0 %4132, %v3824
  %v4134 = vpop.permute.xlu0 %4133
  %4135 = vset.pattern.permute.xlu0 0
  %4136 = vperm.xlu0 %4135, %v3825
  %v4137 = vpop.permute.xlu0 %4136
  %4138 = vset.pattern.permute.xlu0 0
  %4139 = vperm.xlu0 %4138, %v3834
  %v4140 = vpop.permute.xlu0 %4139
  %4141 = vset.pattern.permute.xlu0 0
  %4142 = vperm.xlu0 %4141, %v3835
  %v4143 = vpop.permute.xlu0 %4142
  %4144 = vset.pattern.permute.xlu0 0
  %4145 = vperm.xlu0 %4144, %v3844
  %v4146 = vpop.permute.xlu0 %4145
  %4147 = vset.pattern.permute.xlu0 0
  %4148 = vperm.xlu0 %4147, %v3845
  %v4149 = vpop.permute.xlu0 %4148
  %4150 = vset.pattern.permute.xlu0 0
  %4151 = vperm.xlu0 %4150, %v3854
  %v4152 = vpop.permute.xlu0 %4151
  %4153 = vset.pattern.permute.xlu0 0
  %4154 = vperm.xlu0 %4153, %v3855
  %v4155 = vpop.permute.xlu0 %4154
  %4156 = vset.pattern.permute.xlu0 0
  %4157 = vperm.xlu0 %4156, %v3864
  %v4158 = vpop.permute.xlu0 %4157
  %4159 = vset.pattern.permute.xlu0 0
  %4160 = vperm.xlu0 %4159, %v3865
  %v4161 = vpop.permute.xlu0 %4160
  %4162 = vset.pattern.permute.xlu0 0
  %4163 = vperm.xlu0 %4162, %v3874
  %v4164 = vpop.permute.xlu0 %4163
  %4165 = vset.pattern.permute.xlu0 0
  %4166 = vperm.xlu0 %4165, %v3875
  %v4167 = vpop.permute.xlu0 %4166
  %4168 = vset.pattern.permute.xlu0 0
  %4169 = vperm.xlu0 %4168, %v3884
  %v4170 = vpop.permute.xlu0 %4169
  %4171 = vset.pattern.permute.xlu0 0
  %4172 = vperm.xlu0 %4171, %v3885
  %v4173 = vpop.permute.xlu0 %4172
  %v4174 = vperm.slane %v3888, %v2673
  %v4175 = vperm.slane %v3891, %v2675
  %v4176 = vsel %vm2677, %v4175, %v4174
  %v4177 = vperm.slane %v3894, %v2679
  %v4178 = vsel %vm2681, %v4177, %v4176
  %v4179 = vperm.slane %v3897, %v2683
  %v4180 = vsel %vm2685, %v4179, %v4178
  %v4181 = vperm.slane %v3900, %v2687
  %v4182 = vsel %vm2689, %v4181, %v4180
  %v4183 = vperm.slane %v3903, %v2691
  %v4184 = vsel %vm2693, %v4183, %v4182
  %v4185 = vperm.slane %v3906, %v2695
  %v4186 = vsel %vm2697, %v4185, %v4184
  %v4187 = vperm.slane %v3909, %v2699
  %v4188 = vsel %vm2701, %v4187, %v4186
  %v4189 = vperm.slane %v3912, %v2703
  %v4190 = vsel %vm2705, %v4189, %v4188
  %v4191 = vperm.slane %v3915, %v2707
  %v4192 = vsel %vm2709, %v4191, %v4190
  %v4193 = vperm.slane %v3918, %v2711
  %v4194 = vsel %vm2713, %v4193, %v4192
  %v4195 = vperm.slane %v3921, %v2715
  %v4196 = vsel %vm2717, %v4195, %v4194
  %v4197 = vperm.slane %v3924, %v2719
  %v4198 = vsel %vm2721, %v4197, %v4196
  %v4199 = vperm.slane %v3927, %v2723
  %v4200 = vsel %vm2725, %v4199, %v4198
  %v4201 = vperm.slane %v3930, %v2727
  %v4202 = vsel %vm2729, %v4201, %v4200
  %v4203 = vperm.slane %v3933, %v2731
  %v4204 = vsel %vm2733, %v4203, %v4202
  %v4205 = vperm.slane %v3936, %v2673
  %v4206 = vperm.slane %v3939, %v2675
  %v4207 = vsel %vm2677, %v4206, %v4205
  %v4208 = vperm.slane %v3942, %v2679
  %v4209 = vsel %vm2681, %v4208, %v4207
  %v4210 = vperm.slane %v3945, %v2683
  %v4211 = vsel %vm2685, %v4210, %v4209
  %v4212 = vperm.slane %v3948, %v2687
  %v4213 = vsel %vm2689, %v4212, %v4211
  %v4214 = vperm.slane %v3951, %v2691
  %v4215 = vsel %vm2693, %v4214, %v4213
  %v4216 = vperm.slane %v3954, %v2695
  %v4217 = vsel %vm2697, %v4216, %v4215
  %v4218 = vperm.slane %v3957, %v2699
  %v4219 = vsel %vm2701, %v4218, %v4217
  %v4220 = vperm.slane %v3960, %v2703
  %v4221 = vsel %vm2705, %v4220, %v4219
  %v4222 = vperm.slane %v3963, %v2707
  %v4223 = vsel %vm2709, %v4222, %v4221
  %v4224 = vperm.slane %v3966, %v2711
  %v4225 = vsel %vm2713, %v4224, %v4223
  %v4226 = vperm.slane %v3969, %v2715
  %v4227 = vsel %vm2717, %v4226, %v4225
  %v4228 = vperm.slane %v3972, %v2719
  %v4229 = vsel %vm2721, %v4228, %v4227
  %v4230 = vperm.slane %v3975, %v2723
  %v4231 = vsel %vm2725, %v4230, %v4229
  %v4232 = vperm.slane %v3978, %v2727
  %v4233 = vsel %vm2729, %v4232, %v4231
  %v4234 = vperm.slane %v3981, %v2731
  %v4235 = vsel %vm2733, %v4234, %v4233
  %v4236 = vperm.slane %v3984, %v2673
  %v4237 = vperm.slane %v3987, %v2675
  %v4238 = vsel %vm2677, %v4237, %v4236
  %v4239 = vperm.slane %v3990, %v2679
  %v4240 = vsel %vm2681, %v4239, %v4238
  %v4241 = vperm.slane %v3993, %v2683
  %v4242 = vsel %vm2685, %v4241, %v4240
  %v4243 = vperm.slane %v3996, %v2687
  %v4244 = vsel %vm2689, %v4243, %v4242
  %v4245 = vperm.slane %v3999, %v2691
  %v4246 = vsel %vm2693, %v4245, %v4244
  %v4247 = vperm.slane %v4002, %v2695
  %v4248 = vsel %vm2697, %v4247, %v4246
  %v4249 = vperm.slane %v4005, %v2699
  %v4250 = vsel %vm2701, %v4249, %v4248
  %v4251 = vperm.slane %v4008, %v2703
  %v4252 = vsel %vm2705, %v4251, %v4250
  %v4253 = vperm.slane %v4011, %v2707
  %v4254 = vsel %vm2709, %v4253, %v4252
  %v4255 = vperm.slane %v4014, %v2711
  %v4256 = vsel %vm2713, %v4255, %v4254
  %v4257 = vperm.slane %v4017, %v2715
  %v4258 = vsel %vm2717, %v4257, %v4256
  %v4259 = vperm.slane %v4020, %v2719
  %v4260 = vsel %vm2721, %v4259, %v4258
  %v4261 = vperm.slane %v4023, %v2723
  %v4262 = vsel %vm2725, %v4261, %v4260
  %v4263 = vperm.slane %v4026, %v2727
  %v4264 = vsel %vm2729, %v4263, %v4262
  %v4265 = vperm.slane %v4029, %v2731
  %v4266 = vsel %vm2733, %v4265, %v4264
  %v4267 = vperm.slane %v4032, %v2673
  %v4268 = vperm.slane %v4035, %v2675
  %v4269 = vsel %vm2677, %v4268, %v4267
  %v4270 = vperm.slane %v4038, %v2679
  %v4271 = vsel %vm2681, %v4270, %v4269
  %v4272 = vperm.slane %v4041, %v2683
  %v4273 = vsel %vm2685, %v4272, %v4271
  %v4274 = vperm.slane %v4044, %v2687
  %v4275 = vsel %vm2689, %v4274, %v4273
  %v4276 = vperm.slane %v4047, %v2691
  %v4277 = vsel %vm2693, %v4276, %v4275
  %v4278 = vperm.slane %v4050, %v2695
  %v4279 = vsel %vm2697, %v4278, %v4277
  %v4280 = vperm.slane %v4053, %v2699
  %v4281 = vsel %vm2701, %v4280, %v4279
  %v4282 = vperm.slane %v4056, %v2703
  %v4283 = vsel %vm2705, %v4282, %v4281
  %v4284 = vperm.slane %v4059, %v2707
  %v4285 = vsel %vm2709, %v4284, %v4283
  %v4286 = vperm.slane %v4062, %v2711
  %v4287 = vsel %vm2713, %v4286, %v4285
  %v4288 = vperm.slane %v4065, %v2715
  %v4289 = vsel %vm2717, %v4288, %v4287
  %v4290 = vperm.slane %v4068, %v2719
  %v4291 = vsel %vm2721, %v4290, %v4289
  %v4292 = vperm.slane %v4071, %v2723
  %v4293 = vsel %vm2725, %v4292, %v4291
  %v4294 = vperm.slane %v4074, %v2727
  %v4295 = vsel %vm2729, %v4294, %v4293
  %v4296 = vperm.slane %v4077, %v2731
  %v4297 = vsel %vm2733, %v4296, %v4295
  %v4298 = vperm.slane %v4080, %v2673
  %v4299 = vperm.slane %v4083, %v2675
  %v4300 = vsel %vm2677, %v4299, %v4298
  %v4301 = vperm.slane %v4086, %v2679
  %v4302 = vsel %vm2681, %v4301, %v4300
  %v4303 = vperm.slane %v4089, %v2683
  %v4304 = vsel %vm2685, %v4303, %v4302
  %v4305 = vperm.slane %v4092, %v2687
  %v4306 = vsel %vm2689, %v4305, %v4304
  %v4307 = vperm.slane %v4095, %v2691
  %v4308 = vsel %vm2693, %v4307, %v4306
  %v4309 = vperm.slane %v4098, %v2695
  %v4310 = vsel %vm2697, %v4309, %v4308
  %v4311 = vperm.slane %v4101, %v2699
  %v4312 = vsel %vm2701, %v4311, %v4310
  %v4313 = vperm.slane %v4104, %v2703
  %v4314 = vsel %vm2705, %v4313, %v4312
  %v4315 = vperm.slane %v4107, %v2707
  %v4316 = vsel %vm2709, %v4315, %v4314
  %v4317 = vperm.slane %v4110, %v2711
  %v4318 = vsel %vm2713, %v4317, %v4316
  %v4319 = vperm.slane %v4113, %v2715
  %v4320 = vsel %vm2717, %v4319, %v4318
  %v4321 = vperm.slane %v4116, %v2719
  %v4322 = vsel %vm2721, %v4321, %v4320
  %v4323 = vperm.slane %v4119, %v2723
  %v4324 = vsel %vm2725, %v4323, %v4322
  %v4325 = vperm.slane %v4122, %v2727
  %v4326 = vsel %vm2729, %v4325, %v4324
  %v4327 = vperm.slane %v4125, %v2731
  %v4328 = vsel %vm2733, %v4327, %v4326
  %v4329 = vperm.slane %v4128, %v2673
  %v4330 = vperm.slane %v4131, %v2675
  %v4331 = vsel %vm2677, %v4330, %v4329
  %v4332 = vperm.slane %v4134, %v2679
  %v4333 = vsel %vm2681, %v4332, %v4331
  %v4334 = vperm.slane %v4137, %v2683
  %v4335 = vsel %vm2685, %v4334, %v4333
  %v4336 = vperm.slane %v4140, %v2687
  %v4337 = vsel %vm2689, %v4336, %v4335
  %v4338 = vperm.slane %v4143, %v2691
  %v4339 = vsel %vm2693, %v4338, %v4337
  %v4340 = vperm.slane %v4146, %v2695
  %v4341 = vsel %vm2697, %v4340, %v4339
  %v4342 = vperm.slane %v4149, %v2699
  %v4343 = vsel %vm2701, %v4342, %v4341
  %v4344 = vperm.slane %v4152, %v2703
  %v4345 = vsel %vm2705, %v4344, %v4343
  %v4346 = vperm.slane %v4155, %v2707
  %v4347 = vsel %vm2709, %v4346, %v4345
  %v4348 = vperm.slane %v4158, %v2711
  %v4349 = vsel %vm2713, %v4348, %v4347
  %v4350 = vperm.slane %v4161, %v2715
  %v4351 = vsel %vm2717, %v4350, %v4349
  %v4352 = vperm.slane %v4164, %v2719
  %v4353 = vsel %vm2721, %v4352, %v4351
  %v4354 = vperm.slane %v4167, %v2723
  %v4355 = vsel %vm2725, %v4354, %v4353
  %v4356 = vperm.slane %v4170, %v2727
  %v4357 = vsel %vm2729, %v4356, %v4355
  %v4358 = vperm.slane %v4173, %v2731
  %v4359 = vsel %vm2733, %v4358, %v4357
  %v4360 = vsel %vm38, %v4297, %v4204
  %v4361 = vsel %vm38, %v4328, %v4235
  %v4362 = vsel %vm38, %v4359, %v4266
  %v4363 = vrot.slane %v4361, 6
  %v4364 = vrot.slane %v4362, 4
  %v4365 = vsel %vm23, %v4360, %v4363
  %v4366 = vsel %vm51, %v4365, %v4364
  %4368 = vst [vmem:[%s3] sm:$0x3f] %v4366
  // Predicated region
  $region14: #{_ensemble_forward.1} parent=0 // pred_check
    _
  $region15: #{_ensemble_forward.1} parent=0 // pred_check_branch
    %4370 = sbr.rel (0) target = $region17
  $region16: #{_ensemble_forward.1} parent=0 // pred_region
    _
  $region17: #{_ensemble_forward.1} parent=0 // pred_fallthru
    _
  // Predicated region
  $region18: #{_ensemble_forward.1} parent=0 // pred_check
    _
  $region19: #{_ensemble_forward.1} parent=0 // pred_check_branch
    %4372 = sbr.rel (0) target = $region21
  $region20: #{_ensemble_forward.1} parent=0 // pred_region
    _
  $region21: #{_ensemble_forward.1} parent=0 // pred_fallthru
    _

</llo_original>
